<compile_context>
chip_gen: v6e
topology: v6e:2x2x1
jax: 0.10.0
libtpu: 0.0.40
codegen_flags: <defaults>
</compile_context>

<pallas_src>
import math

import jax
import jax.numpy as jnp
from jax.experimental import pallas as pl
from jax.experimental.pallas import tpu as pltpu

# ----------------------- config (ViT-B/16-style, scaled down) -----------------------
IMAGE = 32
PATCH = 16
CIN = 3
HIDDEN = 128                    # residual width = one full 128-lane vreg row
HEADS = 4
HEAD_DIM = HIDDEN // HEADS      # 32
MLP = 256
LAYERS = 2
NUM_CLASSES = 8
CLS_PAD = 128                   # head output padded to a lane-dense row; sliced in XLA
EPS = 1e-6                      # torchvision ViT uses LayerNorm(eps=1e-6)
N_PATCH = (IMAGE // PATCH) ** 2 # 4
SEQ = N_PATCH + 1               # 5 (cls + patches)
S_PAD = 8                       # sequence padded to 8 sublanes; pad keys masked in softmax
CPP = CIN * PATCH * PATCH       # 768


# --------------------------------- in-kernel helpers ---------------------------------
def _bf16(x):
    return x.astype(jnp.bfloat16)


def _ln(x, g, b):
    """LayerNorm over the last (lane) axis, f32 math."""
    mu = jnp.mean(x, axis=-1, keepdims=True)
    var = jnp.mean((x - mu) * (x - mu), axis=-1, keepdims=True)
    return (x - mu) * jax.lax.rsqrt(var + EPS) * g + b


def _gelu(x):
    # exact GELU (torch.nn.GELU default), f32 math.  (tanh-approx is a v5e option.)
    return 0.5 * x * (1.0 + jax.lax.erf(x * (1.0 / math.sqrt(2.0))))


# ------------------------- the single fused forward kernel ---------------------------
def _vit_kernel(patches_ref, pw_ref, tok0_ref,
                ln1g_ref, ln1b_ref, wqkv_ref, bqkv_ref, wo_ref, bo_ref,
                ln2g_ref, ln2b_ref, w1_ref, b1_ref, w2_ref, b2_ref,
                lng_ref, lnb_ref, hw_ref, hb_ref,
                o_ref, tok_ref):
    l = pl.program_id(1)

    # ---- layer-0 prologue: patch-embed matmul + (cls | pos | conv-bias) prefix -------------
    # patches rows 0 and 5..7 are zero, so their matmul contribution is zero; the conv bias is
    # folded into tok0 rows 1..4 (and only there), cls+pos0 sits in row 0, pad rows stay 0.
    @pl.when(l == 0)
    def _():
        emb = jnp.dot(patches_ref[0], pw_ref[...],
                      preferred_element_type=jnp.float32)          # (S_PAD, E)
        tok_ref[...] = tok0_ref[0] + emb

    x = tok_ref[...]                                               # (S_PAD, E) f32 residual stream
    scale = 1.0 / math.sqrt(HEAD_DIM)
    # key-padding mask (hoisted out of the head loop): padded key columns -> -inf logits, so
    # garbage in the pad rows can never leak into the real tokens through attention.
    kmask = jax.lax.broadcasted_iota(jnp.int32, (S_PAD, S_PAD), 1) < SEQ

    # ---- attention: LN -> fused QKV matmul -> per-head softmax(QK^T)V -> one out-proj -> +res
    h = _bf16(_ln(x, ln1g_ref[0], ln1b_ref[0]))                    # (S_PAD, E) bf16
    qkv = jnp.dot(h, wqkv_ref[0],
                  preferred_element_type=jnp.float32) + bqkv_ref[0]  # (S_PAD, 3E), fused bias

    heads = []
    for hd in range(HEADS):                                        # static loop over heads only
        q = qkv[:, hd * HEAD_DIM:(hd + 1) * HEAD_DIM]
        k = qkv[:, HIDDEN + hd * HEAD_DIM: HIDDEN + (hd + 1) * HEAD_DIM]
        v = qkv[:, 2 * HIDDEN + hd * HEAD_DIM: 2 * HIDDEN + (hd + 1) * HEAD_DIM]
        s = jax.lax.dot_general(_bf16(q * scale), _bf16(k),
                                (((1,), (1,)), ((), ())),
                                preferred_element_type=jnp.float32)   # (S_PAD, S_PAD)
        s = jnp.where(kmask, s, -1e30)
        m = jnp.max(s, axis=-1, keepdims=True)
        p = jnp.exp(s - m)
        # EUP approx reciprocal: probs sum to 1 +- ~1e-3 (documented inference-grade deviation)
        p = p * pl.reciprocal(jnp.sum(p, axis=-1, keepdims=True), approx=True)
        heads.append(jnp.dot(_bf16(p), _bf16(v),
                             preferred_element_type=jnp.float32))     # (S_PAD, D)
    attn = jnp.concatenate(heads, axis=-1)                            # (S_PAD, E)
    x = x + jnp.dot(_bf16(attn), wo_ref[0],
                    preferred_element_type=jnp.float32) + bo_ref[0]   # residual (dropout = id)

    # ---- MLP: LN -> Linear -> GELU -> Linear -> +residual -----------------------------------
    h2 = _bf16(_ln(x, ln2g_ref[0], ln2b_ref[0]))
    m1 = jnp.dot(h2, w1_ref[0], preferred_element_type=jnp.float32) + b1_ref[0]
    m1 = _bf16(_gelu(m1))
    x = x + jnp.dot(m1, w2_ref[0], preferred_element_type=jnp.float32) + b2_ref[0]
    tok_ref[...] = x

    # ---- last-layer epilogue: final LN + classification head on the class token -------------
    @pl.when(l == pl.num_programs(1) - 1)
    def _():
        cls = x[0:1, :]                                               # (1, E) class token
        hc = _ln(cls, lng_ref[...], lnb_ref[...])
        logits = jnp.dot(_bf16(hc), hw_ref[...],
                         preferred_element_type=jnp.float32) + hb_ref[...]   # (1, CLS_PAD)
        o_ref[0] = logits.astype(o_ref.dtype)


# ----------------------------------- specs helpers -----------------------------------
def _stacked_spec(a):
    """Per-layer weight stacked along a leading LAYERS dim; streamed by the layer grid axis."""
    nd = a.ndim
    return pl.BlockSpec((1,) + a.shape[1:], lambda b, l, nd=nd: (l,) + (0,) * (nd - 1))


def _const_spec(shape):
    """Whole-array block with a constant index (stays resident / cached across grid steps)."""
    n = len(shape)
    return pl.BlockSpec(shape, lambda b, l, n=n: (0,) * n)


# ------------------------------------ model glue -------------------------------------
def vit_forward(x, params):
    B = x.shape[0]
    nh = nw = IMAGE // PATCH

    # Conv2d(kernel=stride=PATCH) expressed as a patch-flatten matmul (layout-only XLA glue).
    # Row 0 (cls slot) and the 3 sublane-pad rows are zero-padded so their matmul result is 0,
    # and the patch matrix is shipped to the kernel in bf16 (half the DMA bytes).
    p = x.reshape(B, CIN, nh, PATCH, nw, PATCH)
    p = p.transpose(0, 2, 4, 1, 3, 5).reshape(B, N_PATCH, CPP)
    p = jnp.pad(p, ((0, 0), (1, S_PAD - SEQ), (0, 0))).astype(jnp.bfloat16)   # (B, S_PAD, CPP)

    # Token prefix consumed by the l==0 prologue (4 KB): row0 = cls + pos0,
    # rows 1..N_PATCH = pos + conv-bias, pad rows = 0.
    row0 = params["cls_token"] + params["pos_embed"][:, :1]
    rows = params["pos_embed"][:, 1:] + params["patch_b"]
    tok0 = jnp.concatenate(
        [row0, rows, jnp.zeros((1, S_PAD - SEQ, HIDDEN), jnp.float32)], axis=1)  # (1, S_PAD, E)

    enc = params["enc"]
    layer_keys = ("ln1_g", "ln1_b", "wqkv", "bqkv", "wo", "bo",
                  "ln2_g", "ln2_b", "w1", "b1", "w2", "b2")
    layer_args = [enc[k] for k in layer_keys]

    in_specs = (
        [pl.BlockSpec((1, S_PAD, CPP), lambda b, l: (b, 0, 0)),   # this batch's patches
         _const_spec((CPP, HIDDEN)),                              # patch-embed weight
         _const_spec((1, S_PAD, HIDDEN))]                         # token prefix
        + [_stacked_spec(a) for a in layer_args]                  # per-layer weights (streamed)
        + [_const_spec((1, HIDDEN)), _const_spec((1, HIDDEN)),    # final LN
           _const_spec((HIDDEN, CLS_PAD)), _const_spec((1, CLS_PAD))]  # head
    )

    out = pl.pallas_call(
        _vit_kernel,
        out_shape=jax.ShapeDtypeStruct((B, 1, CLS_PAD), jnp.float32),
        grid=(B, LAYERS),                                         # batch parallel, layers serial
        in_specs=in_specs,
        out_specs=pl.BlockSpec((1, 1, CLS_PAD), lambda b, l: (b, 0, 0)),
        scratch_shapes=[pltpu.VMEM((S_PAD, HIDDEN), jnp.float32)],  # resident token buffer
        compiler_params=pltpu.CompilerParams(
            dimension_semantics=("parallel", "arbitrary")),
    )(p, params["patch_w"], tok0, *layer_args,
      params["ln_g"], params["ln_b"], params["head_w"], params["head_b"])

    return out.reshape(B, CLS_PAD)[:, :NUM_CLASSES]


# -------------------------------- deterministic params --------------------------------
def init_params(key):
    def nrm(k, shape, std=0.02, dtype=jnp.float32):
        return (std * jax.random.normal(k, shape, dtype=jnp.float32)).astype(dtype)

    keys = iter(jax.random.split(key, 10))
    L = LAYERS
    head_w = nrm(next(keys), (HIDDEN, NUM_CLASSES), dtype=jnp.bfloat16)
    head_w = jnp.pad(head_w, ((0, 0), (0, CLS_PAD - NUM_CLASSES)))      # lane-dense head
    return {
        # patch-embed conv weight pre-flattened & pre-transposed: (C*P*P, E), bf16
        "patch_w": nrm(next(keys), (CPP, HIDDEN), dtype=jnp.bfloat16),
        "patch_b": nrm(next(keys), (1, 1, HIDDEN)),
        "cls_token": jnp.zeros((1, 1, HIDDEN), jnp.float32),
        "pos_embed": nrm(next(keys), (1, SEQ, HIDDEN)),
        "ln_g": jnp.ones((1, HIDDEN), jnp.float32),
        "ln_b": jnp.zeros((1, HIDDEN), jnp.float32),
        "head_w": head_w,
        "head_b": jnp.zeros((1, CLS_PAD), jnp.float32),
        "enc": {
            "ln1_g": jnp.ones((L, 1, HIDDEN), jnp.float32),
            "ln1_b": jnp.zeros((L, 1, HIDDEN), jnp.float32),
            # fused QKV projection: (L, E, 3E) with [Q | K | V], head-major D blocks inside each
            "wqkv": nrm(next(keys), (L, HIDDEN, 3 * HIDDEN), dtype=jnp.bfloat16),
            "bqkv": jnp.zeros((L, 1, 3 * HIDDEN), jnp.float32),
            "wo": nrm(next(keys), (L, HIDDEN, HIDDEN), dtype=jnp.bfloat16),
            "bo": jnp.zeros((L, 1, HIDDEN), jnp.float32),
            "ln2_g": jnp.ones((L, 1, HIDDEN), jnp.float32),
            "ln2_b": jnp.zeros((L, 1, HIDDEN), jnp.float32),
            "w1": nrm(next(keys), (L, HIDDEN, MLP), dtype=jnp.bfloat16),
            "b1": jnp.zeros((L, 1, MLP), jnp.float32),
            "w2": nrm(next(keys), (L, MLP, HIDDEN), dtype=jnp.bfloat16),
            "b2": jnp.zeros((L, 1, HIDDEN), jnp.float32),
        },
    }


if __name__ == "__main__":
    key = jax.random.PRNGKey(0)
    k_x, k_p = jax.random.split(key)
    # layout: NCHW, like the PyTorch module's forward(x)
    x = jax.random.normal(k_x, (2, CIN, IMAGE, IMAGE), dtype=jnp.float32)
    params = init_params(k_p)

    fwd = jax.jit(vit_forward)
    logits = jax.block_until_ready(fwd(x, params))
    assert logits.shape == (2, NUM_CLASSES), logits.shape
    assert bool(jnp.all(jnp.isfinite(logits)))
    print("KERNEL_OK")
</pallas_src>

<mosaic_0001>
module attributes {stable_mosaic.version = 11 : i64} {
  func.func @_vit_kernel(%arg0: i32, %arg1: i32, %arg2: memref<1x8x768xbf16, #tpu.memory_space<vmem>>, %arg3: memref<768x128xbf16, #tpu.memory_space<vmem>>, %arg4: memref<1x8x128xf32, #tpu.memory_space<vmem>>, %arg5: memref<1x1x128xf32, #tpu.memory_space<vmem>>, %arg6: memref<1x1x128xf32, #tpu.memory_space<vmem>>, %arg7: memref<1x128x384xbf16, #tpu.memory_space<vmem>>, %arg8: memref<1x1x384xf32, #tpu.memory_space<vmem>>, %arg9: memref<1x128x128xbf16, #tpu.memory_space<vmem>>, %arg10: memref<1x1x128xf32, #tpu.memory_space<vmem>>, %arg11: memref<1x1x128xf32, #tpu.memory_space<vmem>>, %arg12: memref<1x1x128xf32, #tpu.memory_space<vmem>>, %arg13: memref<1x128x256xbf16, #tpu.memory_space<vmem>>, %arg14: memref<1x1x256xf32, #tpu.memory_space<vmem>>, %arg15: memref<1x256x128xbf16, #tpu.memory_space<vmem>>, %arg16: memref<1x1x128xf32, #tpu.memory_space<vmem>>, %arg17: memref<1x128xf32, #tpu.memory_space<vmem>>, %arg18: memref<1x128xf32, #tpu.memory_space<vmem>>, %arg19: memref<128x128xbf16, #tpu.memory_space<vmem>>, %arg20: memref<1x128xf32, #tpu.memory_space<vmem>>, %arg21: memref<1x1x128xf32, #tpu.memory_space<vmem>>, %arg22: memref<8x128xf32, #tpu.memory_space<vmem>>) attributes {dimension_semantics = [#tpu.dimension_semantics<parallel>, #tpu.dimension_semantics<arbitrary>], iteration_bounds = array<i64: 2, 2>, scalar_prefetch = 0 : i64, scratch_operands = 1 : i64, tpu.core_type = #tpu.core_type<tc>, window_params = [{transform_indices = @transform_0, window_bounds = array<i64: 1, 8, 768>}, {pipeline_mode = #tpu.pipeline_mode<synchronous>, transform_indices = @transform_1, window_bounds = array<i64: 768, 128>}, {pipeline_mode = #tpu.pipeline_mode<synchronous>, transform_indices = @transform_2, window_bounds = array<i64: 1, 8, 128>}, {transform_indices = @transform_3, window_bounds = array<i64: 1, 1, 128>}, {transform_indices = @transform_4, window_bounds = array<i64: 1, 1, 128>}, {transform_indices = @transform_5, window_bounds = array<i64: 1, 128, 384>}, {transform_indices = @transform_6, window_bounds = array<i64: 1, 1, 384>}, {transform_indices = @transform_7, window_bounds = array<i64: 1, 128, 128>}, {transform_indices = @transform_8, window_bounds = array<i64: 1, 1, 128>}, {transform_indices = @transform_9, window_bounds = array<i64: 1, 1, 128>}, {transform_indices = @transform_10, window_bounds = array<i64: 1, 1, 128>}, {transform_indices = @transform_11, window_bounds = array<i64: 1, 128, 256>}, {transform_indices = @transform_12, window_bounds = array<i64: 1, 1, 256>}, {transform_indices = @transform_13, window_bounds = array<i64: 1, 256, 128>}, {transform_indices = @transform_14, window_bounds = array<i64: 1, 1, 128>}, {pipeline_mode = #tpu.pipeline_mode<synchronous>, transform_indices = @transform_15, window_bounds = array<i64: 1, 128>}, {pipeline_mode = #tpu.pipeline_mode<synchronous>, transform_indices = @transform_16, window_bounds = array<i64: 1, 128>}, {pipeline_mode = #tpu.pipeline_mode<synchronous>, transform_indices = @transform_17, window_bounds = array<i64: 128, 128>}, {pipeline_mode = #tpu.pipeline_mode<synchronous>, transform_indices = @transform_18, window_bounds = array<i64: 1, 128>}, {transform_indices = @transform_19, window_bounds = array<i64: 1, 1, 128>}]} {
    %c0_i32 = arith.constant 0 : i32
    %0 = arith.cmpi eq, %arg1, %c0_i32 : i32
    %1 = arith.extui %0 : i1 to i32
    %c0_i32_0 = arith.constant 0 : i32
    %2 = arith.cmpi ne, %1, %c0_i32_0 : i32
    scf.if %2 {
      %c0_81 = arith.constant 0 : index
      %c0_82 = arith.constant 0 : index
      %c0_83 = arith.constant 0 : index
      %202 = vector.load %arg2[%c0_81, %c0_82, %c0_83] : memref<1x8x768xbf16, #tpu.memory_space<vmem>>, vector<1x8x768xbf16>
      %203 = vector.shape_cast %202 : vector<1x8x768xbf16> to vector<8x768xbf16>
      %c0_84 = arith.constant 0 : index
      %c0_85 = arith.constant 0 : index
      %204 = vector.load %arg3[%c0_84, %c0_85] : memref<768x128xbf16, #tpu.memory_space<vmem>>, vector<768x128xbf16>
      %cst_86 = arith.constant dense<0.000000e+00> : vector<8x128xf32>
      %205 = tpu.matmul %203, %204, %cst_86 {dimension_numbers = #tpu.dot_dimension_numbers<[1], [0], [0], [1], [0, 0, 1, 1], [], []>} : vector<8x768xbf16>, vector<768x128xbf16>, vector<8x128xf32> -> vector<8x128xf32>
      %c0_87 = arith.constant 0 : index
      %c0_88 = arith.constant 0 : index
      %c0_89 = arith.constant 0 : index
      %206 = vector.load %arg4[%c0_87, %c0_88, %c0_89] : memref<1x8x128xf32, #tpu.memory_space<vmem>>, vector<1x8x128xf32>
      %207 = vector.shape_cast %206 : vector<1x8x128xf32> to vector<8x128xf32>
      %208 = arith.addf %207, %205 : vector<8x128xf32>
      %c0_90 = arith.constant 0 : index
      %c0_91 = arith.constant 0 : index
      %209 = vector.load %arg22[%c0_90, %c0_91] : memref<8x128xf32, #tpu.memory_space<vmem>>, vector<8x128xf32>
      tpu.vector_store %arg22[%c0_90, %c0_91], %208 {strides = array<i32>} : memref<8x128xf32, #tpu.memory_space<vmem>>, vector<8x128xf32>,
    } else {
    }
    %c0 = arith.constant 0 : index
    %c0_1 = arith.constant 0 : index
    %3 = vector.load %arg22[%c0, %c0_1] : memref<8x128xf32, #tpu.memory_space<vmem>>, vector<8x128xf32>
    %4 = tpu.iota {dimensions = array<i32: 1>} : vector<8x8xi32>
    %c5_i32 = arith.constant 5 : i32
    %5 = vector.broadcast %c5_i32 : i32 to vector<8x8xi32>
    %6 = arith.cmpi slt, %4, %5 : vector<8x8xi32>
    %c0_2 = arith.constant 0 : index
    %c0_3 = arith.constant 0 : index
    %c0_4 = arith.constant 0 : index
    %7 = vector.load %arg5[%c0_2, %c0_3, %c0_4] : memref<1x1x128xf32, #tpu.memory_space<vmem>>, vector<1x1x128xf32>
    %8 = vector.shape_cast %7 : vector<1x1x128xf32> to vector<1x128xf32>
    %c0_5 = arith.constant 0 : index
    %c0_6 = arith.constant 0 : index
    %c0_7 = arith.constant 0 : index
    %9 = vector.load %arg6[%c0_5, %c0_6, %c0_7] : memref<1x1x128xf32, #tpu.memory_space<vmem>>, vector<1x1x128xf32>
    %10 = vector.shape_cast %9 : vector<1x1x128xf32> to vector<1x128xf32>
    %cst = arith.constant dense<0.000000e+00> : vector<8xf32>
    %11 = vector.multi_reduction <add>, %3, %cst [1] : vector<8x128xf32> to vector<8xf32>
    %12 = vector.shape_cast %11 : vector<8xf32> to vector<8x1xf32>
    %cst_8 = arith.constant 1.280000e+02 : f32
    %13 = vector.broadcast %cst_8 : f32 to vector<8x1xf32>
    %14 = arith.divf %12, %13 : vector<8x1xf32>
    %15 = vector.broadcast %14 : vector<8x1xf32> to vector<8x128xf32>
    %16 = arith.subf %3, %15 : vector<8x128xf32>
    %17 = vector.broadcast %14 : vector<8x1xf32> to vector<8x128xf32>
    %18 = arith.subf %3, %17 : vector<8x128xf32>
    %19 = arith.mulf %16, %18 : vector<8x128xf32>
    %cst_9 = arith.constant dense<0.000000e+00> : vector<8xf32>
    %20 = vector.multi_reduction <add>, %19, %cst_9 [1] : vector<8x128xf32> to vector<8xf32>
    %21 = vector.shape_cast %20 : vector<8xf32> to vector<8x1xf32>
    %cst_10 = arith.constant 1.280000e+02 : f32
    %22 = vector.broadcast %cst_10 : f32 to vector<8x1xf32>
    %23 = arith.divf %21, %22 : vector<8x1xf32>
    %24 = vector.broadcast %14 : vector<8x1xf32> to vector<8x128xf32>
    %25 = arith.subf %3, %24 : vector<8x128xf32>
    %cst_11 = arith.constant 9.99999997E-7 : f32
    %26 = vector.broadcast %cst_11 : f32 to vector<8x1xf32>
    %27 = arith.addf %23, %26 : vector<8x1xf32>
    %28 = math.rsqrt %27 : vector<8x1xf32>
    %29 = vector.broadcast %28 : vector<8x1xf32> to vector<8x128xf32>
    %30 = arith.mulf %25, %29 : vector<8x128xf32>
    %31 = vector.broadcast %8 : vector<1x128xf32> to vector<8x128xf32>
    %32 = arith.mulf %30, %31 : vector<8x128xf32>
    %33 = vector.broadcast %10 : vector<1x128xf32> to vector<8x128xf32>
    %34 = arith.addf %32, %33 : vector<8x128xf32>
    %35 = arith.truncf %34 : vector<8x128xf32> to vector<8x128xbf16>
    %c0_12 = arith.constant 0 : index
    %c0_13 = arith.constant 0 : index
    %c0_14 = arith.constant 0 : index
    %36 = vector.load %arg7[%c0_12, %c0_13, %c0_14] : memref<1x128x384xbf16, #tpu.memory_space<vmem>>, vector<1x128x384xbf16>
    %37 = vector.shape_cast %36 : vector<1x128x384xbf16> to vector<128x384xbf16>
    %cst_15 = arith.constant dense<0.000000e+00> : vector<8x384xf32>
    %38 = tpu.matmul %35, %37, %cst_15 {dimension_numbers = #tpu.dot_dimension_numbers<[1], [0], [0], [1], [0, 0, 1, 1], [], []>} : vector<8x128xbf16>, vector<128x384xbf16>, vector<8x384xf32> -> vector<8x384xf32>
    %c0_16 = arith.constant 0 : index
    %c0_17 = arith.constant 0 : index
    %c0_18 = arith.constant 0 : index
    %39 = vector.load %arg8[%c0_16, %c0_17, %c0_18] : memref<1x1x384xf32, #tpu.memory_space<vmem>>, vector<1x1x384xf32>
    %40 = vector.shape_cast %39 : vector<1x1x384xf32> to vector<1x384xf32>
    %41 = vector.broadcast %40 : vector<1x384xf32> to vector<8x384xf32>
    %42 = arith.addf %38, %41 : vector<8x384xf32>
    %43 = vector.extract_strided_slice %42 {offsets = [0, 0], sizes = [8, 32], strides = [1, 1]} : vector<8x384xf32> to vector<8x32xf32>
    %44 = vector.extract_strided_slice %42 {offsets = [0, 128], sizes = [8, 32], strides = [1, 1]} : vector<8x384xf32> to vector<8x32xf32>
    %45 = vector.extract_strided_slice %42 {offsets = [0, 256], sizes = [8, 32], strides = [1, 1]} : vector<8x384xf32> to vector<8x32xf32>
    %cst_19 = arith.constant 0.176776692 : f32
    %46 = vector.broadcast %cst_19 : f32 to vector<8x32xf32>
    %47 = arith.mulf %43, %46 : vector<8x32xf32>
    %48 = arith.truncf %47 : vector<8x32xf32> to vector<8x32xbf16>
    %49 = arith.truncf %44 : vector<8x32xf32> to vector<8x32xbf16>
    %cst_20 = arith.constant dense<0.000000e+00> : vector<8x8xf32>
    %50 = tpu.matmul %48, %49, %cst_20 {dimension_numbers = #tpu.dot_dimension_numbers<[1], [1], [0], [0], [0, 0, 1, 0], [], []>} : vector<8x32xbf16>, vector<8x32xbf16>, vector<8x8xf32> -> vector<8x8xf32>
    %cst_21 = arith.constant -1.000000e+30 : f32
    %51 = vector.broadcast %cst_21 : f32 to vector<8x8xf32>
    %52 = arith.select %6, %50, %51 : vector<8x8xi1>, vector<8x8xf32>
    %cst_22 = arith.constant dense<0xFF800000> : vector<8xf32>
    %53 = vector.multi_reduction <maximumf>, %52, %cst_22 [1] : vector<8x8xf32> to vector<8xf32>
    %54 = vector.shape_cast %53 : vector<8xf32> to vector<8x1xf32>
    %55 = vector.broadcast %54 : vector<8x1xf32> to vector<8x8xf32>
    %56 = arith.subf %52, %55 : vector<8x8xf32>
    %57 = math.exp %56 : vector<8x8xf32>
    %cst_23 = arith.constant dense<0.000000e+00> : vector<8xf32>
    %58 = vector.multi_reduction <add>, %57, %cst_23 [1] : vector<8x8xf32> to vector<8xf32>
    %59 = vector.shape_cast %58 : vector<8xf32> to vector<8x1xf32>
    %60 = tpu.reciprocal %59 {approx = true} : vector<8x1xf32> -> vector<8x1xf32>
    %61 = vector.broadcast %60 : vector<8x1xf32> to vector<8x8xf32>
    %62 = arith.mulf %57, %61 : vector<8x8xf32>
    %63 = arith.truncf %62 : vector<8x8xf32> to vector<8x8xbf16>
    %64 = arith.truncf %45 : vector<8x32xf32> to vector<8x32xbf16>
    %cst_24 = arith.constant dense<0.000000e+00> : vector<8x32xf32>
    %65 = tpu.matmul %63, %64, %cst_24 {dimension_numbers = #tpu.dot_dimension_numbers<[1], [0], [0], [1], [0, 0, 1, 1], [], []>} : vector<8x8xbf16>, vector<8x32xbf16>, vector<8x32xf32> -> vector<8x32xf32>
    %66 = vector.extract_strided_slice %42 {offsets = [0, 32], sizes = [8, 32], strides = [1, 1]} : vector<8x384xf32> to vector<8x32xf32>
    %67 = vector.extract_strided_slice %42 {offsets = [0, 160], sizes = [8, 32], strides = [1, 1]} : vector<8x384xf32> to vector<8x32xf32>
    %68 = vector.extract_strided_slice %42 {offsets = [0, 288], sizes = [8, 32], strides = [1, 1]} : vector<8x384xf32> to vector<8x32xf32>
    %cst_25 = arith.constant 0.176776692 : f32
    %69 = vector.broadcast %cst_25 : f32 to vector<8x32xf32>
    %70 = arith.mulf %66, %69 : vector<8x32xf32>
    %71 = arith.truncf %70 : vector<8x32xf32> to vector<8x32xbf16>
    %72 = arith.truncf %67 : vector<8x32xf32> to vector<8x32xbf16>
    %cst_26 = arith.constant dense<0.000000e+00> : vector<8x8xf32>
    %73 = tpu.matmul %71, %72, %cst_26 {dimension_numbers = #tpu.dot_dimension_numbers<[1], [1], [0], [0], [0, 0, 1, 0], [], []>} : vector<8x32xbf16>, vector<8x32xbf16>, vector<8x8xf32> -> vector<8x8xf32>
    %cst_27 = arith.constant -1.000000e+30 : f32
    %74 = vector.broadcast %cst_27 : f32 to vector<8x8xf32>
    %75 = arith.select %6, %73, %74 : vector<8x8xi1>, vector<8x8xf32>
    %cst_28 = arith.constant dense<0xFF800000> : vector<8xf32>
    %76 = vector.multi_reduction <maximumf>, %75, %cst_28 [1] : vector<8x8xf32> to vector<8xf32>
    %77 = vector.shape_cast %76 : vector<8xf32> to vector<8x1xf32>
    %78 = vector.broadcast %77 : vector<8x1xf32> to vector<8x8xf32>
    %79 = arith.subf %75, %78 : vector<8x8xf32>
    %80 = math.exp %79 : vector<8x8xf32>
    %cst_29 = arith.constant dense<0.000000e+00> : vector<8xf32>
    %81 = vector.multi_reduction <add>, %80, %cst_29 [1] : vector<8x8xf32> to vector<8xf32>
    %82 = vector.shape_cast %81 : vector<8xf32> to vector<8x1xf32>
    %83 = tpu.reciprocal %82 {approx = true} : vector<8x1xf32> -> vector<8x1xf32>
    %84 = vector.broadcast %83 : vector<8x1xf32> to vector<8x8xf32>
    %85 = arith.mulf %80, %84 : vector<8x8xf32>
    %86 = arith.truncf %85 : vector<8x8xf32> to vector<8x8xbf16>
    %87 = arith.truncf %68 : vector<8x32xf32> to vector<8x32xbf16>
    %cst_30 = arith.constant dense<0.000000e+00> : vector<8x32xf32>
    %88 = tpu.matmul %86, %87, %cst_30 {dimension_numbers = #tpu.dot_dimension_numbers<[1], [0], [0], [1], [0, 0, 1, 1], [], []>} : vector<8x8xbf16>, vector<8x32xbf16>, vector<8x32xf32> -> vector<8x32xf32>
    %89 = vector.extract_strided_slice %42 {offsets = [0, 64], sizes = [8, 32], strides = [1, 1]} : vector<8x384xf32> to vector<8x32xf32>
    %90 = vector.extract_strided_slice %42 {offsets = [0, 192], sizes = [8, 32], strides = [1, 1]} : vector<8x384xf32> to vector<8x32xf32>
    %91 = vector.extract_strided_slice %42 {offsets = [0, 320], sizes = [8, 32], strides = [1, 1]} : vector<8x384xf32> to vector<8x32xf32>
    %cst_31 = arith.constant 0.176776692 : f32
    %92 = vector.broadcast %cst_31 : f32 to vector<8x32xf32>
    %93 = arith.mulf %89, %92 : vector<8x32xf32>
    %94 = arith.truncf %93 : vector<8x32xf32> to vector<8x32xbf16>
    %95 = arith.truncf %90 : vector<8x32xf32> to vector<8x32xbf16>
    %cst_32 = arith.constant dense<0.000000e+00> : vector<8x8xf32>
    %96 = tpu.matmul %94, %95, %cst_32 {dimension_numbers = #tpu.dot_dimension_numbers<[1], [1], [0], [0], [0, 0, 1, 0], [], []>} : vector<8x32xbf16>, vector<8x32xbf16>, vector<8x8xf32> -> vector<8x8xf32>
    %cst_33 = arith.constant -1.000000e+30 : f32
    %97 = vector.broadcast %cst_33 : f32 to vector<8x8xf32>
    %98 = arith.select %6, %96, %97 : vector<8x8xi1>, vector<8x8xf32>
    %cst_34 = arith.constant dense<0xFF800000> : vector<8xf32>
    %99 = vector.multi_reduction <maximumf>, %98, %cst_34 [1] : vector<8x8xf32> to vector<8xf32>
    %100 = vector.shape_cast %99 : vector<8xf32> to vector<8x1xf32>
    %101 = vector.broadcast %100 : vector<8x1xf32> to vector<8x8xf32>
    %102 = arith.subf %98, %101 : vector<8x8xf32>
    %103 = math.exp %102 : vector<8x8xf32>
    %cst_35 = arith.constant dense<0.000000e+00> : vector<8xf32>
    %104 = vector.multi_reduction <add>, %103, %cst_35 [1] : vector<8x8xf32> to vector<8xf32>
    %105 = vector.shape_cast %104 : vector<8xf32> to vector<8x1xf32>
    %106 = tpu.reciprocal %105 {approx = true} : vector<8x1xf32> -> vector<8x1xf32>
    %107 = vector.broadcast %106 : vector<8x1xf32> to vector<8x8xf32>
    %108 = arith.mulf %103, %107 : vector<8x8xf32>
    %109 = arith.truncf %108 : vector<8x8xf32> to vector<8x8xbf16>
    %110 = arith.truncf %91 : vector<8x32xf32> to vector<8x32xbf16>
    %cst_36 = arith.constant dense<0.000000e+00> : vector<8x32xf32>
    %111 = tpu.matmul %109, %110, %cst_36 {dimension_numbers = #tpu.dot_dimension_numbers<[1], [0], [0], [1], [0, 0, 1, 1], [], []>} : vector<8x8xbf16>, vector<8x32xbf16>, vector<8x32xf32> -> vector<8x32xf32>
    %112 = vector.extract_strided_slice %42 {offsets = [0, 96], sizes = [8, 32], strides = [1, 1]} : vector<8x384xf32> to vector<8x32xf32>
    %113 = vector.extract_strided_slice %42 {offsets = [0, 224], sizes = [8, 32], strides = [1, 1]} : vector<8x384xf32> to vector<8x32xf32>
    %114 = vector.extract_strided_slice %42 {offsets = [0, 352], sizes = [8, 32], strides = [1, 1]} : vector<8x384xf32> to vector<8x32xf32>
    %cst_37 = arith.constant 0.176776692 : f32
    %115 = vector.broadcast %cst_37 : f32 to vector<8x32xf32>
    %116 = arith.mulf %112, %115 : vector<8x32xf32>
    %117 = arith.truncf %116 : vector<8x32xf32> to vector<8x32xbf16>
    %118 = arith.truncf %113 : vector<8x32xf32> to vector<8x32xbf16>
    %cst_38 = arith.constant dense<0.000000e+00> : vector<8x8xf32>
    %119 = tpu.matmul %117, %118, %cst_38 {dimension_numbers = #tpu.dot_dimension_numbers<[1], [1], [0], [0], [0, 0, 1, 0], [], []>} : vector<8x32xbf16>, vector<8x32xbf16>, vector<8x8xf32> -> vector<8x8xf32>
    %cst_39 = arith.constant -1.000000e+30 : f32
    %120 = vector.broadcast %cst_39 : f32 to vector<8x8xf32>
    %121 = arith.select %6, %119, %120 : vector<8x8xi1>, vector<8x8xf32>
    %cst_40 = arith.constant dense<0xFF800000> : vector<8xf32>
    %122 = vector.multi_reduction <maximumf>, %121, %cst_40 [1] : vector<8x8xf32> to vector<8xf32>
    %123 = vector.shape_cast %122 : vector<8xf32> to vector<8x1xf32>
    %124 = vector.broadcast %123 : vector<8x1xf32> to vector<8x8xf32>
    %125 = arith.subf %121, %124 : vector<8x8xf32>
    %126 = math.exp %125 : vector<8x8xf32>
    %cst_41 = arith.constant dense<0.000000e+00> : vector<8xf32>
    %127 = vector.multi_reduction <add>, %126, %cst_41 [1] : vector<8x8xf32> to vector<8xf32>
    %128 = vector.shape_cast %127 : vector<8xf32> to vector<8x1xf32>
    %129 = tpu.reciprocal %128 {approx = true} : vector<8x1xf32> -> vector<8x1xf32>
    %130 = vector.broadcast %129 : vector<8x1xf32> to vector<8x8xf32>
    %131 = arith.mulf %126, %130 : vector<8x8xf32>
    %132 = arith.truncf %131 : vector<8x8xf32> to vector<8x8xbf16>
    %133 = arith.truncf %114 : vector<8x32xf32> to vector<8x32xbf16>
    %cst_42 = arith.constant dense<0.000000e+00> : vector<8x32xf32>
    %134 = tpu.matmul %132, %133, %cst_42 {dimension_numbers = #tpu.dot_dimension_numbers<[1], [0], [0], [1], [0, 0, 1, 1], [], []>} : vector<8x8xbf16>, vector<8x32xbf16>, vector<8x32xf32> -> vector<8x32xf32>
    %135 = tpu.concatenate %65, %88, %111, %134 in 1 : vector<8x32xf32>, vector<8x32xf32>, vector<8x32xf32>, vector<8x32xf32> -> vector<8x128xf32>
    %136 = arith.truncf %135 : vector<8x128xf32> to vector<8x128xbf16>
    %c0_43 = arith.constant 0 : index
    %c0_44 = arith.constant 0 : index
    %c0_45 = arith.constant 0 : index
    %137 = vector.load %arg9[%c0_43, %c0_44, %c0_45] : memref<1x128x128xbf16, #tpu.memory_space<vmem>>, vector<1x128x128xbf16>
    %138 = vector.shape_cast %137 : vector<1x128x128xbf16> to vector<128x128xbf16>
    %cst_46 = arith.constant dense<0.000000e+00> : vector<8x128xf32>
    %139 = tpu.matmul %136, %138, %cst_46 {dimension_numbers = #tpu.dot_dimension_numbers<[1], [0], [0], [1], [0, 0, 1, 1], [], []>} : vector<8x128xbf16>, vector<128x128xbf16>, vector<8x128xf32> -> vector<8x128xf32>
    %140 = arith.addf %3, %139 : vector<8x128xf32>
    %c0_47 = arith.constant 0 : index
    %c0_48 = arith.constant 0 : index
    %c0_49 = arith.constant 0 : index
    %141 = vector.load %arg10[%c0_47, %c0_48, %c0_49] : memref<1x1x128xf32, #tpu.memory_space<vmem>>, vector<1x1x128xf32>
    %142 = vector.shape_cast %141 : vector<1x1x128xf32> to vector<1x128xf32>
    %143 = vector.broadcast %142 : vector<1x128xf32> to vector<8x128xf32>
    %144 = arith.addf %140, %143 : vector<8x128xf32>
    %c0_50 = arith.constant 0 : index
    %c0_51 = arith.constant 0 : index
    %c0_52 = arith.constant 0 : index
    %145 = vector.load %arg11[%c0_50, %c0_51, %c0_52] : memref<1x1x128xf32, #tpu.memory_space<vmem>>, vector<1x1x128xf32>
    %146 = vector.shape_cast %145 : vector<1x1x128xf32> to vector<1x128xf32>
    %c0_53 = arith.constant 0 : index
    %c0_54 = arith.constant 0 : index
    %c0_55 = arith.constant 0 : index
    %147 = vector.load %arg12[%c0_53, %c0_54, %c0_55] : memref<1x1x128xf32, #tpu.memory_space<vmem>>, vector<1x1x128xf32>
    %148 = vector.shape_cast %147 : vector<1x1x128xf32> to vector<1x128xf32>
    %cst_56 = arith.constant dense<0.000000e+00> : vector<8xf32>
    %149 = vector.multi_reduction <add>, %144, %cst_56 [1] : vector<8x128xf32> to vector<8xf32>
    %150 = vector.shape_cast %149 : vector<8xf32> to vector<8x1xf32>
    %cst_57 = arith.constant 1.280000e+02 : f32
    %151 = vector.broadcast %cst_57 : f32 to vector<8x1xf32>
    %152 = arith.divf %150, %151 : vector<8x1xf32>
    %153 = vector.broadcast %152 : vector<8x1xf32> to vector<8x128xf32>
    %154 = arith.subf %144, %153 : vector<8x128xf32>
    %155 = vector.broadcast %152 : vector<8x1xf32> to vector<8x128xf32>
    %156 = arith.subf %144, %155 : vector<8x128xf32>
    %157 = arith.mulf %154, %156 : vector<8x128xf32>
    %cst_58 = arith.constant dense<0.000000e+00> : vector<8xf32>
    %158 = vector.multi_reduction <add>, %157, %cst_58 [1] : vector<8x128xf32> to vector<8xf32>
    %159 = vector.shape_cast %158 : vector<8xf32> to vector<8x1xf32>
    %cst_59 = arith.constant 1.280000e+02 : f32
    %160 = vector.broadcast %cst_59 : f32 to vector<8x1xf32>
    %161 = arith.divf %159, %160 : vector<8x1xf32>
    %162 = vector.broadcast %152 : vector<8x1xf32> to vector<8x128xf32>
    %163 = arith.subf %144, %162 : vector<8x128xf32>
    %cst_60 = arith.constant 9.99999997E-7 : f32
    %164 = vector.broadcast %cst_60 : f32 to vector<8x1xf32>
    %165 = arith.addf %161, %164 : vector<8x1xf32>
    %166 = math.rsqrt %165 : vector<8x1xf32>
    %167 = vector.broadcast %166 : vector<8x1xf32> to vector<8x128xf32>
    %168 = arith.mulf %163, %167 : vector<8x128xf32>
    %169 = vector.broadcast %146 : vector<1x128xf32> to vector<8x128xf32>
    %170 = arith.mulf %168, %169 : vector<8x128xf32>
    %171 = vector.broadcast %148 : vector<1x128xf32> to vector<8x128xf32>
    %172 = arith.addf %170, %171 : vector<8x128xf32>
    %173 = arith.truncf %172 : vector<8x128xf32> to vector<8x128xbf16>
    %c0_61 = arith.constant 0 : index
    %c0_62 = arith.constant 0 : index
    %c0_63 = arith.constant 0 : index
    %174 = vector.load %arg13[%c0_61, %c0_62, %c0_63] : memref<1x128x256xbf16, #tpu.memory_space<vmem>>, vector<1x128x256xbf16>
    %175 = vector.shape_cast %174 : vector<1x128x256xbf16> to vector<128x256xbf16>
    %cst_64 = arith.constant dense<0.000000e+00> : vector<8x256xf32>
    %176 = tpu.matmul %173, %175, %cst_64 {dimension_numbers = #tpu.dot_dimension_numbers<[1], [0], [0], [1], [0, 0, 1, 1], [], []>} : vector<8x128xbf16>, vector<128x256xbf16>, vector<8x256xf32> -> vector<8x256xf32>
    %c0_65 = arith.constant 0 : index
    %c0_66 = arith.constant 0 : index
    %c0_67 = arith.constant 0 : index
    %177 = vector.load %arg14[%c0_65, %c0_66, %c0_67] : memref<1x1x256xf32, #tpu.memory_space<vmem>>, vector<1x1x256xf32>
    %178 = vector.shape_cast %177 : vector<1x1x256xf32> to vector<1x256xf32>
    %179 = vector.broadcast %178 : vector<1x256xf32> to vector<8x256xf32>
    %180 = arith.addf %176, %179 : vector<8x256xf32>
    %cst_68 = arith.constant 5.000000e-01 : f32
    %181 = vector.broadcast %cst_68 : f32 to vector<8x256xf32>
    %182 = arith.mulf %181, %180 : vector<8x256xf32>
    %cst_69 = arith.constant 0.707106769 : f32
    %183 = vector.broadcast %cst_69 : f32 to vector<8x256xf32>
    %184 = arith.mulf %180, %183 : vector<8x256xf32>
    %185 = math.erf %184 : vector<8x256xf32>
    %cst_70 = arith.constant 1.000000e+00 : f32
    %186 = vector.broadcast %cst_70 : f32 to vector<8x256xf32>
    %187 = arith.addf %186, %185 : vector<8x256xf32>
    %188 = arith.mulf %182, %187 : vector<8x256xf32>
    %189 = arith.truncf %188 : vector<8x256xf32> to vector<8x256xbf16>
    %c0_71 = arith.constant 0 : index
    %c0_72 = arith.constant 0 : index
    %c0_73 = arith.constant 0 : index
    %190 = vector.load %arg15[%c0_71, %c0_72, %c0_73] : memref<1x256x128xbf16, #tpu.memory_space<vmem>>, vector<1x256x128xbf16>
    %191 = vector.shape_cast %190 : vector<1x256x128xbf16> to vector<256x128xbf16>
    %cst_74 = arith.constant dense<0.000000e+00> : vector<8x128xf32>
    %192 = tpu.matmul %189, %191, %cst_74 {dimension_numbers = #tpu.dot_dimension_numbers<[1], [0], [0], [1], [0, 0, 1, 1], [], []>} : vector<8x256xbf16>, vector<256x128xbf16>, vector<8x128xf32> -> vector<8x128xf32>
    %193 = arith.addf %144, %192 : vector<8x128xf32>
    %c0_75 = arith.constant 0 : index
    %c0_76 = arith.constant 0 : index
    %c0_77 = arith.constant 0 : index
    %194 = vector.load %arg16[%c0_75, %c0_76, %c0_77] : memref<1x1x128xf32, #tpu.memory_space<vmem>>, vector<1x1x128xf32>
    %195 = vector.shape_cast %194 : vector<1x1x128xf32> to vector<1x128xf32>
    %196 = vector.broadcast %195 : vector<1x128xf32> to vector<8x128xf32>
    %197 = arith.addf %193, %196 : vector<8x128xf32>
    %c0_78 = arith.constant 0 : index
    %c0_79 = arith.constant 0 : index
    %198 = vector.load %arg22[%c0_78, %c0_79] : memref<8x128xf32, #tpu.memory_space<vmem>>, vector<8x128xf32>
    tpu.vector_store %arg22[%c0_78, %c0_79], %197 {strides = array<i32>} : memref<8x128xf32, #tpu.memory_space<vmem>>, vector<8x128xf32>,
    %c1_i32 = arith.constant 1 : i32
    %199 = arith.cmpi eq, %arg1, %c1_i32 : i32
    %200 = arith.extui %199 : i1 to i32
    %c0_i32_80 = arith.constant 0 : i32
    %201 = arith.cmpi ne, %200, %c0_i32_80 : i32
    scf.if %201 {
      %202 = vector.extract_strided_slice %197 {offsets = [0, 0], sizes = [1, 128], strides = [1, 1]} : vector<8x128xf32> to vector<1x128xf32>
      %c0_81 = arith.constant 0 : index
      %c0_82 = arith.constant 0 : index
      %203 = vector.load %arg17[%c0_81, %c0_82] : memref<1x128xf32, #tpu.memory_space<vmem>>, vector<1x128xf32>
      %c0_83 = arith.constant 0 : index
      %c0_84 = arith.constant 0 : index
      %204 = vector.load %arg18[%c0_83, %c0_84] : memref<1x128xf32, #tpu.memory_space<vmem>>, vector<1x128xf32>
      %cst_85 = arith.constant dense<0.000000e+00> : vector<1xf32>
      %205 = vector.multi_reduction <add>, %202, %cst_85 [1] : vector<1x128xf32> to vector<1xf32>
      %206 = vector.shape_cast %205 : vector<1xf32> to vector<1x1xf32>
      %cst_86 = arith.constant 1.280000e+02 : f32
      %207 = vector.broadcast %cst_86 : f32 to vector<1x1xf32>
      %208 = arith.divf %206, %207 : vector<1x1xf32>
      %209 = vector.broadcast %208 : vector<1x1xf32> to vector<1x128xf32>
      %210 = arith.subf %202, %209 : vector<1x128xf32>
      %211 = vector.broadcast %208 : vector<1x1xf32> to vector<1x128xf32>
      %212 = arith.subf %202, %211 : vector<1x128xf32>
      %213 = arith.mulf %210, %212 : vector<1x128xf32>
      %cst_87 = arith.constant dense<0.000000e+00> : vector<1xf32>
      %214 = vector.multi_reduction <add>, %213, %cst_87 [1] : vector<1x128xf32> to vector<1xf32>
      %215 = vector.shape_cast %214 : vector<1xf32> to vector<1x1xf32>
      %cst_88 = arith.constant 1.280000e+02 : f32
      %216 = vector.broadcast %cst_88 : f32 to vector<1x1xf32>
      %217 = arith.divf %215, %216 : vector<1x1xf32>
      %218 = vector.broadcast %208 : vector<1x1xf32> to vector<1x128xf32>
      %219 = arith.subf %202, %218 : vector<1x128xf32>
      %cst_89 = arith.constant 9.99999997E-7 : f32
      %220 = vector.broadcast %cst_89 : f32 to vector<1x1xf32>
      %221 = arith.addf %217, %220 : vector<1x1xf32>
      %222 = math.rsqrt %221 : vector<1x1xf32>
      %223 = vector.broadcast %222 : vector<1x1xf32> to vector<1x128xf32>
      %224 = arith.mulf %219, %223 : vector<1x128xf32>
      %225 = arith.mulf %224, %203 : vector<1x128xf32>
      %226 = arith.addf %225, %204 : vector<1x128xf32>
      %227 = arith.truncf %226 : vector<1x128xf32> to vector<1x128xbf16>
      %c0_90 = arith.constant 0 : index
      %c0_91 = arith.constant 0 : index
      %228 = vector.load %arg19[%c0_90, %c0_91] : memref<128x128xbf16, #tpu.memory_space<vmem>>, vector<128x128xbf16>
      %cst_92 = arith.constant dense<0.000000e+00> : vector<1x128xf32>
      %229 = tpu.matmul %227, %228, %cst_92 {dimension_numbers = #tpu.dot_dimension_numbers<[1], [0], [0], [1], [0, 0, 1, 1], [], []>} : vector<1x128xbf16>, vector<128x128xbf16>, vector<1x128xf32> -> vector<1x128xf32>
      %c0_93 = arith.constant 0 : index
      %c0_94 = arith.constant 0 : index
      %230 = vector.load %arg20[%c0_93, %c0_94] : memref<1x128xf32, #tpu.memory_space<vmem>>, vector<1x128xf32>
      %231 = arith.addf %229, %230 : vector<1x128xf32>
      %c0_95 = arith.constant 0 : index
      %c0_96 = arith.constant 0 : index
      %c0_97 = arith.constant 0 : index
      %232 = vector.load %arg21[%c0_95, %c0_96, %c0_97] : memref<1x1x128xf32, #tpu.memory_space<vmem>>, vector<1x1x128xf32>
      %233 = vector.shape_cast %232 : vector<1x1x128xf32> to vector<1x128xf32>
      %234 = vector.shape_cast %231 : vector<1x128xf32> to vector<1x1x128xf32>
      tpu.vector_store %arg21[%c0_95, %c0_96, %c0_97], %234 {strides = array<i32>} : memref<1x1x128xf32, #tpu.memory_space<vmem>>, vector<1x1x128xf32>,
    } else {
    }
    return
  }
  func.func @transform_0(%arg0: i32, %arg1: i32) -> (i32, i32, i32) {
    %c0_i32 = arith.constant 0 : i32
    %c0_i32_0 = arith.constant 0 : i32
    %c0_i32_1 = arith.constant 0 : i32
    return %arg0, %c0_i32, %c0_i32_0 : i32, i32, i32
  }
  func.func @transform_1(%arg0: i32, %arg1: i32) -> (i32, i32) {
    %c0_i32 = arith.constant 0 : i32
    %c0_i32_0 = arith.constant 0 : i32
    %c0_i32_1 = arith.constant 0 : i32
    return %c0_i32, %c0_i32_0 : i32, i32
  }
  func.func @transform_2(%arg0: i32, %arg1: i32) -> (i32, i32, i32) {
    %c0_i32 = arith.constant 0 : i32
    %c0_i32_0 = arith.constant 0 : i32
    %c0_i32_1 = arith.constant 0 : i32
    %c0_i32_2 = arith.constant 0 : i32
    return %c0_i32, %c0_i32_0, %c0_i32_1 : i32, i32, i32
  }
  func.func @transform_3(%arg0: i32, %arg1: i32) -> (i32, i32, i32) {
    %c0_i32 = arith.constant 0 : i32
    %c0_i32_0 = arith.constant 0 : i32
    %c0_i32_1 = arith.constant 0 : i32
    return %arg1, %c0_i32, %c0_i32_0 : i32, i32, i32
  }
  func.func @transform_4(%arg0: i32, %arg1: i32) -> (i32, i32, i32) {
    %c0_i32 = arith.constant 0 : i32
    %c0_i32_0 = arith.constant 0 : i32
    %c0_i32_1 = arith.constant 0 : i32
    return %arg1, %c0_i32, %c0_i32_0 : i32, i32, i32
  }
  func.func @transform_5(%arg0: i32, %arg1: i32) -> (i32, i32, i32) {
    %c0_i32 = arith.constant 0 : i32
    %c0_i32_0 = arith.constant 0 : i32
    %c0_i32_1 = arith.constant 0 : i32
    return %arg1, %c0_i32, %c0_i32_0 : i32, i32, i32
  }
  func.func @transform_6(%arg0: i32, %arg1: i32) -> (i32, i32, i32) {
    %c0_i32 = arith.constant 0 : i32
    %c0_i32_0 = arith.constant 0 : i32
    %c0_i32_1 = arith.constant 0 : i32
    return %arg1, %c0_i32, %c0_i32_0 : i32, i32, i32
  }
  func.func @transform_7(%arg0: i32, %arg1: i32) -> (i32, i32, i32) {
    %c0_i32 = arith.constant 0 : i32
    %c0_i32_0 = arith.constant 0 : i32
    %c0_i32_1 = arith.constant 0 : i32
    return %arg1, %c0_i32, %c0_i32_0 : i32, i32, i32
  }
  func.func @transform_8(%arg0: i32, %arg1: i32) -> (i32, i32, i32) {
    %c0_i32 = arith.constant 0 : i32
    %c0_i32_0 = arith.constant 0 : i32
    %c0_i32_1 = arith.constant 0 : i32
    return %arg1, %c0_i32, %c0_i32_0 : i32, i32, i32
  }
  func.func @transform_9(%arg0: i32, %arg1: i32) -> (i32, i32, i32) {
    %c0_i32 = arith.constant 0 : i32
    %c0_i32_0 = arith.constant 0 : i32
    %c0_i32_1 = arith.constant 0 : i32
    return %arg1, %c0_i32, %c0_i32_0 : i32, i32, i32
  }
  func.func @transform_10(%arg0: i32, %arg1: i32) -> (i32, i32, i32) {
    %c0_i32 = arith.constant 0 : i32
    %c0_i32_0 = arith.constant 0 : i32
    %c0_i32_1 = arith.constant 0 : i32
    return %arg1, %c0_i32, %c0_i32_0 : i32, i32, i32
  }
  func.func @transform_11(%arg0: i32, %arg1: i32) -> (i32, i32, i32) {
    %c0_i32 = arith.constant 0 : i32
    %c0_i32_0 = arith.constant 0 : i32
    %c0_i32_1 = arith.constant 0 : i32
    return %arg1, %c0_i32, %c0_i32_0 : i32, i32, i32
  }
  func.func @transform_12(%arg0: i32, %arg1: i32) -> (i32, i32, i32) {
    %c0_i32 = arith.constant 0 : i32
    %c0_i32_0 = arith.constant 0 : i32
    %c0_i32_1 = arith.constant 0 : i32
    return %arg1, %c0_i32, %c0_i32_0 : i32, i32, i32
  }
  func.func @transform_13(%arg0: i32, %arg1: i32) -> (i32, i32, i32) {
    %c0_i32 = arith.constant 0 : i32
    %c0_i32_0 = arith.constant 0 : i32
    %c0_i32_1 = arith.constant 0 : i32
    return %arg1, %c0_i32, %c0_i32_0 : i32, i32, i32
  }
  func.func @transform_14(%arg0: i32, %arg1: i32) -> (i32, i32, i32) {
    %c0_i32 = arith.constant 0 : i32
    %c0_i32_0 = arith.constant 0 : i32
    %c0_i32_1 = arith.constant 0 : i32
    return %arg1, %c0_i32, %c0_i32_0 : i32, i32, i32
  }
  func.func @transform_15(%arg0: i32, %arg1: i32) -> (i32, i32) {
    %c0_i32 = arith.constant 0 : i32
    %c0_i32_0 = arith.constant 0 : i32
    %c0_i32_1 = arith.constant 0 : i32
    return %c0_i32, %c0_i32_0 : i32, i32
  }
  func.func @transform_16(%arg0: i32, %arg1: i32) -> (i32, i32) {
    %c0_i32 = arith.constant 0 : i32
    %c0_i32_0 = arith.constant 0 : i32
    %c0_i32_1 = arith.constant 0 : i32
    return %c0_i32, %c0_i32_0 : i32, i32
  }
  func.func @transform_17(%arg0: i32, %arg1: i32) -> (i32, i32) {
    %c0_i32 = arith.constant 0 : i32
    %c0_i32_0 = arith.constant 0 : i32
    %c0_i32_1 = arith.constant 0 : i32
    return %c0_i32, %c0_i32_0 : i32, i32
  }
  func.func @transform_18(%arg0: i32, %arg1: i32) -> (i32, i32) {
    %c0_i32 = arith.constant 0 : i32
    %c0_i32_0 = arith.constant 0 : i32
    %c0_i32_1 = arith.constant 0 : i32
    return %c0_i32, %c0_i32_0 : i32, i32
  }
  func.func @transform_19(%arg0: i32, %arg1: i32) -> (i32, i32, i32) {
    %c0_i32 = arith.constant 0 : i32
    %c0_i32_0 = arith.constant 0 : i32
    %c0_i32_1 = arith.constant 0 : i32
    return %arg0, %c0_i32, %c0_i32_0 : i32, i32, i32
  }
}

</mosaic_0001>

<llo_original>
// kernel: vit_forward.1
$region0: #{vit_forward.1}
  #allocation0 [shape = 'u32[]', space=smem, size = 0x4, offset = 0x4, fixed_abs, tag = 'smem constant byte address 0x4 - core index']
  #allocation1 [shape = 'u32[144,128]{1,0:T(1,128)}', space=vmem, size = 0x12000, scoped, tag = 'internal scratch']
  #allocation2 [shape = 'f32[8,128]{1,0:T(8,128)}', space=vmem, size = 0x1000, scoped, tag = 'scratch operand']
  %s0 = inlined_call_operand.vmem [shape: bf16[2,8,768], index: 0, kind: input, shape index: {}]
  %s1 = inlined_call_operand.vmem [shape: bf16[768,128], index: 1, kind: input, shape index: {}]
  %s2 = inlined_call_operand.vmem [shape: f32[1,8,128], index: 2, kind: input, shape index: {}]
  %s3 = inlined_call_operand.vmem [shape: f32[2,1,128], index: 3, kind: input, shape index: {}]
  %s4 = inlined_call_operand.vmem [shape: f32[2,1,128], index: 4, kind: input, shape index: {}]
  %s5 = inlined_call_operand.vmem [shape: bf16[2,128,384], index: 5, kind: input, shape index: {}]
  %s6 = inlined_call_operand.vmem [shape: f32[2,1,384], index: 6, kind: input, shape index: {}]
  %s7 = inlined_call_operand.hbm [shape: bf16[2,128,128], index: 7, kind: input, shape index: {}]
  %s8 = inlined_call_operand.vmem [shape: f32[2,1,128], index: 8, kind: input, shape index: {}]
  %s9 = inlined_call_operand.hbm [shape: f32[2,1,128], index: 9, kind: input, shape index: {}]
  %s10 = inlined_call_operand.hbm [shape: f32[2,1,128], index: 10, kind: input, shape index: {}]
  %s11 = inlined_call_operand.vmem [shape: bf16[2,128,256], index: 11, kind: input, shape index: {}]
  %s12 = inlined_call_operand.vmem [shape: f32[2,1,256], index: 12, kind: input, shape index: {}]
  %s13 = inlined_call_operand.vmem [shape: bf16[2,256,128], index: 13, kind: input, shape index: {}]
  %s14 = inlined_call_operand.hbm [shape: f32[2,1,128], index: 14, kind: input, shape index: {}]
  %s15 = inlined_call_operand.hbm [shape: f32[1,128], index: 15, kind: input, shape index: {}]
  %s16 = inlined_call_operand.hbm [shape: f32[1,128], index: 16, kind: input, shape index: {}]
  %s17 = inlined_call_operand.hbm [shape: bf16[128,128], index: 17, kind: input, shape index: {}]
  %s18 = inlined_call_operand.hbm [shape: f32[1,128], index: 18, kind: input, shape index: {}]
  %s19 = inlined_call_operand.hbm [shape: f32[2,1,128], index: 19, kind: output, shape index: {}]
  %s20 = sld [smem:[#allocation0]]
  $region149: #{vit_forward.1} parent=0
    _
  %s22 = ssub.s32 1, %s20
  %s23 = scalar_select 0, %s22, %s20
  $region1: #{vit_forward.1} parent=0
    #allocation3 [shape = 'u8[65536]{0}', space=vmem, size = 0x10000, scoped, tag = 'input window, operand 7']
    #allocation4 [shape = 's32[2]{0}', space=sflag, size = 0x8, scoped, tag = 'scoped memory for vit_forward.1']
    #allocation5 [shape = 's32[2]{0}', space=sflag, size = 0x8, scoped, tag = 'scoped memory for vit_forward.1']
    #allocation6 [shape = 'u8[1024]{0}', space=vmem, size = 0x400, scoped, tag = 'input window, operand 9']
    #allocation7 [shape = 's32[2]{0}', space=sflag, size = 0x8, scoped, tag = 'scoped memory for vit_forward.1']
    #allocation8 [shape = 'u8[1024]{0}', space=vmem, size = 0x400, scoped, tag = 'input window, operand 10']
    #allocation9 [shape = 'u8[1024]{0}', space=vmem, size = 0x400, scoped, tag = 'input window, operand 14']
    #allocation10 [shape = 's32[2]{0}', space=sflag, size = 0x8, scoped, tag = 'scoped memory for vit_forward.1']
    #allocation11 [shape = 'u8[512]{0}', space=vmem, size = 0x400, scoped, tag = 'input window, operand 15, single buffered']
    #allocation12 [shape = 'u8[512]{0}', space=vmem, size = 0x400, scoped, tag = 'input window, operand 16, single buffered']
    #allocation13 [shape = 's32[1]{0}', space=sflag, size = 0x4, scoped, tag = 'scoped memory for vit_forward.1']
    #allocation14 [shape = 'u8[32768]{0}', space=vmem, size = 0x8000, scoped, tag = 'input window, operand 17, single buffered']
    #allocation15 [shape = 'u8[512]{0}', space=vmem, size = 0x400, scoped, tag = 'input window, operand 18, single buffered']
    #allocation16 [shape = 's32[1]{0}', space=sflag, size = 0x4, scoped, tag = 'scoped memory for vit_forward.1']
    #allocation17 [shape = 'u8[1024]{0}', space=vmem, size = 0x400, scoped, tag = 'output window, operand 0']
    %24 = vsyncpa [#allocation4], 0
    %s25 = scalar_lea.sflag [#allocation4], 1
    %26 = vsyncpa %s25, 0
    %27 = vsyncpa [#allocation7], 0
    %s28 = scalar_lea.sflag [#allocation7], 1
    %29 = vsyncpa %s28, 0
    %30 = vsyncpa [#allocation10], 0
    %s31 = scalar_lea.sflag [#allocation10], 1
    %32 = vsyncpa %s31, 0
    %33 = vsyncpa [#allocation13], 0
    %34 = vsyncpa [#allocation16], 0
    %35 = vsyncpa [#allocation5], 0
    %s36 = scalar_lea.sflag [#allocation5], 1
    %37 = vsyncpa %s36, 0
    loop: start=0, step=1, limit=6
    $region2: #{vit_forward.1} parent=1 // loop_pre_header
      _
    $region3: #{vit_forward.1} parent=1 // loop_header
      %s39 = sphi 0, %s43
      %p40 = scmp.ge.s32.totalorder %s39, 6
      %s46 = sphi 0, %s58
      %s47 = sphi 0, %s54
      %s48 = sphi 0, %s46
      %s49 = sphi 0, %s47
      %s50 = sphi 0, %s48
      %s51 = sphi 0, %s49
      %s61 = sphi 0, %s63
      %s64 = sphi 0, %s61
      %s65 = sphi 0, %s64
      %s81 = sphi 0, %s65
      %s85 = sphi 0, %s85
      %s87 = sphi 0, %s85
      %s88 = sphi 0, %s87
      %s102 = sphi 0, %s88
      %s106 = sphi 0, %s106
      %s108 = sphi 0, %s106
      %s109 = sphi 0, %s108
      %s123 = sphi 0, %s109
      %s129 = sphi 0, %s131
      %s132 = sphi 0, %s129
      %s133 = sphi 0, %s132
      %s149 = sphi 0, %s133
      %s155 = sphi 0, %s157
      %s158 = sphi 0, %s155
      %s159 = sphi 0, %s158
      %s175 = sphi 0, %s159
      %s181 = sphi 0, %s183
      %s184 = sphi 0, %s181
      %s185 = sphi 0, %s184
      %s201 = sphi 0, %s185
      %s207 = sphi 0, %s209
      %s210 = sphi 0, %s207
      %s211 = sphi 0, %s210
      %s227 = sphi 0, %s211
      %s233 = sphi 0, %s235
      %s236 = sphi 0, %s233
      %s237 = sphi 0, %s236
      %s253 = sphi 0, %s237
      %s259 = sphi 0, %s261
      %s262 = sphi 0, %s259
      %s263 = sphi 0, %s262
      %s279 = sphi 0, %s263
      %s285 = sphi 0, %s287
      %s288 = sphi 0, %s285
      %s289 = sphi 0, %s288
      %s305 = sphi 0, %s289
      %s311 = sphi 0, %s313
      %s314 = sphi 0, %s311
      %s315 = sphi 0, %s314
      %s331 = sphi 0, %s315
      %s337 = sphi 0, %s339
      %s340 = sphi 0, %s337
      %s341 = sphi 0, %s340
      %s357 = sphi 0, %s341
      %s363 = sphi 0, %s365
      %s366 = sphi 0, %s363
      %s367 = sphi 0, %s366
      %s383 = sphi 0, %s367
      %s389 = sphi 0, %s391
      %s392 = sphi 0, %s389
      %s393 = sphi 0, %s392
      %s409 = sphi 0, %s393
      %s415 = sphi 0, %s417
      %s418 = sphi 0, %s415
      %s419 = sphi 0, %s418
      %s435 = sphi 0, %s419
      %s439 = sphi 0, %s439
      %s441 = sphi 0, %s439
      %s442 = sphi 0, %s441
      %s456 = sphi 0, %s442
      %s460 = sphi 0, %s460
      %s462 = sphi 0, %s460
      %s463 = sphi 0, %s462
      %s477 = sphi 0, %s463
      %s481 = sphi 0, %s481
      %s483 = sphi 0, %s481
      %s484 = sphi 0, %s483
      %s498 = sphi 0, %s484
      %s502 = sphi 0, %s502
      %s504 = sphi 0, %s502
      %s505 = sphi 0, %s504
      %s519 = sphi 0, %s505
      %s525 = sphi 0, %s527
      %s528 = sphi 0, %s525
      %s529 = sphi 0, %s528
      %s545 = sphi 0, %s529
    $region4: #{vit_forward.1} parent=1 // loop_header_branch
      %42 = sbr.rel (%p40) target = $region8
    $region5: #{vit_forward.1} parent=1 // loop_body
      %s44 = ssub.s32 %s39, 1
      %s45 = ssub.s32 %s39, 2
      %s52 = sadd.s32 1, %s47
      %p53 = scmp.ge.s32.totalorder %s52, 2
      %s54 = scalar_select %p53, 0, %s52
      %s55 = sadd.s32 1, %s46
      %s56 = scalar_select %p53, %s55, %s46
      %p57 = scmp.ge.s32.totalorder %s56, 2
      %s58 = scalar_select %p57, 0, %s56
      %s59 = ssub.s32 %s46, %s58
      %p60 = scmp.eq.s32.totalorder %s59, 0
      %s62 = sadd.s32 %s61, 1
      %s63 = scalar_select %p60, %s61, %s62
      %p66 = pneg %p60
      %p67 = scmp.eq.s32.totalorder %s39, 3
      %p68 = por %p66, %p67
      %p69 = scmp.ne.s32.totalorder %s61, %s64
      %p70 = scmp.eq.s32.totalorder %s39, 0
      %p71 = por %p69, %p70
      %p72 = scmp.ne.s32.totalorder %s61, %s64
      %p73 = scmp.eq.s32.totalorder %s44, 3
      %p74 = por %p72, %p73
      %p75 = scmp.ne.s32.totalorder %s64, %s65
      %p76 = scmp.eq.s32.totalorder %s44, 0
      %p77 = por %p75, %p76
      %p78 = scmp.ne.s32.totalorder %s64, %s65
      %p79 = scmp.eq.s32.totalorder %s45, 3
      %p80 = por %p78, %p79
      %p82 = scmp.ne.s32.totalorder %s65, %s81
      %p83 = scmp.eq.s32.totalorder %s45, 0
      %p84 = por %p82, %p83
      %s86 = sadd.s32 %s85, 1
      %p89 = scmp.eq.s32.totalorder %s39, 3
      %p90 = scmp.ne.s32.totalorder %s85, %s87
      %p91 = scmp.eq.s32.totalorder %s39, 0
      %p92 = por %p90, %p91
      %p93 = scmp.ne.s32.totalorder %s85, %s87
      %p94 = scmp.eq.s32.totalorder %s44, 3
      %p95 = por %p93, %p94
      %p96 = scmp.ne.s32.totalorder %s87, %s88
      %p97 = scmp.eq.s32.totalorder %s44, 0
      %p98 = por %p96, %p97
      %p99 = scmp.ne.s32.totalorder %s87, %s88
      %p100 = scmp.eq.s32.totalorder %s45, 3
      %p101 = por %p99, %p100
      %p103 = scmp.ne.s32.totalorder %s88, %s102
      %p104 = scmp.eq.s32.totalorder %s45, 0
      %p105 = por %p103, %p104
      %s107 = sadd.s32 %s106, 1
      %p110 = scmp.eq.s32.totalorder %s39, 3
      %p111 = scmp.ne.s32.totalorder %s106, %s108
      %p112 = scmp.eq.s32.totalorder %s39, 0
      %p113 = por %p111, %p112
      %p114 = scmp.ne.s32.totalorder %s106, %s108
      %p115 = scmp.eq.s32.totalorder %s44, 3
      %p116 = por %p114, %p115
      %p117 = scmp.ne.s32.totalorder %s108, %s109
      %p118 = scmp.eq.s32.totalorder %s44, 0
      %p119 = por %p117, %p118
      %p120 = scmp.ne.s32.totalorder %s108, %s109
      %p121 = scmp.eq.s32.totalorder %s45, 3
      %p122 = por %p120, %p121
      %p124 = scmp.ne.s32.totalorder %s109, %s123
      %p125 = scmp.eq.s32.totalorder %s45, 0
      %p126 = por %p124, %p125
      %s127 = ssub.s32 %s47, %s54
      %p128 = scmp.eq.s32.totalorder %s127, 0
      %s130 = sadd.s32 %s129, 1
      %s131 = scalar_select %p128, %s129, %s130
      %p134 = pneg %p128
      %p135 = scmp.eq.s32.totalorder %s39, 3
      %p136 = por %p134, %p135
      %p137 = scmp.ne.s32.totalorder %s129, %s132
      %p138 = scmp.eq.s32.totalorder %s39, 0
      %p139 = por %p137, %p138
      %p140 = scmp.ne.s32.totalorder %s129, %s132
      %p141 = scmp.eq.s32.totalorder %s44, 3
      %p142 = por %p140, %p141
      %p143 = scmp.ne.s32.totalorder %s132, %s133
      %p144 = scmp.eq.s32.totalorder %s44, 0
      %p145 = por %p143, %p144
      %p146 = scmp.ne.s32.totalorder %s132, %s133
      %p147 = scmp.eq.s32.totalorder %s45, 3
      %p148 = por %p146, %p147
      %p150 = scmp.ne.s32.totalorder %s133, %s149
      %p151 = scmp.eq.s32.totalorder %s45, 0
      %p152 = por %p150, %p151
      %s153 = ssub.s32 %s47, %s54
      %p154 = scmp.eq.s32.totalorder %s153, 0
      %s156 = sadd.s32 %s155, 1
      %s157 = scalar_select %p154, %s155, %s156
      %p160 = pneg %p154
      %p161 = scmp.eq.s32.totalorder %s39, 3
      %p162 = por %p160, %p161
      %p163 = scmp.ne.s32.totalorder %s155, %s158
      %p164 = scmp.eq.s32.totalorder %s39, 0
      %p165 = por %p163, %p164
      %p166 = scmp.ne.s32.totalorder %s155, %s158
      %p167 = scmp.eq.s32.totalorder %s44, 3
      %p168 = por %p166, %p167
      %p169 = scmp.ne.s32.totalorder %s158, %s159
      %p170 = scmp.eq.s32.totalorder %s44, 0
      %p171 = por %p169, %p170
      %p172 = scmp.ne.s32.totalorder %s158, %s159
      %p173 = scmp.eq.s32.totalorder %s45, 3
      %p174 = por %p172, %p173
      %p176 = scmp.ne.s32.totalorder %s159, %s175
      %p177 = scmp.eq.s32.totalorder %s45, 0
      %p178 = por %p176, %p177
      %s179 = ssub.s32 %s47, %s54
      %p180 = scmp.eq.s32.totalorder %s179, 0
      %s182 = sadd.s32 %s181, 1
      %s183 = scalar_select %p180, %s181, %s182
      %p186 = pneg %p180
      %p187 = scmp.eq.s32.totalorder %s39, 3
      %p188 = por %p186, %p187
      %p189 = scmp.ne.s32.totalorder %s181, %s184
      %p190 = scmp.eq.s32.totalorder %s39, 0
      %p191 = por %p189, %p190
      %p192 = scmp.ne.s32.totalorder %s181, %s184
      %p193 = scmp.eq.s32.totalorder %s44, 3
      %p194 = por %p192, %p193
      %p195 = scmp.ne.s32.totalorder %s184, %s185
      %p196 = scmp.eq.s32.totalorder %s44, 0
      %p197 = por %p195, %p196
      %p198 = scmp.ne.s32.totalorder %s184, %s185
      %p199 = scmp.eq.s32.totalorder %s45, 3
      %p200 = por %p198, %p199
      %p202 = scmp.ne.s32.totalorder %s185, %s201
      %p203 = scmp.eq.s32.totalorder %s45, 0
      %p204 = por %p202, %p203
      %s205 = ssub.s32 %s47, %s54
      %p206 = scmp.eq.s32.totalorder %s205, 0
      %s208 = sadd.s32 %s207, 1
      %s209 = scalar_select %p206, %s207, %s208
      %p212 = pneg %p206
      %p213 = scmp.eq.s32.totalorder %s39, 3
      %p214 = por %p212, %p213
      %p215 = scmp.ne.s32.totalorder %s207, %s210
      %p216 = scmp.eq.s32.totalorder %s39, 0
      %p217 = por %p215, %p216
      %p218 = scmp.ne.s32.totalorder %s207, %s210
      %p219 = scmp.eq.s32.totalorder %s44, 3
      %p220 = por %p218, %p219
      %p221 = scmp.ne.s32.totalorder %s210, %s211
      %p222 = scmp.eq.s32.totalorder %s44, 0
      %p223 = por %p221, %p222
      %p224 = scmp.ne.s32.totalorder %s210, %s211
      %p225 = scmp.eq.s32.totalorder %s45, 3
      %p226 = por %p224, %p225
      %p228 = scmp.ne.s32.totalorder %s211, %s227
      %p229 = scmp.eq.s32.totalorder %s45, 0
      %p230 = por %p228, %p229
      %s231 = ssub.s32 %s47, %s54
      %p232 = scmp.eq.s32.totalorder %s231, 0
      %s234 = sadd.s32 %s233, 1
      %s235 = scalar_select %p232, %s233, %s234
      %p238 = pneg %p232
      %p239 = scmp.eq.s32.totalorder %s39, 3
      %p240 = por %p238, %p239
      %p241 = scmp.ne.s32.totalorder %s233, %s236
      %p242 = scmp.eq.s32.totalorder %s39, 0
      %p243 = por %p241, %p242
      %p244 = scmp.ne.s32.totalorder %s233, %s236
      %p245 = scmp.eq.s32.totalorder %s44, 3
      %p246 = por %p244, %p245
      %p247 = scmp.ne.s32.totalorder %s236, %s237
      %p248 = scmp.eq.s32.totalorder %s44, 0
      %p249 = por %p247, %p248
      %p250 = scmp.ne.s32.totalorder %s236, %s237
      %p251 = scmp.eq.s32.totalorder %s45, 3
      %p252 = por %p250, %p251
      %p254 = scmp.ne.s32.totalorder %s237, %s253
      %p255 = scmp.eq.s32.totalorder %s45, 0
      %p256 = por %p254, %p255
      %s257 = ssub.s32 %s47, %s54
      %p258 = scmp.eq.s32.totalorder %s257, 0
      %s260 = sadd.s32 %s259, 1
      %s261 = scalar_select %p258, %s259, %s260
      %p264 = pneg %p258
      %p265 = scmp.eq.s32.totalorder %s39, 3
      %p266 = por %p264, %p265
      %p267 = scmp.ne.s32.totalorder %s259, %s262
      %p268 = scmp.eq.s32.totalorder %s39, 0
      %p269 = por %p267, %p268
      %p270 = scmp.ne.s32.totalorder %s259, %s262
      %p271 = scmp.eq.s32.totalorder %s44, 3
      %p272 = por %p270, %p271
      %p273 = scmp.ne.s32.totalorder %s262, %s263
      %p274 = scmp.eq.s32.totalorder %s44, 0
      %p275 = por %p273, %p274
      %p276 = scmp.ne.s32.totalorder %s262, %s263
      %p277 = scmp.eq.s32.totalorder %s45, 3
      %p278 = por %p276, %p277
      %p280 = scmp.ne.s32.totalorder %s263, %s279
      %p281 = scmp.eq.s32.totalorder %s45, 0
      %p282 = por %p280, %p281
      %s283 = ssub.s32 %s47, %s54
      %p284 = scmp.eq.s32.totalorder %s283, 0
      %s286 = sadd.s32 %s285, 1
      %s287 = scalar_select %p284, %s285, %s286
      %p290 = pneg %p284
      %p291 = scmp.eq.s32.totalorder %s39, 3
      %p292 = por %p290, %p291
      %p293 = scmp.ne.s32.totalorder %s285, %s288
      %p294 = scmp.eq.s32.totalorder %s39, 0
      %p295 = por %p293, %p294
      %p296 = scmp.ne.s32.totalorder %s285, %s288
      %p297 = scmp.eq.s32.totalorder %s44, 3
      %p298 = por %p296, %p297
      %p299 = scmp.ne.s32.totalorder %s288, %s289
      %p300 = scmp.eq.s32.totalorder %s44, 0
      %p301 = por %p299, %p300
      %p302 = scmp.ne.s32.totalorder %s288, %s289
      %p303 = scmp.eq.s32.totalorder %s45, 3
      %p304 = por %p302, %p303
      %p306 = scmp.ne.s32.totalorder %s289, %s305
      %p307 = scmp.eq.s32.totalorder %s45, 0
      %p308 = por %p306, %p307
      %s309 = ssub.s32 %s47, %s54
      %p310 = scmp.eq.s32.totalorder %s309, 0
      %s312 = sadd.s32 %s311, 1
      %s313 = scalar_select %p310, %s311, %s312
      %p316 = pneg %p310
      %p317 = scmp.eq.s32.totalorder %s39, 3
      %p318 = por %p316, %p317
      %p319 = scmp.ne.s32.totalorder %s311, %s314
      %p320 = scmp.eq.s32.totalorder %s39, 0
      %p321 = por %p319, %p320
      %p322 = scmp.ne.s32.totalorder %s311, %s314
      %p323 = scmp.eq.s32.totalorder %s44, 3
      %p324 = por %p322, %p323
      %p325 = scmp.ne.s32.totalorder %s314, %s315
      %p326 = scmp.eq.s32.totalorder %s44, 0
      %p327 = por %p325, %p326
      %p328 = scmp.ne.s32.totalorder %s314, %s315
      %p329 = scmp.eq.s32.totalorder %s45, 3
      %p330 = por %p328, %p329
      %p332 = scmp.ne.s32.totalorder %s315, %s331
      %p333 = scmp.eq.s32.totalorder %s45, 0
      %p334 = por %p332, %p333
      %s335 = ssub.s32 %s47, %s54
      %p336 = scmp.eq.s32.totalorder %s335, 0
      %s338 = sadd.s32 %s337, 1
      %s339 = scalar_select %p336, %s337, %s338
      %p342 = pneg %p336
      %p343 = scmp.eq.s32.totalorder %s39, 3
      %p344 = por %p342, %p343
      %p345 = scmp.ne.s32.totalorder %s337, %s340
      %p346 = scmp.eq.s32.totalorder %s39, 0
      %p347 = por %p345, %p346
      %p348 = scmp.ne.s32.totalorder %s337, %s340
      %p349 = scmp.eq.s32.totalorder %s44, 3
      %p350 = por %p348, %p349
      %p351 = scmp.ne.s32.totalorder %s340, %s341
      %p352 = scmp.eq.s32.totalorder %s44, 0
      %p353 = por %p351, %p352
      %p354 = scmp.ne.s32.totalorder %s340, %s341
      %p355 = scmp.eq.s32.totalorder %s45, 3
      %p356 = por %p354, %p355
      %p358 = scmp.ne.s32.totalorder %s341, %s357
      %p359 = scmp.eq.s32.totalorder %s45, 0
      %p360 = por %p358, %p359
      %s361 = ssub.s32 %s47, %s54
      %p362 = scmp.eq.s32.totalorder %s361, 0
      %s364 = sadd.s32 %s363, 1
      %s365 = scalar_select %p362, %s363, %s364
      %p368 = pneg %p362
      %p369 = scmp.eq.s32.totalorder %s39, 3
      %p370 = por %p368, %p369
      %p371 = scmp.ne.s32.totalorder %s363, %s366
      %p372 = scmp.eq.s32.totalorder %s39, 0
      %p373 = por %p371, %p372
      %p374 = scmp.ne.s32.totalorder %s363, %s366
      %p375 = scmp.eq.s32.totalorder %s44, 3
      %p376 = por %p374, %p375
      %p377 = scmp.ne.s32.totalorder %s366, %s367
      %p378 = scmp.eq.s32.totalorder %s44, 0
      %p379 = por %p377, %p378
      %p380 = scmp.ne.s32.totalorder %s366, %s367
      %p381 = scmp.eq.s32.totalorder %s45, 3
      %p382 = por %p380, %p381
      %p384 = scmp.ne.s32.totalorder %s367, %s383
      %p385 = scmp.eq.s32.totalorder %s45, 0
      %p386 = por %p384, %p385
      %s387 = ssub.s32 %s47, %s54
      %p388 = scmp.eq.s32.totalorder %s387, 0
      %s390 = sadd.s32 %s389, 1
      %s391 = scalar_select %p388, %s389, %s390
      %p394 = pneg %p388
      %p395 = scmp.eq.s32.totalorder %s39, 3
      %p396 = por %p394, %p395
      %p397 = scmp.ne.s32.totalorder %s389, %s392
      %p398 = scmp.eq.s32.totalorder %s39, 0
      %p399 = por %p397, %p398
      %p400 = scmp.ne.s32.totalorder %s389, %s392
      %p401 = scmp.eq.s32.totalorder %s44, 3
      %p402 = por %p400, %p401
      %p403 = scmp.ne.s32.totalorder %s392, %s393
      %p404 = scmp.eq.s32.totalorder %s44, 0
      %p405 = por %p403, %p404
      %p406 = scmp.ne.s32.totalorder %s392, %s393
      %p407 = scmp.eq.s32.totalorder %s45, 3
      %p408 = por %p406, %p407
      %p410 = scmp.ne.s32.totalorder %s393, %s409
      %p411 = scmp.eq.s32.totalorder %s45, 0
      %p412 = por %p410, %p411
      %s413 = ssub.s32 %s47, %s54
      %p414 = scmp.eq.s32.totalorder %s413, 0
      %s416 = sadd.s32 %s415, 1
      %s417 = scalar_select %p414, %s415, %s416
      %p420 = pneg %p414
      %p421 = scmp.eq.s32.totalorder %s39, 3
      %p422 = por %p420, %p421
      %p423 = scmp.ne.s32.totalorder %s415, %s418
      %p424 = scmp.eq.s32.totalorder %s39, 0
      %p425 = por %p423, %p424
      %p426 = scmp.ne.s32.totalorder %s415, %s418
      %p427 = scmp.eq.s32.totalorder %s44, 3
      %p428 = por %p426, %p427
      %p429 = scmp.ne.s32.totalorder %s418, %s419
      %p430 = scmp.eq.s32.totalorder %s44, 0
      %p431 = por %p429, %p430
      %p432 = scmp.ne.s32.totalorder %s418, %s419
      %p433 = scmp.eq.s32.totalorder %s45, 3
      %p434 = por %p432, %p433
      %p436 = scmp.ne.s32.totalorder %s419, %s435
      %p437 = scmp.eq.s32.totalorder %s45, 0
      %p438 = por %p436, %p437
      %s440 = sadd.s32 %s439, 1
      %p443 = scmp.eq.s32.totalorder %s39, 3
      %p444 = scmp.ne.s32.totalorder %s439, %s441
      %p445 = scmp.eq.s32.totalorder %s39, 0
      %p446 = por %p444, %p445
      %p447 = scmp.ne.s32.totalorder %s439, %s441
      %p448 = scmp.eq.s32.totalorder %s44, 3
      %p449 = por %p447, %p448
      %p450 = scmp.ne.s32.totalorder %s441, %s442
      %p451 = scmp.eq.s32.totalorder %s44, 0
      %p452 = por %p450, %p451
      %p453 = scmp.ne.s32.totalorder %s441, %s442
      %p454 = scmp.eq.s32.totalorder %s45, 3
      %p455 = por %p453, %p454
      %p457 = scmp.ne.s32.totalorder %s442, %s456
      %p458 = scmp.eq.s32.totalorder %s45, 0
      %p459 = por %p457, %p458
      %s461 = sadd.s32 %s460, 1
      %p464 = scmp.eq.s32.totalorder %s39, 3
      %p465 = scmp.ne.s32.totalorder %s460, %s462
      %p466 = scmp.eq.s32.totalorder %s39, 0
      %p467 = por %p465, %p466
      %p468 = scmp.ne.s32.totalorder %s460, %s462
      %p469 = scmp.eq.s32.totalorder %s44, 3
      %p470 = por %p468, %p469
      %p471 = scmp.ne.s32.totalorder %s462, %s463
      %p472 = scmp.eq.s32.totalorder %s44, 0
      %p473 = por %p471, %p472
      %p474 = scmp.ne.s32.totalorder %s462, %s463
      %p475 = scmp.eq.s32.totalorder %s45, 3
      %p476 = por %p474, %p475
      %p478 = scmp.ne.s32.totalorder %s463, %s477
      %p479 = scmp.eq.s32.totalorder %s45, 0
      %p480 = por %p478, %p479
      %s482 = sadd.s32 %s481, 1
      %p485 = scmp.eq.s32.totalorder %s39, 3
      %p486 = scmp.ne.s32.totalorder %s481, %s483
      %p487 = scmp.eq.s32.totalorder %s39, 0
      %p488 = por %p486, %p487
      %p489 = scmp.ne.s32.totalorder %s481, %s483
      %p490 = scmp.eq.s32.totalorder %s44, 3
      %p491 = por %p489, %p490
      %p492 = scmp.ne.s32.totalorder %s483, %s484
      %p493 = scmp.eq.s32.totalorder %s44, 0
      %p494 = por %p492, %p493
      %p495 = scmp.ne.s32.totalorder %s483, %s484
      %p496 = scmp.eq.s32.totalorder %s45, 3
      %p497 = por %p495, %p496
      %p499 = scmp.ne.s32.totalorder %s484, %s498
      %p500 = scmp.eq.s32.totalorder %s45, 0
      %p501 = por %p499, %p500
      %s503 = sadd.s32 %s502, 1
      %p506 = scmp.eq.s32.totalorder %s39, 3
      %p507 = scmp.ne.s32.totalorder %s502, %s504
      %p508 = scmp.eq.s32.totalorder %s39, 0
      %p509 = por %p507, %p508
      %p510 = scmp.ne.s32.totalorder %s502, %s504
      %p511 = scmp.eq.s32.totalorder %s44, 3
      %p512 = por %p510, %p511
      %p513 = scmp.ne.s32.totalorder %s504, %s505
      %p514 = scmp.eq.s32.totalorder %s44, 0
      %p515 = por %p513, %p514
      %p516 = scmp.ne.s32.totalorder %s504, %s505
      %p517 = scmp.eq.s32.totalorder %s45, 3
      %p518 = por %p516, %p517
      %p520 = scmp.ne.s32.totalorder %s505, %s519
      %p521 = scmp.eq.s32.totalorder %s45, 0
      %p522 = por %p520, %p521
      %s523 = ssub.s32 %s46, %s58
      %p524 = scmp.eq.s32.totalorder %s523, 0
      %s526 = sadd.s32 %s525, 1
      %s527 = scalar_select %p524, %s525, %s526
      %p530 = pneg %p524
      %p531 = scmp.eq.s32.totalorder %s39, 3
      %p532 = por %p530, %p531
      %p533 = scmp.ne.s32.totalorder %s525, %s528
      %p534 = scmp.eq.s32.totalorder %s39, 0
      %p535 = por %p533, %p534
      %p536 = scmp.ne.s32.totalorder %s525, %s528
      %p537 = scmp.eq.s32.totalorder %s44, 3
      %p538 = por %p536, %p537
      %p539 = scmp.ne.s32.totalorder %s528, %s529
      %p540 = scmp.eq.s32.totalorder %s44, 0
      %p541 = por %p539, %p540
      %p542 = scmp.ne.s32.totalorder %s528, %s529
      %p543 = scmp.eq.s32.totalorder %s45, 3
      %p544 = por %p542, %p543
      %p546 = scmp.ne.s32.totalorder %s529, %s545
      %p547 = scmp.eq.s32.totalorder %s45, 0
      %p548 = por %p546, %p547
      %p549 = scmp.le.s32.totalorder 1, %s39
      %p550 = scmp.lt.s32.totalorder %s39, 5
      %p551 = pnand %p549, %p550
      %p552 = pneg %p551
      // Predicated region
      $region9: #{vit_forward.1} parent=5 // pred_check
        _
      $region10: #{vit_forward.1} parent=5 // pred_check_branch
        %554 = sbr.rel (%p551) target = $region12
      $region11: #{vit_forward.1} parent=5 // pred_region
        %s555 = ssub.s32 %s39, 1
        // Predicated region
        $region13: #{vit_forward.1} parent=11 // pred_check
          %p556 = pneg %p98
        $region14: #{vit_forward.1} parent=11 // pred_check_branch
          %558 = sbr.rel (%p556) target = $region16
        $region15: #{vit_forward.1} parent=11 // pred_region
          _
        $region16: #{vit_forward.1} parent=11 // pred_fallthru
          _
        // Predicated region
        $region17: #{vit_forward.1} parent=11 // pred_check
          %p559 = pneg %p119
        $region18: #{vit_forward.1} parent=11 // pred_check_branch
          %561 = sbr.rel (%p559) target = $region20
        $region19: #{vit_forward.1} parent=11 // pred_region
          _
        $region20: #{vit_forward.1} parent=11 // pred_fallthru
          _
        // Predicated region
        $region21: #{vit_forward.1} parent=11 // pred_check
          %p562 = pneg %p452
        $region22: #{vit_forward.1} parent=11 // pred_check_branch
          %564 = sbr.rel (%p562) target = $region24
        $region23: #{vit_forward.1} parent=11 // pred_region
          %s566 = ssub.s32 16, 16
          %567 = vsyncadd [#allocation10], %s566
          %s569 = sshll.u32 [#allocation11], 4
          %s570 = int_to_ptr.vmem [resolvable:$true] %s569
          %572 = dma.hbm_to_vmem [thread:$0]  %s15, 16, %s570, [#allocation10]
        $region24: #{vit_forward.1} parent=11 // pred_fallthru
          _
        // Predicated region
        $region25: #{vit_forward.1} parent=11 // pred_check
          %p573 = pneg %p473
        $region26: #{vit_forward.1} parent=11 // pred_check_branch
          %575 = sbr.rel (%p573) target = $region28
        $region27: #{vit_forward.1} parent=11 // pred_region
          %s577 = ssub.s32 16, 16
          %578 = vsyncadd [#allocation13], %s577
          %s580 = sshll.u32 [#allocation12], 4
          %s581 = int_to_ptr.vmem [resolvable:$true] %s580
          %583 = dma.hbm_to_vmem [thread:$0]  %s16, 16, %s581, [#allocation13]
        $region28: #{vit_forward.1} parent=11 // pred_fallthru
          _
        // Predicated region
        $region29: #{vit_forward.1} parent=11 // pred_check
          %p584 = pneg %p494
        $region30: #{vit_forward.1} parent=11 // pred_check_branch
          %586 = sbr.rel (%p584) target = $region32
        $region31: #{vit_forward.1} parent=11 // pred_region
          %s588 = ssub.s32 1024, 1024
          %589 = vsyncadd [#allocation13], %s588
          %s590 = sshll.u32 [#allocation14], 4
          %s591 = int_to_ptr.vmem [resolvable:$true] %s590
          %596 = dma.hbm_to_vmem [thread:$0]  %s17, 1024, %s591, [#allocation13], 64, 64, 4
        $region32: #{vit_forward.1} parent=11 // pred_fallthru
          _
        // Predicated region
        $region33: #{vit_forward.1} parent=11 // pred_check
          %p597 = pneg %p515
        $region34: #{vit_forward.1} parent=11 // pred_check_branch
          %599 = sbr.rel (%p597) target = $region36
        $region35: #{vit_forward.1} parent=11 // pred_region
          %s601 = ssub.s32 16, 16
          %602 = vsyncadd [#allocation16], %s601
          %s604 = sshll.u32 [#allocation15], 4
          %s605 = int_to_ptr.vmem [resolvable:$true] %s604
          %607 = dma.hbm_to_vmem [thread:$0]  %s18, 16, %s605, [#allocation16]
        $region36: #{vit_forward.1} parent=11 // pred_fallthru
          _
      $region12: #{vit_forward.1} parent=5 // pred_fallthru
        _
      %p608 = scmp.lt.s32.totalorder %s39, 4
      // Predicated region
      $region37: #{vit_forward.1} parent=5 // pred_check
        %p609 = pneg %p608
      $region38: #{vit_forward.1} parent=5 // pred_check_branch
        %611 = sbr.rel (%p609) target = $region40
      $region39: #{vit_forward.1} parent=5 // pred_region
        // Predicated region
        $region41: #{vit_forward.1} parent=39 // pred_check
          %p612 = pneg %p71
        $region42: #{vit_forward.1} parent=39 // pred_check_branch
          %614 = sbr.rel (%p612) target = $region44
        $region43: #{vit_forward.1} parent=39 // pred_region
          %p615 = scmp.lt.s32.totalorder %s46, 1
          %s616 = scalar_select %p615, %s46, 1
          %s617 = smul.addr %s616, 6
          %s618 = smul.addr %s617, 4
          %s619 = scalar_lea.vmem %s0, %s618
        $region44: #{vit_forward.1} parent=39 // pred_fallthru
          _
        // Predicated region
        $region45: #{vit_forward.1} parent=39 // pred_check
          %p620 = pneg %p139
        $region46: #{vit_forward.1} parent=39 // pred_check_branch
          %622 = sbr.rel (%p620) target = $region48
        $region47: #{vit_forward.1} parent=39 // pred_region
          %p623 = scmp.lt.s32.totalorder %s47, 1
          %s624 = scalar_select %p623, %s47, 1
          %s625 = scalar_lea.vmem %s3, %s624
        $region48: #{vit_forward.1} parent=39 // pred_fallthru
          _
        // Predicated region
        $region49: #{vit_forward.1} parent=39 // pred_check
          %p626 = pneg %p165
        $region50: #{vit_forward.1} parent=39 // pred_check_branch
          %628 = sbr.rel (%p626) target = $region52
        $region51: #{vit_forward.1} parent=39 // pred_region
          %p629 = scmp.lt.s32.totalorder %s47, 1
          %s630 = scalar_select %p629, %s47, 1
          %s631 = scalar_lea.vmem %s4, %s630
        $region52: #{vit_forward.1} parent=39 // pred_fallthru
          _
        // Predicated region
        $region53: #{vit_forward.1} parent=39 // pred_check
          %p632 = pneg %p191
        $region54: #{vit_forward.1} parent=39 // pred_check_branch
          %634 = sbr.rel (%p632) target = $region56
        $region55: #{vit_forward.1} parent=39 // pred_region
          %p635 = scmp.lt.s32.totalorder %s47, 1
          %s636 = scalar_select %p635, %s47, 1
          %s637 = smul.addr %s636, 48
          %s638 = smul.addr %s637, 4
          %s639 = scalar_lea.vmem %s5, %s638
        $region56: #{vit_forward.1} parent=39 // pred_fallthru
          _
        // Predicated region
        $region57: #{vit_forward.1} parent=39 // pred_check
          %p640 = pneg %p217
        $region58: #{vit_forward.1} parent=39 // pred_check_branch
          %642 = sbr.rel (%p640) target = $region60
        $region59: #{vit_forward.1} parent=39 // pred_region
          %p643 = scmp.lt.s32.totalorder %s47, 1
          %s644 = scalar_select %p643, %s47, 1
          %s645 = smul.addr %s644, 3
          %s646 = scalar_lea.vmem %s6, %s645
        $region60: #{vit_forward.1} parent=39 // pred_fallthru
          _
        // Predicated region
        $region61: #{vit_forward.1} parent=39 // pred_check
          %p647 = pneg %p243
        $region62: #{vit_forward.1} parent=39 // pred_check_branch
          %649 = sbr.rel (%p647) target = $region64
        $region63: #{vit_forward.1} parent=39 // pred_region
          %s650 = sand.u32 %s233, 1
          %s651 = scalar_lea.sflag [#allocation4], %s650
          %s652 = sand.u32 %s233, 1
          %s653 = smul.addr %s652, 64
          %s654 = scalar_lea.vmem [#allocation3], %s653
          %s656 = ssub.s32 1024, 1024
          %657 = vsyncadd %s651, %s656
          %s658 = smul.addr %s47, 16
          %s659 = smul.addr %s658, 64
          %s660 = scalar_lea.hbm %s7, %s659
          %s661 = sshll.u32 %s654, 4
          %s662 = int_to_ptr.vmem [resolvable:$true] %s661
          %667 = dma.hbm_to_vmem [thread:$0]  %s660, 1024, %s662, %s651, 64, 64, 4
        $region64: #{vit_forward.1} parent=39 // pred_fallthru
          _
        // Predicated region
        $region65: #{vit_forward.1} parent=39 // pred_check
          %p668 = pneg %p269
        $region66: #{vit_forward.1} parent=39 // pred_check_branch
          %670 = sbr.rel (%p668) target = $region68
        $region67: #{vit_forward.1} parent=39 // pred_region
          %p671 = scmp.lt.s32.totalorder %s47, 1
          %s672 = scalar_select %p671, %s47, 1
          %s673 = scalar_lea.vmem %s8, %s672
        $region68: #{vit_forward.1} parent=39 // pred_fallthru
          _
        // Predicated region
        $region69: #{vit_forward.1} parent=39 // pred_check
          %p674 = pneg %p295
        $region70: #{vit_forward.1} parent=39 // pred_check_branch
          %676 = sbr.rel (%p674) target = $region72
        $region71: #{vit_forward.1} parent=39 // pred_region
          %s677 = sand.u32 %s39, 1
          %s678 = scalar_lea.sflag [#allocation7], %s677
          %s679 = sand.u32 %s285, 1
          %s680 = scalar_lea.vmem [#allocation6], %s679
          %s682 = ssub.s32 16, 16
          %683 = vsyncadd %s678, %s682
          %s684 = smul.addr %s47, 16
          %s685 = scalar_lea.hbm %s9, %s684
          %s687 = sshll.u32 %s680, 4
          %s688 = int_to_ptr.vmem [resolvable:$true] %s687
          %690 = dma.hbm_to_vmem [thread:$0]  %s685, 16, %s688, %s678
        $region72: #{vit_forward.1} parent=39 // pred_fallthru
          _
        // Predicated region
        $region73: #{vit_forward.1} parent=39 // pred_check
          %p691 = pneg %p321
        $region74: #{vit_forward.1} parent=39 // pred_check_branch
          %693 = sbr.rel (%p691) target = $region76
        $region75: #{vit_forward.1} parent=39 // pred_region
          %s694 = sand.u32 %s39, 1
          %s695 = scalar_lea.sflag [#allocation7], %s694
          %s696 = sand.u32 %s311, 1
          %s697 = scalar_lea.vmem [#allocation8], %s696
          %s699 = ssub.s32 16, 16
          %700 = vsyncadd %s695, %s699
          %s701 = smul.addr %s47, 16
          %s702 = scalar_lea.hbm %s10, %s701
          %s704 = sshll.u32 %s697, 4
          %s705 = int_to_ptr.vmem [resolvable:$true] %s704
          %707 = dma.hbm_to_vmem [thread:$0]  %s702, 16, %s705, %s695
        $region76: #{vit_forward.1} parent=39 // pred_fallthru
          _
        // Predicated region
        $region77: #{vit_forward.1} parent=39 // pred_check
          %p708 = pneg %p347
        $region78: #{vit_forward.1} parent=39 // pred_check_branch
          %710 = sbr.rel (%p708) target = $region80
        $region79: #{vit_forward.1} parent=39 // pred_region
          %p711 = scmp.lt.s32.totalorder %s47, 1
          %s712 = scalar_select %p711, %s47, 1
          %s713 = smul.addr %s712, 32
          %s714 = smul.addr %s713, 4
          %s715 = scalar_lea.vmem %s11, %s714
        $region80: #{vit_forward.1} parent=39 // pred_fallthru
          _
        // Predicated region
        $region81: #{vit_forward.1} parent=39 // pred_check
          %p716 = pneg %p373
        $region82: #{vit_forward.1} parent=39 // pred_check_branch
          %718 = sbr.rel (%p716) target = $region84
        $region83: #{vit_forward.1} parent=39 // pred_region
          %p719 = scmp.lt.s32.totalorder %s47, 1
          %s720 = scalar_select %p719, %s47, 1
          %s721 = smul.addr %s720, 2
          %s722 = scalar_lea.vmem %s12, %s721
        $region84: #{vit_forward.1} parent=39 // pred_fallthru
          _
        // Predicated region
        $region85: #{vit_forward.1} parent=39 // pred_check
          %p723 = pneg %p399
        $region86: #{vit_forward.1} parent=39 // pred_check_branch
          %725 = sbr.rel (%p723) target = $region88
        $region87: #{vit_forward.1} parent=39 // pred_region
          %p726 = scmp.lt.s32.totalorder %s47, 1
          %s727 = scalar_select %p726, %s47, 1
          %s728 = smul.addr %s727, 32
          %s729 = smul.addr %s728, 4
          %s730 = scalar_lea.vmem %s13, %s729
        $region88: #{vit_forward.1} parent=39 // pred_fallthru
          _
        // Predicated region
        $region89: #{vit_forward.1} parent=39 // pred_check
          %p731 = pneg %p425
        $region90: #{vit_forward.1} parent=39 // pred_check_branch
          %733 = sbr.rel (%p731) target = $region92
        $region91: #{vit_forward.1} parent=39 // pred_region
          %s734 = sand.u32 %s39, 1
          %s735 = scalar_lea.sflag [#allocation10], %s734
          %s736 = sand.u32 %s415, 1
          %s737 = scalar_lea.vmem [#allocation9], %s736
          %s739 = ssub.s32 16, 16
          %740 = vsyncadd %s735, %s739
          %s741 = smul.addr %s47, 16
          %s742 = scalar_lea.hbm %s14, %s741
          %s744 = sshll.u32 %s737, 4
          %s745 = int_to_ptr.vmem [resolvable:$true] %s744
          %747 = dma.hbm_to_vmem [thread:$0]  %s742, 16, %s745, %s735
        $region92: #{vit_forward.1} parent=39 // pred_fallthru
          _
      $region40: #{vit_forward.1} parent=5 // pred_fallthru
        _
      %p748 = scmp.le.s32.totalorder 1, %s39
      %p749 = scmp.lt.s32.totalorder %s39, 5
      %p750 = pnand %p748, %p749
      %p751 = pneg %p750
      // Predicated region
      $region93: #{vit_forward.1} parent=5 // pred_check
        _
      $region94: #{vit_forward.1} parent=5 // pred_check_branch
        %753 = sbr.rel (%p750) target = $region96
      $region95: #{vit_forward.1} parent=5 // pred_region
        %s754 = ssub.s32 %s39, 1
        %s755 = sand.u32 %s236, 1
        %s756 = scalar_lea.sflag [#allocation4], %s755
        %s757 = sand.u32 %s236, 1
        %s758 = smul.addr %s757, 64
        %s759 = scalar_lea.vmem [#allocation3], %s758
        // Predicated region
        $region97: #{vit_forward.1} parent=95 // pred_check
          %p760 = pneg %p249
        $region98: #{vit_forward.1} parent=95 // pred_check_branch
          %762 = sbr.rel (%p760) target = $region100
        $region99: #{vit_forward.1} parent=95 // pred_region
          %763 = dma.done %s756, 1024
        $region100: #{vit_forward.1} parent=95 // pred_fallthru
          _
        %s764 = sand.u32 %s44, 1
        %s765 = scalar_lea.sflag [#allocation7], %s764
        %s766 = sand.u32 %s288, 1
        %s767 = scalar_lea.vmem [#allocation6], %s766
        // Predicated region
        $region101: #{vit_forward.1} parent=95 // pred_check
          %p768 = pneg %p301
        $region102: #{vit_forward.1} parent=95 // pred_check_branch
          %770 = sbr.rel (%p768) target = $region104
        $region103: #{vit_forward.1} parent=95 // pred_region
          %771 = dma.done %s765, 16
        $region104: #{vit_forward.1} parent=95 // pred_fallthru
          _
        %s772 = sand.u32 %s44, 1
        %s773 = scalar_lea.sflag [#allocation7], %s772
        %s774 = sand.u32 %s314, 1
        %s775 = scalar_lea.vmem [#allocation8], %s774
        // Predicated region
        $region105: #{vit_forward.1} parent=95 // pred_check
          %p776 = pneg %p327
        $region106: #{vit_forward.1} parent=95 // pred_check_branch
          %778 = sbr.rel (%p776) target = $region108
        $region107: #{vit_forward.1} parent=95 // pred_region
          %779 = dma.done %s773, 16
        $region108: #{vit_forward.1} parent=95 // pred_fallthru
          _
        %s780 = sand.u32 %s44, 1
        %s781 = scalar_lea.sflag [#allocation10], %s780
        %s782 = sand.u32 %s418, 1
        %s783 = scalar_lea.vmem [#allocation9], %s782
        // Predicated region
        $region109: #{vit_forward.1} parent=95 // pred_check
          %p784 = pneg %p431
        $region110: #{vit_forward.1} parent=95 // pred_check_branch
          %786 = sbr.rel (%p784) target = $region112
        $region111: #{vit_forward.1} parent=95 // pred_region
          %787 = dma.done %s781, 16
        $region112: #{vit_forward.1} parent=95 // pred_fallthru
          _
        // Predicated region
        $region113: #{vit_forward.1} parent=95 // pred_check
          %p788 = pneg %p452
        $region114: #{vit_forward.1} parent=95 // pred_check_branch
          %790 = sbr.rel (%p788) target = $region116
        $region115: #{vit_forward.1} parent=95 // pred_region
          %791 = dma.done [#allocation10], 16
        $region116: #{vit_forward.1} parent=95 // pred_fallthru
          _
        // Predicated region
        $region117: #{vit_forward.1} parent=95 // pred_check
          %p792 = pneg %p473
        $region118: #{vit_forward.1} parent=95 // pred_check_branch
          %794 = sbr.rel (%p792) target = $region120
        $region119: #{vit_forward.1} parent=95 // pred_region
          %795 = dma.done [#allocation13], 16
        $region120: #{vit_forward.1} parent=95 // pred_fallthru
          _
        // Predicated region
        $region121: #{vit_forward.1} parent=95 // pred_check
          %p796 = pneg %p494
        $region122: #{vit_forward.1} parent=95 // pred_check_branch
          %798 = sbr.rel (%p796) target = $region124
        $region123: #{vit_forward.1} parent=95 // pred_region
          %799 = dma.done [#allocation13], 1024
        $region124: #{vit_forward.1} parent=95 // pred_fallthru
          _
        // Predicated region
        $region125: #{vit_forward.1} parent=95 // pred_check
          %p800 = pneg %p515
        $region126: #{vit_forward.1} parent=95 // pred_check_branch
          %802 = sbr.rel (%p800) target = $region128
        $region127: #{vit_forward.1} parent=95 // pred_region
          %803 = dma.done [#allocation16], 16
        $region128: #{vit_forward.1} parent=95 // pred_fallthru
          _
        %p804 = scmp.lt.s32.totalorder %s48, 1
        %s805 = scalar_select %p804, %s48, 1
        %s806 = smul.addr %s805, 6
        %s807 = smul.addr %s806, 4
        %s808 = scalar_lea.vmem %s0, %s807
        %p809 = pneg %p77
        %p810 = pneg %p74
        %p811 = pneg %p98
        %p812 = pneg %p95
        %p813 = pneg %p119
        %p814 = pneg %p116
        %p815 = scmp.lt.s32.totalorder %s49, 1
        %s816 = scalar_select %p815, %s49, 1
        %s817 = scalar_lea.vmem %s3, %s816
        %p818 = pneg %p145
        %p819 = pneg %p142
        %p820 = scmp.lt.s32.totalorder %s49, 1
        %s821 = scalar_select %p820, %s49, 1
        %s822 = scalar_lea.vmem %s4, %s821
        %p823 = pneg %p171
        %p824 = pneg %p168
        %p825 = scmp.lt.s32.totalorder %s49, 1
        %s826 = scalar_select %p825, %s49, 1
        %s827 = smul.addr %s826, 48
        %s828 = smul.addr %s827, 4
        %s829 = scalar_lea.vmem %s5, %s828
        %p830 = pneg %p197
        %p831 = pneg %p194
        %p832 = scmp.lt.s32.totalorder %s49, 1
        %s833 = scalar_select %p832, %s49, 1
        %s834 = smul.addr %s833, 3
        %s835 = scalar_lea.vmem %s6, %s834
        %p836 = pneg %p223
        %p837 = pneg %p220
        %s838 = sand.u32 %s236, 1
        %s839 = scalar_lea.sflag [#allocation4], %s838
        %s840 = sand.u32 %s236, 1
        %s841 = smul.addr %s840, 64
        %s842 = scalar_lea.vmem [#allocation3], %s841
        %p843 = pneg %p249
        %p844 = pneg %p246
        %p845 = scmp.lt.s32.totalorder %s49, 1
        %s846 = scalar_select %p845, %s49, 1
        %s847 = scalar_lea.vmem %s8, %s846
        %p848 = pneg %p275
        %p849 = pneg %p272
        %s850 = sand.u32 %s44, 1
        %s851 = scalar_lea.sflag [#allocation7], %s850
        %s852 = sand.u32 %s288, 1
        %s853 = scalar_lea.vmem [#allocation6], %s852
        %p854 = pneg %p301
        %p855 = pneg %p298
        %s856 = sand.u32 %s44, 1
        %s857 = scalar_lea.sflag [#allocation7], %s856
        %s858 = sand.u32 %s314, 1
        %s859 = scalar_lea.vmem [#allocation8], %s858
        %p860 = pneg %p327
        %p861 = pneg %p324
        %p862 = scmp.lt.s32.totalorder %s49, 1
        %s863 = scalar_select %p862, %s49, 1
        %s864 = smul.addr %s863, 32
        %s865 = smul.addr %s864, 4
        %s866 = scalar_lea.vmem %s11, %s865
        %p867 = pneg %p353
        %p868 = pneg %p350
        %p869 = scmp.lt.s32.totalorder %s49, 1
        %s870 = scalar_select %p869, %s49, 1
        %s871 = smul.addr %s870, 2
        %s872 = scalar_lea.vmem %s12, %s871
        %p873 = pneg %p379
        %p874 = pneg %p376
        %p875 = scmp.lt.s32.totalorder %s49, 1
        %s876 = scalar_select %p875, %s49, 1
        %s877 = smul.addr %s876, 32
        %s878 = smul.addr %s877, 4
        %s879 = scalar_lea.vmem %s13, %s878
        %p880 = pneg %p405
        %p881 = pneg %p402
        %s882 = sand.u32 %s44, 1
        %s883 = scalar_lea.sflag [#allocation10], %s882
        %s884 = sand.u32 %s418, 1
        %s885 = scalar_lea.vmem [#allocation9], %s884
        %p886 = pneg %p431
        %p887 = pneg %p428
        %p888 = pneg %p452
        %p889 = pneg %p449
        %p890 = pneg %p473
        %p891 = pneg %p470
        %p892 = pneg %p494
        %p893 = pneg %p491
        %p894 = pneg %p515
        %p895 = pneg %p512
        %p896 = pneg %p541
        %p897 = pneg %p538
        %s898 = sand.u32 %s528, 1
        %s899 = scalar_lea.sflag [#allocation5], %s898
        %s900 = sand.u32 %s528, 1
        %s901 = scalar_lea.vmem [#allocation17], %s900
        %p902 = scmp.lt.s32.totalorder %s48, 1
        %s903 = scalar_select %p902, %s48, 1
        %s904 = smul.addr %s903, 6
        %s905 = smul.addr %s904, 4
        %s906 = scalar_lea.vmem %s0, %s905
        %p907 = scmp.lt.s32.totalorder %s49, 1
        %s908 = scalar_select %p907, %s49, 1
        %s909 = scalar_lea.vmem %s3, %s908
        %p910 = scmp.lt.s32.totalorder %s49, 1
        %s911 = scalar_select %p910, %s49, 1
        %s912 = scalar_lea.vmem %s4, %s911
        %p913 = scmp.lt.s32.totalorder %s49, 1
        %s914 = scalar_select %p913, %s49, 1
        %s915 = smul.addr %s914, 48
        %s916 = smul.addr %s915, 4
        %s917 = scalar_lea.vmem %s5, %s916
        %p918 = scmp.lt.s32.totalorder %s49, 1
        %s919 = scalar_select %p918, %s49, 1
        %s920 = smul.addr %s919, 3
        %s921 = scalar_lea.vmem %s6, %s920
        %p922 = scmp.lt.s32.totalorder %s49, 1
        %s923 = scalar_select %p922, %s49, 1
        %s924 = scalar_lea.vmem %s8, %s923
        %p925 = scmp.lt.s32.totalorder %s49, 1
        %s926 = scalar_select %p925, %s49, 1
        %s927 = smul.addr %s926, 32
        %s928 = smul.addr %s927, 4
        %s929 = scalar_lea.vmem %s11, %s928
        %p930 = scmp.lt.s32.totalorder %s49, 1
        %s931 = scalar_select %p930, %s49, 1
        %s932 = smul.addr %s931, 2
        %s933 = scalar_lea.vmem %s12, %s932
        %p934 = scmp.lt.s32.totalorder %s49, 1
        %s935 = scalar_select %p934, %s49, 1
        %s936 = smul.addr %s935, 32
        %s937 = smul.addr %s936, 4
        %s938 = scalar_lea.vmem %s13, %s937
        %p940 = scmp.eq.s32.totalorder %s49, 0
        // Predicated region
        $region129: #{vit_forward.1} parent=95 // pred_check
          %p941 = pneg %p940
        $region130: #{vit_forward.1} parent=95 // pred_check_branch
          %943 = sbr.rel (%p941) target = $region132
        $region131: #{vit_forward.1} parent=95 // pred_region
          %v944 = vld [vmem:[%s906] sm:$0xff]
          %v945 = vld [vmem:[%s906 + $0x8] sm:$0xff]
          %v946 = vld [vmem:[%s906 + $0x10] sm:$0xff]
          %v947 = vld [vmem:[%s1] sm:$0xf]
          %v948 = vld [vmem:[%s1 + $0x4] sm:$0xf]
          %v949 = vld [vmem:[%s1 + $0x8] sm:$0xf]
          %v950 = vld [vmem:[%s1 + $0xc] sm:$0xf]
          %v951 = vld [vmem:[%s1 + $0x10] sm:$0xf]
          %v952 = vld [vmem:[%s1 + $0x14] sm:$0xf]
          %v953 = vld [vmem:[%s1 + $0x18] sm:$0xf]
          %v954 = vld [vmem:[%s1 + $0x1c] sm:$0xf]
          %v955 = vld [vmem:[%s1 + $0x20] sm:$0xf]
          %v956 = vld [vmem:[%s1 + $0x24] sm:$0xf]
          %v957 = vld [vmem:[%s1 + $0x28] sm:$0xf]
          %v958 = vld [vmem:[%s1 + $0x2c] sm:$0xf]
          %v959 = vld [vmem:[%s1 + $0x30] sm:$0xf]
          %v960 = vld [vmem:[%s1 + $0x34] sm:$0xf]
          %v961 = vld [vmem:[%s1 + $0x38] sm:$0xf]
          %v962 = vld [vmem:[%s1 + $0x3c] sm:$0xf]
          %v963 = vld [vmem:[%s1 + $0x40] sm:$0xf]
          %v964 = vld [vmem:[%s1 + $0x44] sm:$0xf]
          %v965 = vld [vmem:[%s1 + $0x48] sm:$0xf]
          %v966 = vld [vmem:[%s1 + $0x4c] sm:$0xf]
          %v967 = vld [vmem:[%s1 + $0x50] sm:$0xf]
          %v968 = vld [vmem:[%s1 + $0x54] sm:$0xf]
          %v969 = vld [vmem:[%s1 + $0x58] sm:$0xf]
          %v970 = vld [vmem:[%s1 + $0x5c] sm:$0xf]
          %v971 = vld [vmem:[%s1 + $0x60] sm:$0xf]
          %v972 = vld [vmem:[%s1 + $0x64] sm:$0xf]
          %v973 = vld [vmem:[%s1 + $0x68] sm:$0xf]
          %v974 = vld [vmem:[%s1 + $0x6c] sm:$0xf]
          %v975 = vld [vmem:[%s1 + $0x70] sm:$0xf]
          %v976 = vld [vmem:[%s1 + $0x74] sm:$0xf]
          %v977 = vld [vmem:[%s1 + $0x78] sm:$0xf]
          %v978 = vld [vmem:[%s1 + $0x7c] sm:$0xf]
          %v979 = vld [vmem:[%s1 + $0x80] sm:$0xf]
          %v980 = vld [vmem:[%s1 + $0x84] sm:$0xf]
          %v981 = vld [vmem:[%s1 + $0x88] sm:$0xf]
          %v982 = vld [vmem:[%s1 + $0x8c] sm:$0xf]
          %v983 = vld [vmem:[%s1 + $0x90] sm:$0xf]
          %v984 = vld [vmem:[%s1 + $0x94] sm:$0xf]
          %v985 = vld [vmem:[%s1 + $0x98] sm:$0xf]
          %v986 = vld [vmem:[%s1 + $0x9c] sm:$0xf]
          %v987 = vld [vmem:[%s1 + $0xa0] sm:$0xf]
          %v988 = vld [vmem:[%s1 + $0xa4] sm:$0xf]
          %v989 = vld [vmem:[%s1 + $0xa8] sm:$0xf]
          %v990 = vld [vmem:[%s1 + $0xac] sm:$0xf]
          %v991 = vld [vmem:[%s1 + $0xb0] sm:$0xf]
          %v992 = vld [vmem:[%s1 + $0xb4] sm:$0xf]
          %v993 = vld [vmem:[%s1 + $0xb8] sm:$0xf]
          %v994 = vld [vmem:[%s1 + $0xbc] sm:$0xf]
          %v995 = vld [vmem:[%s1 + $0xc0] sm:$0xf]
          %v996 = vld [vmem:[%s1 + $0xc4] sm:$0xf]
          %v997 = vld [vmem:[%s1 + $0xc8] sm:$0xf]
          %v998 = vld [vmem:[%s1 + $0xcc] sm:$0xf]
          %v999 = vld [vmem:[%s1 + $0xd0] sm:$0xf]
          %v1000 = vld [vmem:[%s1 + $0xd4] sm:$0xf]
          %v1001 = vld [vmem:[%s1 + $0xd8] sm:$0xf]
          %v1002 = vld [vmem:[%s1 + $0xdc] sm:$0xf]
          %v1003 = vld [vmem:[%s1 + $0xe0] sm:$0xf]
          %v1004 = vld [vmem:[%s1 + $0xe4] sm:$0xf]
          %v1005 = vld [vmem:[%s1 + $0xe8] sm:$0xf]
          %v1006 = vld [vmem:[%s1 + $0xec] sm:$0xf]
          %v1007 = vld [vmem:[%s1 + $0xf0] sm:$0xf]
          %v1008 = vld [vmem:[%s1 + $0xf4] sm:$0xf]
          %v1009 = vld [vmem:[%s1 + $0xf8] sm:$0xf]
          %v1010 = vld [vmem:[%s1 + $0xfc] sm:$0xf]
          %v1011 = vld [vmem:[%s1 + $0x100] sm:$0xf]
          %v1012 = vld [vmem:[%s1 + $0x104] sm:$0xf]
          %v1013 = vld [vmem:[%s1 + $0x108] sm:$0xf]
          %v1014 = vld [vmem:[%s1 + $0x10c] sm:$0xf]
          %v1015 = vld [vmem:[%s1 + $0x110] sm:$0xf]
          %v1016 = vld [vmem:[%s1 + $0x114] sm:$0xf]
          %v1017 = vld [vmem:[%s1 + $0x118] sm:$0xf]
          %v1018 = vld [vmem:[%s1 + $0x11c] sm:$0xf]
          %v1019 = vld [vmem:[%s1 + $0x120] sm:$0xf]
          %v1020 = vld [vmem:[%s1 + $0x124] sm:$0xf]
          %v1021 = vld [vmem:[%s1 + $0x128] sm:$0xf]
          %v1022 = vld [vmem:[%s1 + $0x12c] sm:$0xf]
          %v1023 = vld [vmem:[%s1 + $0x130] sm:$0xf]
          %v1024 = vld [vmem:[%s1 + $0x134] sm:$0xf]
          %v1025 = vld [vmem:[%s1 + $0x138] sm:$0xf]
          %v1026 = vld [vmem:[%s1 + $0x13c] sm:$0xf]
          %v1027 = vld [vmem:[%s1 + $0x140] sm:$0xf]
          %v1028 = vld [vmem:[%s1 + $0x144] sm:$0xf]
          %v1029 = vld [vmem:[%s1 + $0x148] sm:$0xf]
          %v1030 = vld [vmem:[%s1 + $0x14c] sm:$0xf]
          %v1031 = vld [vmem:[%s1 + $0x150] sm:$0xf]
          %v1032 = vld [vmem:[%s1 + $0x154] sm:$0xf]
          %v1033 = vld [vmem:[%s1 + $0x158] sm:$0xf]
          %v1034 = vld [vmem:[%s1 + $0x15c] sm:$0xf]
          %v1035 = vld [vmem:[%s1 + $0x160] sm:$0xf]
          %v1036 = vld [vmem:[%s1 + $0x164] sm:$0xf]
          %v1037 = vld [vmem:[%s1 + $0x168] sm:$0xf]
          %v1038 = vld [vmem:[%s1 + $0x16c] sm:$0xf]
          %v1039 = vld [vmem:[%s1 + $0x170] sm:$0xf]
          %v1040 = vld [vmem:[%s1 + $0x174] sm:$0xf]
          %v1041 = vld [vmem:[%s1 + $0x178] sm:$0xf]
          %v1042 = vld [vmem:[%s1 + $0x17c] sm:$0xf]
          %v1046 = vunpack.c.l.b16 %v944
          %v1047 = vunpack.c.h.b16 %v944
          %v1048 = vunpack.c.l.b16 %v945
          %v1049 = vunpack.c.h.b16 %v945
          %v1050 = vunpack.c.l.b16 %v946
          %v1051 = vunpack.c.h.b16 %v946
          %v1052 = vpack.c.b16 %v1046, %v1046
          %v1053 = vpack.c.b16 %v1047, %v1047
          %v1054 = vpack.c.b16 %v1048, %v1048
          %v1055 = vpack.c.b16 %v1049, %v1049
          %v1056 = vpack.c.b16 %v1050, %v1050
          %v1057 = vpack.c.b16 %v1051, %v1051
          %v1160 = vunpack.c.l.b16 %v947
          %v1161 = vunpack.c.l.b16 %v948
          %v1162 = vunpack.c.l.b16 %v949
          %v1163 = vunpack.c.l.b16 %v950
          %v1164 = vunpack.c.l.b16 %v951
          %v1165 = vunpack.c.l.b16 %v952
          %v1166 = vunpack.c.l.b16 %v953
          %v1167 = vunpack.c.l.b16 %v954
          %v1168 = vunpack.c.l.b16 %v955
          %v1169 = vunpack.c.l.b16 %v956
          %v1170 = vunpack.c.l.b16 %v957
          %v1171 = vunpack.c.l.b16 %v958
          %v1172 = vunpack.c.l.b16 %v959
          %v1173 = vunpack.c.l.b16 %v960
          %v1174 = vunpack.c.l.b16 %v961
          %v1175 = vunpack.c.l.b16 %v962
          %v1176 = vunpack.c.l.b16 %v963
          %v1177 = vunpack.c.l.b16 %v964
          %v1178 = vunpack.c.l.b16 %v965
          %v1179 = vunpack.c.l.b16 %v966
          %v1180 = vunpack.c.l.b16 %v967
          %v1181 = vunpack.c.l.b16 %v968
          %v1182 = vunpack.c.l.b16 %v969
          %v1183 = vunpack.c.l.b16 %v970
          %v1184 = vunpack.c.l.b16 %v971
          %v1185 = vunpack.c.l.b16 %v972
          %v1186 = vunpack.c.l.b16 %v973
          %v1187 = vunpack.c.l.b16 %v974
          %v1188 = vunpack.c.l.b16 %v975
          %v1189 = vunpack.c.l.b16 %v976
          %v1190 = vunpack.c.l.b16 %v977
          %v1191 = vunpack.c.l.b16 %v978
          %v1192 = vunpack.c.l.b16 %v979
          %v1193 = vunpack.c.l.b16 %v980
          %v1194 = vunpack.c.l.b16 %v981
          %v1195 = vunpack.c.l.b16 %v982
          %v1196 = vunpack.c.l.b16 %v983
          %v1197 = vunpack.c.l.b16 %v984
          %v1198 = vunpack.c.l.b16 %v985
          %v1199 = vunpack.c.l.b16 %v986
          %v1200 = vunpack.c.l.b16 %v987
          %v1201 = vunpack.c.l.b16 %v988
          %v1202 = vunpack.c.l.b16 %v989
          %v1203 = vunpack.c.l.b16 %v990
          %v1204 = vunpack.c.l.b16 %v991
          %v1205 = vunpack.c.l.b16 %v992
          %v1206 = vunpack.c.l.b16 %v993
          %v1207 = vunpack.c.l.b16 %v994
          %v1208 = vunpack.c.l.b16 %v995
          %v1209 = vunpack.c.l.b16 %v996
          %v1210 = vunpack.c.l.b16 %v997
          %v1211 = vunpack.c.l.b16 %v998
          %v1212 = vunpack.c.l.b16 %v999
          %v1213 = vunpack.c.l.b16 %v1000
          %v1214 = vunpack.c.l.b16 %v1001
          %v1215 = vunpack.c.l.b16 %v1002
          %v1216 = vunpack.c.l.b16 %v1003
          %v1217 = vunpack.c.l.b16 %v1004
          %v1218 = vunpack.c.l.b16 %v1005
          %v1219 = vunpack.c.l.b16 %v1006
          %v1220 = vunpack.c.l.b16 %v1007
          %v1221 = vunpack.c.l.b16 %v1008
          %v1222 = vunpack.c.l.b16 %v1009
          %v1223 = vunpack.c.l.b16 %v1010
          %v1224 = vunpack.c.l.b16 %v1011
          %v1225 = vunpack.c.l.b16 %v1012
          %v1226 = vunpack.c.l.b16 %v1013
          %v1227 = vunpack.c.l.b16 %v1014
          %v1228 = vunpack.c.l.b16 %v1015
          %v1229 = vunpack.c.l.b16 %v1016
          %v1230 = vunpack.c.l.b16 %v1017
          %v1231 = vunpack.c.l.b16 %v1018
          %v1232 = vunpack.c.l.b16 %v1019
          %v1233 = vunpack.c.l.b16 %v1020
          %v1234 = vunpack.c.l.b16 %v1021
          %v1235 = vunpack.c.l.b16 %v1022
          %v1236 = vunpack.c.l.b16 %v1023
          %v1237 = vunpack.c.l.b16 %v1024
          %v1238 = vunpack.c.l.b16 %v1025
          %v1239 = vunpack.c.l.b16 %v1026
          %v1240 = vunpack.c.l.b16 %v1027
          %v1241 = vunpack.c.l.b16 %v1028
          %v1242 = vunpack.c.l.b16 %v1029
          %v1243 = vunpack.c.l.b16 %v1030
          %v1244 = vunpack.c.l.b16 %v1031
          %v1245 = vunpack.c.l.b16 %v1032
          %v1246 = vunpack.c.l.b16 %v1033
          %v1247 = vunpack.c.l.b16 %v1034
          %v1248 = vunpack.c.l.b16 %v1035
          %v1249 = vunpack.c.l.b16 %v1036
          %v1250 = vunpack.c.l.b16 %v1037
          %v1251 = vunpack.c.l.b16 %v1038
          %v1252 = vunpack.c.l.b16 %v1039
          %v1253 = vunpack.c.l.b16 %v1040
          %v1254 = vunpack.c.l.b16 %v1041
          %v1255 = vunpack.c.l.b16 %v1042
          %v1256 = vpack.c.b16 %v1161, %v1160
          %v1257 = vpack.c.b16 %v1163, %v1162
          %v1258 = vpack.c.b16 %v1165, %v1164
          %v1259 = vpack.c.b16 %v1167, %v1166
          %v1260 = vpack.c.b16 %v1169, %v1168
          %v1261 = vpack.c.b16 %v1171, %v1170
          %v1262 = vpack.c.b16 %v1173, %v1172
          %v1263 = vpack.c.b16 %v1175, %v1174
          %v1264 = vpack.c.b16 %v1177, %v1176
          %v1265 = vpack.c.b16 %v1179, %v1178
          %v1266 = vpack.c.b16 %v1181, %v1180
          %v1267 = vpack.c.b16 %v1183, %v1182
          %v1268 = vpack.c.b16 %v1185, %v1184
          %v1269 = vpack.c.b16 %v1187, %v1186
          %v1270 = vpack.c.b16 %v1189, %v1188
          %v1271 = vpack.c.b16 %v1191, %v1190
          %v1272 = vpack.c.b16 %v1193, %v1192
          %v1273 = vpack.c.b16 %v1195, %v1194
          %v1274 = vpack.c.b16 %v1197, %v1196
          %v1275 = vpack.c.b16 %v1199, %v1198
          %v1276 = vpack.c.b16 %v1201, %v1200
          %v1277 = vpack.c.b16 %v1203, %v1202
          %v1278 = vpack.c.b16 %v1205, %v1204
          %v1279 = vpack.c.b16 %v1207, %v1206
          %v1280 = vpack.c.b16 %v1209, %v1208
          %v1281 = vpack.c.b16 %v1211, %v1210
          %v1282 = vpack.c.b16 %v1213, %v1212
          %v1283 = vpack.c.b16 %v1215, %v1214
          %v1284 = vpack.c.b16 %v1217, %v1216
          %v1285 = vpack.c.b16 %v1219, %v1218
          %v1286 = vpack.c.b16 %v1221, %v1220
          %v1287 = vpack.c.b16 %v1223, %v1222
          %v1288 = vpack.c.b16 %v1225, %v1224
          %v1289 = vpack.c.b16 %v1227, %v1226
          %v1290 = vpack.c.b16 %v1229, %v1228
          %v1291 = vpack.c.b16 %v1231, %v1230
          %v1292 = vpack.c.b16 %v1233, %v1232
          %v1293 = vpack.c.b16 %v1235, %v1234
          %v1294 = vpack.c.b16 %v1237, %v1236
          %v1295 = vpack.c.b16 %v1239, %v1238
          %v1296 = vpack.c.b16 %v1241, %v1240
          %v1297 = vpack.c.b16 %v1243, %v1242
          %v1298 = vpack.c.b16 %v1245, %v1244
          %v1299 = vpack.c.b16 %v1247, %v1246
          %v1300 = vpack.c.b16 %v1249, %v1248
          %v1301 = vpack.c.b16 %v1251, %v1250
          %v1302 = vpack.c.b16 %v1253, %v1252
          %v1303 = vpack.c.b16 %v1255, %v1254
          %1352 = vmatprep.subr.bf16.mxu0 0
          %1353 = vmatpush1.bf16.msra.mxu0 %v1263
          %1354 = vmatprep.subr.bf16.mxu0 0
          %1355 = vmatpush1.bf16.msra.mxu0 %v1262
          %1356 = vmatprep.subr.bf16.mxu0 0
          %1357 = vmatpush1.bf16.msra.mxu0 %v1261
          %1358 = vmatprep.subr.bf16.mxu0 0
          %1359 = vmatpush1.bf16.msra.mxu0 %v1260
          %1360 = vmatprep.subr.bf16.mxu0 0
          %1361 = vmatpush1.bf16.msra.mxu0 %v1259
          %1362 = vmatprep.subr.bf16.mxu0 0
          %1363 = vmatpush1.bf16.msra.mxu0 %v1258
          %1364 = vmatprep.subr.bf16.mxu0 0
          %1365 = vmatpush1.bf16.msra.mxu0 %v1257
          %1366 = vmatprep.subr.bf16.mxu0 0
          %1367 = vmatpush1.bf16.msra.mxu0 %v1256
          %1368 = vmatprep.subr.bf16.mxu0 0
          %1369 = vmatpush2.bf16.msra.mxu0 %v1271
          %1370 = vmatprep.subr.bf16.mxu0 0
          %1371 = vmatpush2.bf16.msra.mxu0 %v1270
          %1372 = vmatprep.subr.bf16.mxu0 0
          %1373 = vmatpush2.bf16.msra.mxu0 %v1269
          %1374 = vmatprep.subr.bf16.mxu0 0
          %1375 = vmatpush2.bf16.msra.mxu0 %v1268
          %1376 = vmatprep.subr.bf16.mxu0 0
          %1377 = vmatpush2.bf16.msra.mxu0 %v1267
          %1378 = vmatprep.subr.bf16.mxu0 0
          %1379 = vmatpush2.bf16.msra.mxu0 %v1266
          %1380 = vmatprep.subr.bf16.mxu0 0
          %1381 = vmatpush2.bf16.msra.mxu0 %v1265
          %1382 = vmatprep.subr.bf16.mxu0 0
          %1383 = vmatpush2.bf16.msra.mxu0 %v1264
          %1384 = vmatprep.mubr.bf16.mxu0 %v1053
          %1385 = vmatmul.mubr.bf16.gmra.mxu0 %v1052
          %v1386 = vpop.f32.mrf.mxu0
          %v1387 = vadd.f32 0.0, %v1386
          %v1388 = vpop.f32.mrf.mxu0
          %v1389 = vpop.f32.mrf.mxu0
          %v1390 = vpop.f32.mrf.mxu0
          %1391 = vdwg.mxu0
          %1392 = vmatprep.subr.bf16.mxu0 0
          %1393 = vmatpush1.bf16.msra.mxu0 %v1279
          %1394 = vmatprep.subr.bf16.mxu0 0
          %1395 = vmatpush1.bf16.msra.mxu0 %v1278
          %1396 = vmatprep.subr.bf16.mxu0 0
          %1397 = vmatpush1.bf16.msra.mxu0 %v1277
          %1398 = vmatprep.subr.bf16.mxu0 0
          %1399 = vmatpush1.bf16.msra.mxu0 %v1276
          %1400 = vmatprep.subr.bf16.mxu0 0
          %1401 = vmatpush1.bf16.msra.mxu0 %v1275
          %1402 = vmatprep.subr.bf16.mxu0 0
          %1403 = vmatpush1.bf16.msra.mxu0 %v1274
          %1404 = vmatprep.subr.bf16.mxu0 0
          %1405 = vmatpush1.bf16.msra.mxu0 %v1273
          %1406 = vmatprep.subr.bf16.mxu0 0
          %1407 = vmatpush1.bf16.msra.mxu0 %v1272
          %1408 = vmatprep.subr.bf16.mxu0 0
          %1409 = vmatpush2.bf16.msra.mxu0 %v1287
          %1410 = vmatprep.subr.bf16.mxu0 0
          %1411 = vmatpush2.bf16.msra.mxu0 %v1286
          %1412 = vmatprep.subr.bf16.mxu0 0
          %1413 = vmatpush2.bf16.msra.mxu0 %v1285
          %1414 = vmatprep.subr.bf16.mxu0 0
          %1415 = vmatpush2.bf16.msra.mxu0 %v1284
          %1416 = vmatprep.subr.bf16.mxu0 0
          %1417 = vmatpush2.bf16.msra.mxu0 %v1283
          %1418 = vmatprep.subr.bf16.mxu0 0
          %1419 = vmatpush2.bf16.msra.mxu0 %v1282
          %1420 = vmatprep.subr.bf16.mxu0 0
          %1421 = vmatpush2.bf16.msra.mxu0 %v1281
          %1422 = vmatprep.subr.bf16.mxu0 0
          %1423 = vmatpush2.bf16.msra.mxu0 %v1280
          %1424 = vmatprep.mubr.bf16.mxu0 %v1055
          %1425 = vmatmul.mubr.bf16.gmra.mxu0 %v1054
          %v1426 = vpop.f32.mrf.mxu0
          %v1427 = vadd.f32 %v1387, %v1426
          %v1428 = vpop.f32.mrf.mxu0
          %v1429 = vpop.f32.mrf.mxu0
          %v1430 = vpop.f32.mrf.mxu0
          %1431 = vdwg.mxu0
          %1432 = vmatprep.subr.bf16.mxu0 0
          %1433 = vmatpush1.bf16.msra.mxu0 %v1295
          %1434 = vmatprep.subr.bf16.mxu0 0
          %1435 = vmatpush1.bf16.msra.mxu0 %v1294
          %1436 = vmatprep.subr.bf16.mxu0 0
          %1437 = vmatpush1.bf16.msra.mxu0 %v1293
          %1438 = vmatprep.subr.bf16.mxu0 0
          %1439 = vmatpush1.bf16.msra.mxu0 %v1292
          %1440 = vmatprep.subr.bf16.mxu0 0
          %1441 = vmatpush1.bf16.msra.mxu0 %v1291
          %1442 = vmatprep.subr.bf16.mxu0 0
          %1443 = vmatpush1.bf16.msra.mxu0 %v1290
          %1444 = vmatprep.subr.bf16.mxu0 0
          %1445 = vmatpush1.bf16.msra.mxu0 %v1289
          %1446 = vmatprep.subr.bf16.mxu0 0
          %1447 = vmatpush1.bf16.msra.mxu0 %v1288
          %1448 = vmatprep.subr.bf16.mxu0 0
          %1449 = vmatpush2.bf16.msra.mxu0 %v1303
          %1450 = vmatprep.subr.bf16.mxu0 0
          %1451 = vmatpush2.bf16.msra.mxu0 %v1302
          %1452 = vmatprep.subr.bf16.mxu0 0
          %1453 = vmatpush2.bf16.msra.mxu0 %v1301
          %1454 = vmatprep.subr.bf16.mxu0 0
          %1455 = vmatpush2.bf16.msra.mxu0 %v1300
          %1456 = vmatprep.subr.bf16.mxu0 0
          %1457 = vmatpush2.bf16.msra.mxu0 %v1299
          %1458 = vmatprep.subr.bf16.mxu0 0
          %1459 = vmatpush2.bf16.msra.mxu0 %v1298
          %1460 = vmatprep.subr.bf16.mxu0 0
          %1461 = vmatpush2.bf16.msra.mxu0 %v1297
          %1462 = vmatprep.subr.bf16.mxu0 0
          %1463 = vmatpush2.bf16.msra.mxu0 %v1296
          %1464 = vmatprep.mubr.bf16.mxu0 %v1057
          %1465 = vmatmul.mubr.bf16.gmra.mxu0 %v1056
          %v1466 = vpop.f32.mrf.mxu0
          %v1467 = vadd.f32 %v1427, %v1466
          %v1468 = vpop.f32.mrf.mxu0
          %v1469 = vpop.f32.mrf.mxu0
          %v1470 = vpop.f32.mrf.mxu0
          %1471 = vdwg.mxu0
          %v1472 = vld [vmem:[%s2] sm:$0xff]
          %v1473 = vadd.f32 %v1472, %v1467
          %1474 = vst [vmem:[#allocation2] sm:$0xff] %v1473
        $region132: #{vit_forward.1} parent=95 // pred_fallthru
          _
        %v1475 = vld [vmem:[#allocation2] sm:$0xff]
        %v1476 = vlaneseq
        %v1477 = vand.u32 %v1476, 127
        %vm1478 = vcmp.lt.s32.totalorder %v1477, 5
        %v1479 = vld [vmem:[%s909] sm:$0x1]
        %v1480 = vld [vmem:[%s912] sm:$0x1]
        %1481 = vadd.xlane.f32.xlu0 %v1475
        %v1482 = vpop.xlane.xlu0 %1481
        %v1483 = vrcp.pop 128.0
        %v1484 = vmul.f32 %v1482, %v1483
        %v1485 = vsub.f32 %v1475, %v1484
        %v1486 = vmul.f32 %v1485, %v1485
        %1487 = vadd.xlane.f32.xlu0 %v1486
        %v1488 = vpop.xlane.xlu0 %1487
        %v1489 = vmul.f32 %v1488, %v1483
        %v1490 = vadd.f32 %v1489, 1e-06
        %v1491 = vrsqrt.pop %v1490
        %v1492 = vmul.f32 %v1485, %v1491
        %v1494 = vlaneseq
        %v1495 = vshrl.u32 %v1494, 7
        %v1496 = vsub.s32 0, %v1495
        %v1497 = vrot.slane %v1479, %v1496
        %v1499 = vmul.f32 %v1492, %v1497
        %v1501 = vlaneseq
        %v1502 = vshrl.u32 %v1501, 7
        %v1503 = vsub.s32 0, %v1502
        %v1504 = vrot.slane %v1480, %v1503
        %v1506 = vadd.f32 %v1499, %v1504
        %v1507 = vpack.c.bf16 %v1506, %v1506
        %v1508 = vld [vmem:[%s917] sm:$0xff]
        %v1509 = vld [vmem:[%s917 + $0x8] sm:$0xf]
        %v1510 = vld [vmem:[%s917 + $0xc] sm:$0xff]
        %v1511 = vld [vmem:[%s917 + $0x14] sm:$0xf]
        %v1512 = vld [vmem:[%s917 + $0x18] sm:$0xff]
        %v1513 = vld [vmem:[%s917 + $0x20] sm:$0xf]
        %v1514 = vld [vmem:[%s917 + $0x24] sm:$0xff]
        %v1515 = vld [vmem:[%s917 + $0x2c] sm:$0xf]
        %v1516 = vld [vmem:[%s917 + $0x30] sm:$0xff]
        %v1517 = vld [vmem:[%s917 + $0x38] sm:$0xf]
        %v1518 = vld [vmem:[%s917 + $0x3c] sm:$0xff]
        %v1519 = vld [vmem:[%s917 + $0x44] sm:$0xf]
        %v1520 = vld [vmem:[%s917 + $0x48] sm:$0xff]
        %v1521 = vld [vmem:[%s917 + $0x50] sm:$0xf]
        %v1522 = vld [vmem:[%s917 + $0x54] sm:$0xff]
        %v1523 = vld [vmem:[%s917 + $0x5c] sm:$0xf]
        %v1524 = vld [vmem:[%s917 + $0x60] sm:$0xff]
        %v1525 = vld [vmem:[%s917 + $0x68] sm:$0xf]
        %v1526 = vld [vmem:[%s917 + $0x6c] sm:$0xff]
        %v1527 = vld [vmem:[%s917 + $0x74] sm:$0xf]
        %v1528 = vld [vmem:[%s917 + $0x78] sm:$0xff]
        %v1529 = vld [vmem:[%s917 + $0x80] sm:$0xf]
        %v1530 = vld [vmem:[%s917 + $0x84] sm:$0xff]
        %v1531 = vld [vmem:[%s917 + $0x8c] sm:$0xf]
        %v1532 = vld [vmem:[%s917 + $0x90] sm:$0xff]
        %v1533 = vld [vmem:[%s917 + $0x98] sm:$0xf]
        %v1534 = vld [vmem:[%s917 + $0x9c] sm:$0xff]
        %v1535 = vld [vmem:[%s917 + $0xa4] sm:$0xf]
        %v1536 = vld [vmem:[%s917 + $0xa8] sm:$0xff]
        %v1537 = vld [vmem:[%s917 + $0xb0] sm:$0xf]
        %v1538 = vld [vmem:[%s917 + $0xb4] sm:$0xff]
        %v1539 = vld [vmem:[%s917 + $0xbc] sm:$0xf]
        %v1540 = vld [vmem:[%s921] sm:$0x7]
        %v1542 = vlaneseq
        %v1543 = vshrl.u32 %v1542, 7
        %v1544 = vsub.s32 0, %v1543
        %v1545 = vrot.slane %v1540, %v1544
        %v1546 = vlaneseq
        %v1547 = vshrl.u32 %v1546, 7
        %v1548 = vsub.s32 1, %v1547
        %v1549 = vrot.slane %v1540, %v1548
        %v1550 = vlaneseq
        %v1551 = vshrl.u32 %v1550, 7
        %v1552 = vsub.s32 2, %v1551
        %v1553 = vrot.slane %v1540, %v1552
        %v1589 = vunpack.c.l.b16 %v1508
        %v1590 = vunpack.c.h.b16 %v1508
        %v1591 = vunpack.c.l.b16 %v1509
        %v1592 = vunpack.c.l.b16 %v1510
        %v1593 = vunpack.c.h.b16 %v1510
        %v1594 = vunpack.c.l.b16 %v1511
        %v1595 = vunpack.c.l.b16 %v1512
        %v1596 = vunpack.c.h.b16 %v1512
        %v1597 = vunpack.c.l.b16 %v1513
        %v1598 = vunpack.c.l.b16 %v1514
        %v1599 = vunpack.c.h.b16 %v1514
        %v1600 = vunpack.c.l.b16 %v1515
        %v1601 = vunpack.c.l.b16 %v1516
        %v1602 = vunpack.c.h.b16 %v1516
        %v1603 = vunpack.c.l.b16 %v1517
        %v1604 = vunpack.c.l.b16 %v1518
        %v1605 = vunpack.c.h.b16 %v1518
        %v1606 = vunpack.c.l.b16 %v1519
        %v1607 = vunpack.c.l.b16 %v1520
        %v1608 = vunpack.c.h.b16 %v1520
        %v1609 = vunpack.c.l.b16 %v1521
        %v1610 = vunpack.c.l.b16 %v1522
        %v1611 = vunpack.c.h.b16 %v1522
        %v1612 = vunpack.c.l.b16 %v1523
        %v1613 = vunpack.c.l.b16 %v1524
        %v1614 = vunpack.c.h.b16 %v1524
        %v1615 = vunpack.c.l.b16 %v1525
        %v1616 = vunpack.c.l.b16 %v1526
        %v1617 = vunpack.c.h.b16 %v1526
        %v1618 = vunpack.c.l.b16 %v1527
        %v1619 = vunpack.c.l.b16 %v1528
        %v1620 = vunpack.c.h.b16 %v1528
        %v1621 = vunpack.c.l.b16 %v1529
        %v1622 = vunpack.c.l.b16 %v1530
        %v1623 = vunpack.c.h.b16 %v1530
        %v1624 = vunpack.c.l.b16 %v1531
        %v1625 = vunpack.c.l.b16 %v1532
        %v1626 = vunpack.c.h.b16 %v1532
        %v1627 = vunpack.c.l.b16 %v1533
        %v1628 = vunpack.c.l.b16 %v1534
        %v1629 = vunpack.c.h.b16 %v1534
        %v1630 = vunpack.c.l.b16 %v1535
        %v1631 = vunpack.c.l.b16 %v1536
        %v1632 = vunpack.c.h.b16 %v1536
        %v1633 = vunpack.c.l.b16 %v1537
        %v1634 = vunpack.c.l.b16 %v1538
        %v1635 = vunpack.c.h.b16 %v1538
        %v1636 = vunpack.c.l.b16 %v1539
        %v1637 = vpack.c.b16 %v1592, %v1589
        %v1638 = vpack.c.b16 %v1593, %v1590
        %v1639 = vpack.c.b16 %v1594, %v1591
        %v1640 = vpack.c.b16 %v1598, %v1595
        %v1641 = vpack.c.b16 %v1599, %v1596
        %v1642 = vpack.c.b16 %v1600, %v1597
        %v1643 = vpack.c.b16 %v1604, %v1601
        %v1644 = vpack.c.b16 %v1605, %v1602
        %v1645 = vpack.c.b16 %v1606, %v1603
        %v1646 = vpack.c.b16 %v1610, %v1607
        %v1647 = vpack.c.b16 %v1611, %v1608
        %v1648 = vpack.c.b16 %v1612, %v1609
        %v1649 = vpack.c.b16 %v1616, %v1613
        %v1650 = vpack.c.b16 %v1617, %v1614
        %v1651 = vpack.c.b16 %v1618, %v1615
        %v1652 = vpack.c.b16 %v1622, %v1619
        %v1653 = vpack.c.b16 %v1623, %v1620
        %v1654 = vpack.c.b16 %v1624, %v1621
        %v1655 = vpack.c.b16 %v1628, %v1625
        %v1656 = vpack.c.b16 %v1629, %v1626
        %v1657 = vpack.c.b16 %v1630, %v1627
        %v1658 = vpack.c.b16 %v1634, %v1631
        %v1659 = vpack.c.b16 %v1635, %v1632
        %v1660 = vpack.c.b16 %v1636, %v1633
        %1685 = vmatprep.subr.bf16.mxu0 %v1659
        %1686 = vmatpush1.bf16.msra.mxu0 %v1658
        %1687 = vmatprep.subr.bf16.mxu0 %v1656
        %1688 = vmatpush1.bf16.msra.mxu0 %v1655
        %1689 = vmatprep.subr.bf16.mxu0 %v1653
        %1690 = vmatpush1.bf16.msra.mxu0 %v1652
        %1691 = vmatprep.subr.bf16.mxu0 %v1650
        %1692 = vmatpush1.bf16.msra.mxu0 %v1649
        %1693 = vmatprep.subr.bf16.mxu0 %v1647
        %1694 = vmatpush1.bf16.msra.mxu0 %v1646
        %1695 = vmatprep.subr.bf16.mxu0 %v1644
        %1696 = vmatpush1.bf16.msra.mxu0 %v1643
        %1697 = vmatprep.subr.bf16.mxu0 %v1641
        %1698 = vmatpush1.bf16.msra.mxu0 %v1640
        %1699 = vmatprep.subr.bf16.mxu0 %v1638
        %1700 = vmatpush1.bf16.msra.mxu0 %v1637
        %1701 = vmatprep.subr.bf16.mxu0 0
        %1702 = vmatpush2.bf16.msra.mxu0 0
        %1703 = vmatprep.subr.bf16.mxu0 0
        %1704 = vmatpush2.bf16.msra.mxu0 0
        %1705 = vmatprep.subr.bf16.mxu0 0
        %1706 = vmatpush2.bf16.msra.mxu0 0
        %1707 = vmatprep.subr.bf16.mxu0 0
        %1708 = vmatpush2.bf16.msra.mxu0 0
        %1709 = vmatprep.subr.bf16.mxu0 0
        %1710 = vmatpush2.bf16.msra.mxu0 0
        %1711 = vmatprep.subr.bf16.mxu0 0
        %1712 = vmatpush2.bf16.msra.mxu0 0
        %1713 = vmatprep.subr.bf16.mxu0 0
        %1714 = vmatpush2.bf16.msra.mxu0 0
        %1715 = vmatprep.subr.bf16.mxu0 0
        %1716 = vmatpush2.bf16.msra.mxu0 0
        %1717 = vmatprep.mubr.bf16.mxu0 0
        %1718 = vmatmul.mubr.bf16.gmra.mxu0 %v1507
        %v1719 = vpop.f32.mrf.mxu0
        %v1720 = vadd.f32 %v1545, %v1719
        %v1721 = vpop.f32.mrf.mxu0
        %v1722 = vadd.f32 %v1549, %v1721
        %v1723 = vpop.f32.mrf.mxu0
        %v1724 = vpop.f32.mrf.mxu0
        %1725 = vdwg.mxu0
        %1726 = vmatprep.subr.bf16.mxu0 0
        %1727 = vmatpush1.bf16.msra.mxu0 %v1660
        %1728 = vmatprep.subr.bf16.mxu0 0
        %1729 = vmatpush1.bf16.msra.mxu0 %v1657
        %1730 = vmatprep.subr.bf16.mxu0 0
        %1731 = vmatpush1.bf16.msra.mxu0 %v1654
        %1732 = vmatprep.subr.bf16.mxu0 0
        %1733 = vmatpush1.bf16.msra.mxu0 %v1651
        %1734 = vmatprep.subr.bf16.mxu0 0
        %1735 = vmatpush1.bf16.msra.mxu0 %v1648
        %1736 = vmatprep.subr.bf16.mxu0 0
        %1737 = vmatpush1.bf16.msra.mxu0 %v1645
        %1738 = vmatprep.subr.bf16.mxu0 0
        %1739 = vmatpush1.bf16.msra.mxu0 %v1642
        %1740 = vmatprep.subr.bf16.mxu0 0
        %1741 = vmatpush1.bf16.msra.mxu0 %v1639
        %1742 = vmatprep.subr.bf16.mxu0 0
        %1743 = vmatpush2.bf16.msra.mxu0 0
        %1744 = vmatprep.subr.bf16.mxu0 0
        %1745 = vmatpush2.bf16.msra.mxu0 0
        %1746 = vmatprep.subr.bf16.mxu0 0
        %1747 = vmatpush2.bf16.msra.mxu0 0
        %1748 = vmatprep.subr.bf16.mxu0 0
        %1749 = vmatpush2.bf16.msra.mxu0 0
        %1750 = vmatprep.subr.bf16.mxu0 0
        %1751 = vmatpush2.bf16.msra.mxu0 0
        %1752 = vmatprep.subr.bf16.mxu0 0
        %1753 = vmatpush2.bf16.msra.mxu0 0
        %1754 = vmatprep.subr.bf16.mxu0 0
        %1755 = vmatpush2.bf16.msra.mxu0 0
        %1756 = vmatprep.subr.bf16.mxu0 0
        %1757 = vmatpush2.bf16.msra.mxu0 0
        %1758 = vmatprep.mubr.bf16.mxu0 0
        %1759 = vmatmul.mubr.bf16.gmra.mxu0 %v1507
        %v1760 = vpop.f32.mrf.mxu0
        %v1761 = vadd.f32 %v1553, %v1760
        %v1762 = vpop.f32.mrf.mxu0
        %v1763 = vpop.f32.mrf.mxu0
        %v1764 = vpop.f32.mrf.mxu0
        %1765 = vdwg.mxu0
        %v1766 = vmul.f32 %v1720, 0.17677669
        %v1767 = vpack.c.bf16 %v1766, %v1766
        %v1768 = vpack.c.bf16 %v1722, %v1722
        %vm1769 = vcmask 261120
        %v1771 = vsel %vm1769, %v1767, 0
        %v1774 = vsel %vm1769, %v1768, 0
        %1776 = vmatprep.subr.bf16.mxu0 0
        %1777 = vmatpush1.bf16.xpose.msra.mxu0 0
        %1778 = vmatprep.subr.bf16.mxu0 0
        %1779 = vmatpush1.bf16.xpose.msra.mxu0 0
        %1780 = vmatprep.subr.bf16.mxu0 0
        %1781 = vmatpush1.bf16.xpose.msra.mxu0 0
        %1782 = vmatprep.subr.bf16.mxu0 0
        %1783 = vmatpush1.bf16.xpose.msra.mxu0 0
        %1784 = vmatprep.subr.bf16.mxu0 0
        %1785 = vmatpush1.bf16.xpose.msra.mxu0 0
        %1786 = vmatprep.subr.bf16.mxu0 0
        %1787 = vmatpush1.bf16.xpose.msra.mxu0 0
        %1788 = vmatprep.subr.bf16.mxu0 0
        %1789 = vmatpush1.bf16.xpose.msra.mxu0 0
        %1790 = vmatprep.subr.bf16.mxu0 0
        %1791 = vmatpush1.bf16.xpose.msra.mxu0 %v1774
        %1792 = vmatprep.subr.bf16.mxu0 0
        %1793 = vmatpush2.bf16.xpose.msra.mxu0 0
        %1794 = vmatprep.subr.bf16.mxu0 0
        %1795 = vmatpush2.bf16.xpose.msra.mxu0 0
        %1796 = vmatprep.subr.bf16.mxu0 0
        %1797 = vmatpush2.bf16.xpose.msra.mxu0 0
        %1798 = vmatprep.subr.bf16.mxu0 0
        %1799 = vmatpush2.bf16.xpose.msra.mxu0 0
        %1800 = vmatprep.subr.bf16.mxu0 0
        %1801 = vmatpush2.bf16.xpose.msra.mxu0 0
        %1802 = vmatprep.subr.bf16.mxu0 0
        %1803 = vmatpush2.bf16.xpose.msra.mxu0 0
        %1804 = vmatprep.subr.bf16.mxu0 0
        %1805 = vmatpush2.bf16.xpose.msra.mxu0 0
        %1806 = vmatprep.subr.bf16.mxu0 0
        %1807 = vmatpush2.bf16.xpose.msra.mxu0 0
        %1808 = vmatprep.mubr.bf16.mxu0 0
        %1809 = vmatmul.mubr.bf16.gmra.mxu0 %v1771
        %v1810 = vpop.f32.mrf.mxu0
        %v1811 = vadd.f32 0.0, %v1810
        %v1812 = vpop.f32.mrf.mxu0
        %v1813 = vpop.f32.mrf.mxu0
        %v1814 = vpop.f32.mrf.mxu0
        %1815 = vdwg.mxu0
        %v1816 = vsel %vm1478, %v1811, -1e+30
        %vm1817 = vcmask 64512
        %v1818 = vsel %vm1817, %v1816, -inf
        %1819 = vmax.xlane.f32.xlu0 %v1818
        %v1820 = vpop.xlane.xlu0 %1819
        %v1821 = vsub.f32 %v1816, %v1820
        %v1822 = vmul.f32 %v1821, 1.442695
        %v1823 = vpow.pop %v1822
        %v1824 = vsel %vm1817, %v1823, 0.0
        %1825 = vadd.xlane.f32.xlu0 %v1824
        %v1826 = vpop.xlane.xlu0 %1825
        %v1827 = vrcp.pop %v1826
        %v1828 = vmul.f32 %v1823, %v1827
        %v1829 = vpack.c.bf16 %v1828, %v1828
        %v1830 = vpack.c.bf16 %v1761, %v1761
        %v1832 = vsel %vm1817, %v1829, 0
        %vm1834 = vcmask 1043456
        %v1836 = vsel %vm1834, %v1830, 0
        %1838 = vmatprep.subr.bf16.mxu0 0
        %1839 = vmatpush1.bf16.msra.mxu0 0
        %1840 = vmatprep.subr.bf16.mxu0 0
        %1841 = vmatpush1.bf16.msra.mxu0 0
        %1842 = vmatprep.subr.bf16.mxu0 0
        %1843 = vmatpush1.bf16.msra.mxu0 0
        %1844 = vmatprep.subr.bf16.mxu0 0
        %1845 = vmatpush1.bf16.msra.mxu0 0
        %1846 = vmatprep.subr.bf16.mxu0 0
        %1847 = vmatpush1.bf16.msra.mxu0 0
        %1848 = vmatprep.subr.bf16.mxu0 0
        %1849 = vmatpush1.bf16.msra.mxu0 0
        %1850 = vmatprep.subr.bf16.mxu0 0
        %1851 = vmatpush1.bf16.msra.mxu0 0
        %1852 = vmatprep.subr.bf16.mxu0 0
        %1853 = vmatpush1.bf16.msra.mxu0 %v1836
        %1854 = vmatprep.subr.bf16.mxu0 0
        %1855 = vmatpush2.bf16.msra.mxu0 0
        %1856 = vmatprep.subr.bf16.mxu0 0
        %1857 = vmatpush2.bf16.msra.mxu0 0
        %1858 = vmatprep.subr.bf16.mxu0 0
        %1859 = vmatpush2.bf16.msra.mxu0 0
        %1860 = vmatprep.subr.bf16.mxu0 0
        %1861 = vmatpush2.bf16.msra.mxu0 0
        %1862 = vmatprep.subr.bf16.mxu0 0
        %1863 = vmatpush2.bf16.msra.mxu0 0
        %1864 = vmatprep.subr.bf16.mxu0 0
        %1865 = vmatpush2.bf16.msra.mxu0 0
        %1866 = vmatprep.subr.bf16.mxu0 0
        %1867 = vmatpush2.bf16.msra.mxu0 0
        %1868 = vmatprep.subr.bf16.mxu0 0
        %1869 = vmatpush2.bf16.msra.mxu0 0
        %1870 = vmatprep.mubr.bf16.mxu0 0
        %1871 = vmatmul.mubr.bf16.gmra.mxu0 %v1832
        %v1872 = vpop.f32.mrf.mxu0
        %v1873 = vadd.f32 0.0, %v1872
        %v1874 = vpop.f32.mrf.mxu0
        %v1875 = vpop.f32.mrf.mxu0
        %v1876 = vpop.f32.mrf.mxu0
        %1877 = vdwg.mxu0
        %1879 = vrot.lane.b32.xlu0 %v1767, 96
        %v1880 = vpop.permute.xlu0 %1879
        %1882 = vrot.lane.b32.xlu0 %v1768, 96
        %v1883 = vpop.permute.xlu0 %1882
        %v1885 = vsel %vm1769, %v1880, 0
        %v1888 = vsel %vm1769, %v1883, 0
        %1890 = vmatprep.subr.bf16.mxu0 0
        %1891 = vmatpush1.bf16.xpose.msra.mxu0 0
        %1892 = vmatprep.subr.bf16.mxu0 0
        %1893 = vmatpush1.bf16.xpose.msra.mxu0 0
        %1894 = vmatprep.subr.bf16.mxu0 0
        %1895 = vmatpush1.bf16.xpose.msra.mxu0 0
        %1896 = vmatprep.subr.bf16.mxu0 0
        %1897 = vmatpush1.bf16.xpose.msra.mxu0 0
        %1898 = vmatprep.subr.bf16.mxu0 0
        %1899 = vmatpush1.bf16.xpose.msra.mxu0 0
        %1900 = vmatprep.subr.bf16.mxu0 0
        %1901 = vmatpush1.bf16.xpose.msra.mxu0 0
        %1902 = vmatprep.subr.bf16.mxu0 0
        %1903 = vmatpush1.bf16.xpose.msra.mxu0 0
        %1904 = vmatprep.subr.bf16.mxu0 0
        %1905 = vmatpush1.bf16.xpose.msra.mxu0 %v1888
        %1906 = vmatprep.subr.bf16.mxu0 0
        %1907 = vmatpush2.bf16.xpose.msra.mxu0 0
        %1908 = vmatprep.subr.bf16.mxu0 0
        %1909 = vmatpush2.bf16.xpose.msra.mxu0 0
        %1910 = vmatprep.subr.bf16.mxu0 0
        %1911 = vmatpush2.bf16.xpose.msra.mxu0 0
        %1912 = vmatprep.subr.bf16.mxu0 0
        %1913 = vmatpush2.bf16.xpose.msra.mxu0 0
        %1914 = vmatprep.subr.bf16.mxu0 0
        %1915 = vmatpush2.bf16.xpose.msra.mxu0 0
        %1916 = vmatprep.subr.bf16.mxu0 0
        %1917 = vmatpush2.bf16.xpose.msra.mxu0 0
        %1918 = vmatprep.subr.bf16.mxu0 0
        %1919 = vmatpush2.bf16.xpose.msra.mxu0 0
        %1920 = vmatprep.subr.bf16.mxu0 0
        %1921 = vmatpush2.bf16.xpose.msra.mxu0 0
        %1922 = vmatprep.mubr.bf16.mxu0 0
        %1923 = vmatmul.mubr.bf16.gmra.mxu0 %v1885
        %v1924 = vpop.f32.mrf.mxu0
        %v1925 = vadd.f32 0.0, %v1924
        %v1926 = vpop.f32.mrf.mxu0
        %v1927 = vpop.f32.mrf.mxu0
        %v1928 = vpop.f32.mrf.mxu0
        %1929 = vdwg.mxu0
        %v1930 = vsel %vm1478, %v1925, -1e+30
        %v1931 = vsel %vm1817, %v1930, -inf
        %1932 = vmax.xlane.f32.xlu0 %v1931
        %v1933 = vpop.xlane.xlu0 %1932
        %v1934 = vsub.f32 %v1930, %v1933
        %v1935 = vmul.f32 %v1934, 1.442695
        %v1936 = vpow.pop %v1935
        %v1937 = vsel %vm1817, %v1936, 0.0
        %1938 = vadd.xlane.f32.xlu0 %v1937
        %v1939 = vpop.xlane.xlu0 %1938
        %v1940 = vrcp.pop %v1939
        %v1941 = vmul.f32 %v1936, %v1940
        %v1942 = vpack.c.bf16 %v1941, %v1941
        %1944 = vrot.lane.b32.xlu0 %v1830, 96
        %v1945 = vpop.permute.xlu0 %1944
        %v1947 = vsel %vm1817, %v1942, 0
        %v1950 = vsel %vm1834, %v1945, 0
        %1952 = vmatprep.subr.bf16.mxu0 0
        %1953 = vmatpush1.bf16.msra.mxu0 0
        %1954 = vmatprep.subr.bf16.mxu0 0
        %1955 = vmatpush1.bf16.msra.mxu0 0
        %1956 = vmatprep.subr.bf16.mxu0 0
        %1957 = vmatpush1.bf16.msra.mxu0 0
        %1958 = vmatprep.subr.bf16.mxu0 0
        %1959 = vmatpush1.bf16.msra.mxu0 0
        %1960 = vmatprep.subr.bf16.mxu0 0
        %1961 = vmatpush1.bf16.msra.mxu0 0
        %1962 = vmatprep.subr.bf16.mxu0 0
        %1963 = vmatpush1.bf16.msra.mxu0 0
        %1964 = vmatprep.subr.bf16.mxu0 0
        %1965 = vmatpush1.bf16.msra.mxu0 0
        %1966 = vmatprep.subr.bf16.mxu0 0
        %1967 = vmatpush1.bf16.msra.mxu0 %v1950
        %1968 = vmatprep.subr.bf16.mxu0 0
        %1969 = vmatpush2.bf16.msra.mxu0 0
        %1970 = vmatprep.subr.bf16.mxu0 0
        %1971 = vmatpush2.bf16.msra.mxu0 0
        %1972 = vmatprep.subr.bf16.mxu0 0
        %1973 = vmatpush2.bf16.msra.mxu0 0
        %1974 = vmatprep.subr.bf16.mxu0 0
        %1975 = vmatpush2.bf16.msra.mxu0 0
        %1976 = vmatprep.subr.bf16.mxu0 0
        %1977 = vmatpush2.bf16.msra.mxu0 0
        %1978 = vmatprep.subr.bf16.mxu0 0
        %1979 = vmatpush2.bf16.msra.mxu0 0
        %1980 = vmatprep.subr.bf16.mxu0 0
        %1981 = vmatpush2.bf16.msra.mxu0 0
        %1982 = vmatprep.subr.bf16.mxu0 0
        %1983 = vmatpush2.bf16.msra.mxu0 0
        %1984 = vmatprep.mubr.bf16.mxu0 0
        %1985 = vmatmul.mubr.bf16.gmra.mxu0 %v1947
        %v1986 = vpop.f32.mrf.mxu0
        %v1987 = vadd.f32 0.0, %v1986
        %v1988 = vpop.f32.mrf.mxu0
        %v1989 = vpop.f32.mrf.mxu0
        %v1990 = vpop.f32.mrf.mxu0
        %1991 = vdwg.mxu0
        %1992 = vrot.lane.b32.xlu0 %v1767, 64
        %v1993 = vpop.permute.xlu0 %1992
        %1994 = vrot.lane.b32.xlu0 %v1768, 64
        %v1995 = vpop.permute.xlu0 %1994
        %v1997 = vsel %vm1769, %v1993, 0
        %v2000 = vsel %vm1769, %v1995, 0
        %2002 = vmatprep.subr.bf16.mxu0 0
        %2003 = vmatpush1.bf16.xpose.msra.mxu0 0
        %2004 = vmatprep.subr.bf16.mxu0 0
        %2005 = vmatpush1.bf16.xpose.msra.mxu0 0
        %2006 = vmatprep.subr.bf16.mxu0 0
        %2007 = vmatpush1.bf16.xpose.msra.mxu0 0
        %2008 = vmatprep.subr.bf16.mxu0 0
        %2009 = vmatpush1.bf16.xpose.msra.mxu0 0
        %2010 = vmatprep.subr.bf16.mxu0 0
        %2011 = vmatpush1.bf16.xpose.msra.mxu0 0
        %2012 = vmatprep.subr.bf16.mxu0 0
        %2013 = vmatpush1.bf16.xpose.msra.mxu0 0
        %2014 = vmatprep.subr.bf16.mxu0 0
        %2015 = vmatpush1.bf16.xpose.msra.mxu0 0
        %2016 = vmatprep.subr.bf16.mxu0 0
        %2017 = vmatpush1.bf16.xpose.msra.mxu0 %v2000
        %2018 = vmatprep.subr.bf16.mxu0 0
        %2019 = vmatpush2.bf16.xpose.msra.mxu0 0
        %2020 = vmatprep.subr.bf16.mxu0 0
        %2021 = vmatpush2.bf16.xpose.msra.mxu0 0
        %2022 = vmatprep.subr.bf16.mxu0 0
        %2023 = vmatpush2.bf16.xpose.msra.mxu0 0
        %2024 = vmatprep.subr.bf16.mxu0 0
        %2025 = vmatpush2.bf16.xpose.msra.mxu0 0
        %2026 = vmatprep.subr.bf16.mxu0 0
        %2027 = vmatpush2.bf16.xpose.msra.mxu0 0
        %2028 = vmatprep.subr.bf16.mxu0 0
        %2029 = vmatpush2.bf16.xpose.msra.mxu0 0
        %2030 = vmatprep.subr.bf16.mxu0 0
        %2031 = vmatpush2.bf16.xpose.msra.mxu0 0
        %2032 = vmatprep.subr.bf16.mxu0 0
        %2033 = vmatpush2.bf16.xpose.msra.mxu0 0
        %2034 = vmatprep.mubr.bf16.mxu0 0
        %2035 = vmatmul.mubr.bf16.gmra.mxu0 %v1997
        %v2036 = vpop.f32.mrf.mxu0
        %v2037 = vadd.f32 0.0, %v2036
        %v2038 = vpop.f32.mrf.mxu0
        %v2039 = vpop.f32.mrf.mxu0
        %v2040 = vpop.f32.mrf.mxu0
        %2041 = vdwg.mxu0
        %v2042 = vsel %vm1478, %v2037, -1e+30
        %v2043 = vsel %vm1817, %v2042, -inf
        %2044 = vmax.xlane.f32.xlu0 %v2043
        %v2045 = vpop.xlane.xlu0 %2044
        %v2046 = vsub.f32 %v2042, %v2045
        %v2047 = vmul.f32 %v2046, 1.442695
        %v2048 = vpow.pop %v2047
        %v2049 = vsel %vm1817, %v2048, 0.0
        %2050 = vadd.xlane.f32.xlu0 %v2049
        %v2051 = vpop.xlane.xlu0 %2050
        %v2052 = vrcp.pop %v2051
        %v2053 = vmul.f32 %v2048, %v2052
        %v2054 = vpack.c.bf16 %v2053, %v2053
        %2055 = vrot.lane.b32.xlu0 %v1830, 64
        %v2056 = vpop.permute.xlu0 %2055
        %v2058 = vsel %vm1817, %v2054, 0
        %v2061 = vsel %vm1834, %v2056, 0
        %2063 = vmatprep.subr.bf16.mxu0 0
        %2064 = vmatpush1.bf16.msra.mxu0 0
        %2065 = vmatprep.subr.bf16.mxu0 0
        %2066 = vmatpush1.bf16.msra.mxu0 0
        %2067 = vmatprep.subr.bf16.mxu0 0
        %2068 = vmatpush1.bf16.msra.mxu0 0
        %2069 = vmatprep.subr.bf16.mxu0 0
        %2070 = vmatpush1.bf16.msra.mxu0 0
        %2071 = vmatprep.subr.bf16.mxu0 0
        %2072 = vmatpush1.bf16.msra.mxu0 0
        %2073 = vmatprep.subr.bf16.mxu0 0
        %2074 = vmatpush1.bf16.msra.mxu0 0
        %2075 = vmatprep.subr.bf16.mxu0 0
        %2076 = vmatpush1.bf16.msra.mxu0 0
        %2077 = vmatprep.subr.bf16.mxu0 0
        %2078 = vmatpush1.bf16.msra.mxu0 %v2061
        %2079 = vmatprep.subr.bf16.mxu0 0
        %2080 = vmatpush2.bf16.msra.mxu0 0
        %2081 = vmatprep.subr.bf16.mxu0 0
        %2082 = vmatpush2.bf16.msra.mxu0 0
        %2083 = vmatprep.subr.bf16.mxu0 0
        %2084 = vmatpush2.bf16.msra.mxu0 0
        %2085 = vmatprep.subr.bf16.mxu0 0
        %2086 = vmatpush2.bf16.msra.mxu0 0
        %2087 = vmatprep.subr.bf16.mxu0 0
        %2088 = vmatpush2.bf16.msra.mxu0 0
        %2089 = vmatprep.subr.bf16.mxu0 0
        %2090 = vmatpush2.bf16.msra.mxu0 0
        %2091 = vmatprep.subr.bf16.mxu0 0
        %2092 = vmatpush2.bf16.msra.mxu0 0
        %2093 = vmatprep.subr.bf16.mxu0 0
        %2094 = vmatpush2.bf16.msra.mxu0 0
        %2095 = vmatprep.mubr.bf16.mxu0 0
        %2096 = vmatmul.mubr.bf16.gmra.mxu0 %v2058
        %v2097 = vpop.f32.mrf.mxu0
        %v2098 = vadd.f32 0.0, %v2097
        %v2099 = vpop.f32.mrf.mxu0
        %v2100 = vpop.f32.mrf.mxu0
        %v2101 = vpop.f32.mrf.mxu0
        %2102 = vdwg.mxu0
        %2103 = vrot.lane.b32.xlu0 %v1767, 32
        %v2104 = vpop.permute.xlu0 %2103
        %2105 = vrot.lane.b32.xlu0 %v1768, 32
        %v2106 = vpop.permute.xlu0 %2105
        %v2108 = vsel %vm1769, %v2104, 0
        %v2111 = vsel %vm1769, %v2106, 0
        %2113 = vmatprep.subr.bf16.mxu0 0
        %2114 = vmatpush1.bf16.xpose.msra.mxu0 0
        %2115 = vmatprep.subr.bf16.mxu0 0
        %2116 = vmatpush1.bf16.xpose.msra.mxu0 0
        %2117 = vmatprep.subr.bf16.mxu0 0
        %2118 = vmatpush1.bf16.xpose.msra.mxu0 0
        %2119 = vmatprep.subr.bf16.mxu0 0
        %2120 = vmatpush1.bf16.xpose.msra.mxu0 0
        %2121 = vmatprep.subr.bf16.mxu0 0
        %2122 = vmatpush1.bf16.xpose.msra.mxu0 0
        %2123 = vmatprep.subr.bf16.mxu0 0
        %2124 = vmatpush1.bf16.xpose.msra.mxu0 0
        %2125 = vmatprep.subr.bf16.mxu0 0
        %2126 = vmatpush1.bf16.xpose.msra.mxu0 0
        %2127 = vmatprep.subr.bf16.mxu0 0
        %2128 = vmatpush1.bf16.xpose.msra.mxu0 %v2111
        %2129 = vmatprep.subr.bf16.mxu0 0
        %2130 = vmatpush2.bf16.xpose.msra.mxu0 0
        %2131 = vmatprep.subr.bf16.mxu0 0
        %2132 = vmatpush2.bf16.xpose.msra.mxu0 0
        %2133 = vmatprep.subr.bf16.mxu0 0
        %2134 = vmatpush2.bf16.xpose.msra.mxu0 0
        %2135 = vmatprep.subr.bf16.mxu0 0
        %2136 = vmatpush2.bf16.xpose.msra.mxu0 0
        %2137 = vmatprep.subr.bf16.mxu0 0
        %2138 = vmatpush2.bf16.xpose.msra.mxu0 0
        %2139 = vmatprep.subr.bf16.mxu0 0
        %2140 = vmatpush2.bf16.xpose.msra.mxu0 0
        %2141 = vmatprep.subr.bf16.mxu0 0
        %2142 = vmatpush2.bf16.xpose.msra.mxu0 0
        %2143 = vmatprep.subr.bf16.mxu0 0
        %2144 = vmatpush2.bf16.xpose.msra.mxu0 0
        %2145 = vmatprep.mubr.bf16.mxu0 0
        %2146 = vmatmul.mubr.bf16.gmra.mxu0 %v2108
        %v2147 = vpop.f32.mrf.mxu0
        %v2148 = vadd.f32 0.0, %v2147
        %v2149 = vpop.f32.mrf.mxu0
        %v2150 = vpop.f32.mrf.mxu0
        %v2151 = vpop.f32.mrf.mxu0
        %2152 = vdwg.mxu0
        %v2153 = vsel %vm1478, %v2148, -1e+30
        %v2154 = vsel %vm1817, %v2153, -inf
        %2155 = vmax.xlane.f32.xlu0 %v2154
        %v2156 = vpop.xlane.xlu0 %2155
        %v2157 = vsub.f32 %v2153, %v2156
        %v2158 = vmul.f32 %v2157, 1.442695
        %v2159 = vpow.pop %v2158
        %v2160 = vsel %vm1817, %v2159, 0.0
        %2161 = vadd.xlane.f32.xlu0 %v2160
        %v2162 = vpop.xlane.xlu0 %2161
        %v2163 = vrcp.pop %v2162
        %v2164 = vmul.f32 %v2159, %v2163
        %v2165 = vpack.c.bf16 %v2164, %v2164
        %2166 = vrot.lane.b32.xlu0 %v1830, 32
        %v2167 = vpop.permute.xlu0 %2166
        %v2169 = vsel %vm1817, %v2165, 0
        %v2172 = vsel %vm1834, %v2167, 0
        %2174 = vmatprep.subr.bf16.mxu0 0
        %2175 = vmatpush1.bf16.msra.mxu0 0
        %2176 = vmatprep.subr.bf16.mxu0 0
        %2177 = vmatpush1.bf16.msra.mxu0 0
        %2178 = vmatprep.subr.bf16.mxu0 0
        %2179 = vmatpush1.bf16.msra.mxu0 0
        %2180 = vmatprep.subr.bf16.mxu0 0
        %2181 = vmatpush1.bf16.msra.mxu0 0
        %2182 = vmatprep.subr.bf16.mxu0 0
        %2183 = vmatpush1.bf16.msra.mxu0 0
        %2184 = vmatprep.subr.bf16.mxu0 0
        %2185 = vmatpush1.bf16.msra.mxu0 0
        %2186 = vmatprep.subr.bf16.mxu0 0
        %2187 = vmatpush1.bf16.msra.mxu0 0
        %2188 = vmatprep.subr.bf16.mxu0 0
        %2189 = vmatpush1.bf16.msra.mxu0 %v2172
        %2190 = vmatprep.subr.bf16.mxu0 0
        %2191 = vmatpush2.bf16.msra.mxu0 0
        %2192 = vmatprep.subr.bf16.mxu0 0
        %2193 = vmatpush2.bf16.msra.mxu0 0
        %2194 = vmatprep.subr.bf16.mxu0 0
        %2195 = vmatpush2.bf16.msra.mxu0 0
        %2196 = vmatprep.subr.bf16.mxu0 0
        %2197 = vmatpush2.bf16.msra.mxu0 0
        %2198 = vmatprep.subr.bf16.mxu0 0
        %2199 = vmatpush2.bf16.msra.mxu0 0
        %2200 = vmatprep.subr.bf16.mxu0 0
        %2201 = vmatpush2.bf16.msra.mxu0 0
        %2202 = vmatprep.subr.bf16.mxu0 0
        %2203 = vmatpush2.bf16.msra.mxu0 0
        %2204 = vmatprep.subr.bf16.mxu0 0
        %2205 = vmatpush2.bf16.msra.mxu0 0
        %2206 = vmatprep.mubr.bf16.mxu0 0
        %2207 = vmatmul.mubr.bf16.gmra.mxu0 %v2169
        %v2208 = vpop.f32.mrf.mxu0
        %v2209 = vadd.f32 0.0, %v2208
        %v2210 = vpop.f32.mrf.mxu0
        %v2211 = vpop.f32.mrf.mxu0
        %v2212 = vpop.f32.mrf.mxu0
        %2213 = vdwg.mxu0
        %2215 = vrot.lane.b32.xlu0 %v1987, 32
        %v2216 = vpop.permute.xlu0 %2215
        %2219 = vrot.lane.b32.xlu0 %v2098, 64
        %v2220 = vpop.permute.xlu0 %2219
        %2223 = vrot.lane.b32.xlu0 %v2209, 96
        %v2224 = vpop.permute.xlu0 %2223
        %v2226 = vsel %vm1769, %v1873, %v2216
        %vm2227 = vcmask 523264
        %v2228 = vsel %vm2227, %v2226, %v2220
        %vm2229 = vcmask 785408
        %v2230 = vsel %vm2229, %v2228, %v2224
        %v2231 = vpack.c.bf16 %v2230, %v2230
        %v2232 = vld [vmem:[%s759] sm:$0xf]
        %v2233 = vld [vmem:[%s759 + $0x4] sm:$0xf]
        %v2234 = vld [vmem:[%s759 + $0x8] sm:$0xf]
        %v2235 = vld [vmem:[%s759 + $0xc] sm:$0xf]
        %v2236 = vld [vmem:[%s759 + $0x10] sm:$0xf]
        %v2237 = vld [vmem:[%s759 + $0x14] sm:$0xf]
        %v2238 = vld [vmem:[%s759 + $0x18] sm:$0xf]
        %v2239 = vld [vmem:[%s759 + $0x1c] sm:$0xf]
        %v2240 = vld [vmem:[%s759 + $0x20] sm:$0xf]
        %v2241 = vld [vmem:[%s759 + $0x24] sm:$0xf]
        %v2242 = vld [vmem:[%s759 + $0x28] sm:$0xf]
        %v2243 = vld [vmem:[%s759 + $0x2c] sm:$0xf]
        %v2244 = vld [vmem:[%s759 + $0x30] sm:$0xf]
        %v2245 = vld [vmem:[%s759 + $0x34] sm:$0xf]
        %v2246 = vld [vmem:[%s759 + $0x38] sm:$0xf]
        %v2247 = vld [vmem:[%s759 + $0x3c] sm:$0xf]
        %v2264 = vunpack.c.l.b16 %v2232
        %v2265 = vunpack.c.l.b16 %v2233
        %v2266 = vunpack.c.l.b16 %v2234
        %v2267 = vunpack.c.l.b16 %v2235
        %v2268 = vunpack.c.l.b16 %v2236
        %v2269 = vunpack.c.l.b16 %v2237
        %v2270 = vunpack.c.l.b16 %v2238
        %v2271 = vunpack.c.l.b16 %v2239
        %v2272 = vunpack.c.l.b16 %v2240
        %v2273 = vunpack.c.l.b16 %v2241
        %v2274 = vunpack.c.l.b16 %v2242
        %v2275 = vunpack.c.l.b16 %v2243
        %v2276 = vunpack.c.l.b16 %v2244
        %v2277 = vunpack.c.l.b16 %v2245
        %v2278 = vunpack.c.l.b16 %v2246
        %v2279 = vunpack.c.l.b16 %v2247
        %v2280 = vpack.c.b16 %v2265, %v2264
        %v2281 = vpack.c.b16 %v2267, %v2266
        %v2282 = vpack.c.b16 %v2269, %v2268
        %v2283 = vpack.c.b16 %v2271, %v2270
        %v2284 = vpack.c.b16 %v2273, %v2272
        %v2285 = vpack.c.b16 %v2275, %v2274
        %v2286 = vpack.c.b16 %v2277, %v2276
        %v2287 = vpack.c.b16 %v2279, %v2278
        %2296 = vmatprep.subr.bf16.mxu0 0
        %2297 = vmatpush1.bf16.msra.mxu0 %v2287
        %2298 = vmatprep.subr.bf16.mxu0 0
        %2299 = vmatpush1.bf16.msra.mxu0 %v2286
        %2300 = vmatprep.subr.bf16.mxu0 0
        %2301 = vmatpush1.bf16.msra.mxu0 %v2285
        %2302 = vmatprep.subr.bf16.mxu0 0
        %2303 = vmatpush1.bf16.msra.mxu0 %v2284
        %2304 = vmatprep.subr.bf16.mxu0 0
        %2305 = vmatpush1.bf16.msra.mxu0 %v2283
        %2306 = vmatprep.subr.bf16.mxu0 0
        %2307 = vmatpush1.bf16.msra.mxu0 %v2282
        %2308 = vmatprep.subr.bf16.mxu0 0
        %2309 = vmatpush1.bf16.msra.mxu0 %v2281
        %2310 = vmatprep.subr.bf16.mxu0 0
        %2311 = vmatpush1.bf16.msra.mxu0 %v2280
        %2312 = vmatprep.subr.bf16.mxu0 0
        %2313 = vmatpush2.bf16.msra.mxu0 0
        %2314 = vmatprep.subr.bf16.mxu0 0
        %2315 = vmatpush2.bf16.msra.mxu0 0
        %2316 = vmatprep.subr.bf16.mxu0 0
        %2317 = vmatpush2.bf16.msra.mxu0 0
        %2318 = vmatprep.subr.bf16.mxu0 0
        %2319 = vmatpush2.bf16.msra.mxu0 0
        %2320 = vmatprep.subr.bf16.mxu0 0
        %2321 = vmatpush2.bf16.msra.mxu0 0
        %2322 = vmatprep.subr.bf16.mxu0 0
        %2323 = vmatpush2.bf16.msra.mxu0 0
        %2324 = vmatprep.subr.bf16.mxu0 0
        %2325 = vmatpush2.bf16.msra.mxu0 0
        %2326 = vmatprep.subr.bf16.mxu0 0
        %2327 = vmatpush2.bf16.msra.mxu0 0
        %2328 = vmatprep.mubr.bf16.mxu0 0
        %2329 = vmatmul.mubr.bf16.gmra.mxu0 %v2231
        %v2330 = vpop.f32.mrf.mxu0
        %v2331 = vadd.f32 0.0, %v2330
        %v2332 = vpop.f32.mrf.mxu0
        %v2333 = vpop.f32.mrf.mxu0
        %v2334 = vpop.f32.mrf.mxu0
        %2335 = vdwg.mxu0
        %v2336 = vadd.f32 %v1475, %v2331
        %v2337 = vld [vmem:[%s924] sm:$0x1]
        %v2339 = vlaneseq
        %v2340 = vshrl.u32 %v2339, 7
        %v2341 = vsub.s32 0, %v2340
        %v2342 = vrot.slane %v2337, %v2341
        %v2344 = vadd.f32 %v2336, %v2342
        %v2345 = vld [vmem:[%s767] sm:$0x1]
        %v2346 = vld [vmem:[%s775] sm:$0x1]
        %2347 = vadd.xlane.f32.xlu0 %v2344
        %v2348 = vpop.xlane.xlu0 %2347
        %v2349 = vmul.f32 %v2348, %v1483
        %v2350 = vsub.f32 %v2344, %v2349
        %v2351 = vmul.f32 %v2350, %v2350
        %2352 = vadd.xlane.f32.xlu0 %v2351
        %v2353 = vpop.xlane.xlu0 %2352
        %v2354 = vmul.f32 %v2353, %v1483
        %v2355 = vadd.f32 %v2354, 1e-06
        %v2356 = vrsqrt.pop %v2355
        %v2357 = vmul.f32 %v2350, %v2356
        %v2359 = vlaneseq
        %v2360 = vshrl.u32 %v2359, 7
        %v2361 = vsub.s32 0, %v2360
        %v2362 = vrot.slane %v2345, %v2361
        %v2364 = vmul.f32 %v2357, %v2362
        %v2366 = vlaneseq
        %v2367 = vshrl.u32 %v2366, 7
        %v2368 = vsub.s32 0, %v2367
        %v2369 = vrot.slane %v2346, %v2368
        %v2371 = vadd.f32 %v2364, %v2369
        %v2372 = vpack.c.bf16 %v2371, %v2371
        %v2373 = vld [vmem:[%s929] sm:$0xff]
        %v2374 = vld [vmem:[%s929 + $0x8] sm:$0xff]
        %v2375 = vld [vmem:[%s929 + $0x10] sm:$0xff]
        %v2376 = vld [vmem:[%s929 + $0x18] sm:$0xff]
        %v2377 = vld [vmem:[%s929 + $0x20] sm:$0xff]
        %v2378 = vld [vmem:[%s929 + $0x28] sm:$0xff]
        %v2379 = vld [vmem:[%s929 + $0x30] sm:$0xff]
        %v2380 = vld [vmem:[%s929 + $0x38] sm:$0xff]
        %v2381 = vld [vmem:[%s929 + $0x40] sm:$0xff]
        %v2382 = vld [vmem:[%s929 + $0x48] sm:$0xff]
        %v2383 = vld [vmem:[%s929 + $0x50] sm:$0xff]
        %v2384 = vld [vmem:[%s929 + $0x58] sm:$0xff]
        %v2385 = vld [vmem:[%s929 + $0x60] sm:$0xff]
        %v2386 = vld [vmem:[%s929 + $0x68] sm:$0xff]
        %v2387 = vld [vmem:[%s929 + $0x70] sm:$0xff]
        %v2388 = vld [vmem:[%s929 + $0x78] sm:$0xff]
        %v2389 = vld [vmem:[%s933] sm:$0x3]
        %v2391 = vlaneseq
        %v2392 = vshrl.u32 %v2391, 7
        %v2393 = vsub.s32 0, %v2392
        %v2394 = vrot.slane %v2389, %v2393
        %v2395 = vlaneseq
        %v2396 = vshrl.u32 %v2395, 7
        %v2397 = vsub.s32 1, %v2396
        %v2398 = vrot.slane %v2389, %v2397
        %v2417 = vunpack.c.l.b16 %v2373
        %v2418 = vunpack.c.h.b16 %v2373
        %v2419 = vunpack.c.l.b16 %v2374
        %v2420 = vunpack.c.h.b16 %v2374
        %v2421 = vunpack.c.l.b16 %v2375
        %v2422 = vunpack.c.h.b16 %v2375
        %v2423 = vunpack.c.l.b16 %v2376
        %v2424 = vunpack.c.h.b16 %v2376
        %v2425 = vunpack.c.l.b16 %v2377
        %v2426 = vunpack.c.h.b16 %v2377
        %v2427 = vunpack.c.l.b16 %v2378
        %v2428 = vunpack.c.h.b16 %v2378
        %v2429 = vunpack.c.l.b16 %v2379
        %v2430 = vunpack.c.h.b16 %v2379
        %v2431 = vunpack.c.l.b16 %v2380
        %v2432 = vunpack.c.h.b16 %v2380
        %v2433 = vunpack.c.l.b16 %v2381
        %v2434 = vunpack.c.h.b16 %v2381
        %v2435 = vunpack.c.l.b16 %v2382
        %v2436 = vunpack.c.h.b16 %v2382
        %v2437 = vunpack.c.l.b16 %v2383
        %v2438 = vunpack.c.h.b16 %v2383
        %v2439 = vunpack.c.l.b16 %v2384
        %v2440 = vunpack.c.h.b16 %v2384
        %v2441 = vunpack.c.l.b16 %v2385
        %v2442 = vunpack.c.h.b16 %v2385
        %v2443 = vunpack.c.l.b16 %v2386
        %v2444 = vunpack.c.h.b16 %v2386
        %v2445 = vunpack.c.l.b16 %v2387
        %v2446 = vunpack.c.h.b16 %v2387
        %v2447 = vunpack.c.l.b16 %v2388
        %v2448 = vunpack.c.h.b16 %v2388
        %v2449 = vpack.c.b16 %v2419, %v2417
        %v2450 = vpack.c.b16 %v2420, %v2418
        %v2451 = vpack.c.b16 %v2423, %v2421
        %v2452 = vpack.c.b16 %v2424, %v2422
        %v2453 = vpack.c.b16 %v2427, %v2425
        %v2454 = vpack.c.b16 %v2428, %v2426
        %v2455 = vpack.c.b16 %v2431, %v2429
        %v2456 = vpack.c.b16 %v2432, %v2430
        %v2457 = vpack.c.b16 %v2435, %v2433
        %v2458 = vpack.c.b16 %v2436, %v2434
        %v2459 = vpack.c.b16 %v2439, %v2437
        %v2460 = vpack.c.b16 %v2440, %v2438
        %v2461 = vpack.c.b16 %v2443, %v2441
        %v2462 = vpack.c.b16 %v2444, %v2442
        %v2463 = vpack.c.b16 %v2447, %v2445
        %v2464 = vpack.c.b16 %v2448, %v2446
        %2481 = vmatprep.subr.bf16.mxu0 %v2464
        %2482 = vmatpush1.bf16.msra.mxu0 %v2463
        %2483 = vmatprep.subr.bf16.mxu0 %v2462
        %2484 = vmatpush1.bf16.msra.mxu0 %v2461
        %2485 = vmatprep.subr.bf16.mxu0 %v2460
        %2486 = vmatpush1.bf16.msra.mxu0 %v2459
        %2487 = vmatprep.subr.bf16.mxu0 %v2458
        %2488 = vmatpush1.bf16.msra.mxu0 %v2457
        %2489 = vmatprep.subr.bf16.mxu0 %v2456
        %2490 = vmatpush1.bf16.msra.mxu0 %v2455
        %2491 = vmatprep.subr.bf16.mxu0 %v2454
        %2492 = vmatpush1.bf16.msra.mxu0 %v2453
        %2493 = vmatprep.subr.bf16.mxu0 %v2452
        %2494 = vmatpush1.bf16.msra.mxu0 %v2451
        %2495 = vmatprep.subr.bf16.mxu0 %v2450
        %2496 = vmatpush1.bf16.msra.mxu0 %v2449
        %2497 = vmatprep.subr.bf16.mxu0 0
        %2498 = vmatpush2.bf16.msra.mxu0 0
        %2499 = vmatprep.subr.bf16.mxu0 0
        %2500 = vmatpush2.bf16.msra.mxu0 0
        %2501 = vmatprep.subr.bf16.mxu0 0
        %2502 = vmatpush2.bf16.msra.mxu0 0
        %2503 = vmatprep.subr.bf16.mxu0 0
        %2504 = vmatpush2.bf16.msra.mxu0 0
        %2505 = vmatprep.subr.bf16.mxu0 0
        %2506 = vmatpush2.bf16.msra.mxu0 0
        %2507 = vmatprep.subr.bf16.mxu0 0
        %2508 = vmatpush2.bf16.msra.mxu0 0
        %2509 = vmatprep.subr.bf16.mxu0 0
        %2510 = vmatpush2.bf16.msra.mxu0 0
        %2511 = vmatprep.subr.bf16.mxu0 0
        %2512 = vmatpush2.bf16.msra.mxu0 0
        %2513 = vmatprep.mubr.bf16.mxu0 0
        %2514 = vmatmul.mubr.bf16.gmra.mxu0 %v2372
        %v2515 = vpop.f32.mrf.mxu0
        %v2516 = vadd.f32 %v2394, %v2515
        %v2517 = vpop.f32.mrf.mxu0
        %v2518 = vadd.f32 %v2398, %v2517
        %v2519 = vpop.f32.mrf.mxu0
        %v2520 = vpop.f32.mrf.mxu0
        %2521 = vdwg.mxu0
        %v2522 = vmul.f32 %v2516, 0.5
        %v2523 = vmul.f32 %v2518, 0.5
        %v2524 = vmul.f32 %v2516, 0.70710677
        %v2525 = vmul.f32 %v2518, 0.70710677
        %v2526 = verf.f32.pop %v2524
        %v2527 = verf.f32.pop %v2525
        %v2528 = vadd.f32 %v2526, 1.0
        %v2529 = vadd.f32 %v2527, 1.0
        %v2530 = vmul.f32 %v2522, %v2528
        %v2531 = vmul.f32 %v2523, %v2529
        %v2532 = vpack.c.bf16 %v2530, %v2530
        %v2533 = vpack.c.bf16 %v2531, %v2531
        %v2534 = vld [vmem:[%s938] sm:$0xf]
        %v2535 = vld [vmem:[%s938 + $0x4] sm:$0xf]
        %v2536 = vld [vmem:[%s938 + $0x8] sm:$0xf]
        %v2537 = vld [vmem:[%s938 + $0xc] sm:$0xf]
        %v2538 = vld [vmem:[%s938 + $0x10] sm:$0xf]
        %v2539 = vld [vmem:[%s938 + $0x14] sm:$0xf]
        %v2540 = vld [vmem:[%s938 + $0x18] sm:$0xf]
        %v2541 = vld [vmem:[%s938 + $0x1c] sm:$0xf]
        %v2542 = vld [vmem:[%s938 + $0x20] sm:$0xf]
        %v2543 = vld [vmem:[%s938 + $0x24] sm:$0xf]
        %v2544 = vld [vmem:[%s938 + $0x28] sm:$0xf]
        %v2545 = vld [vmem:[%s938 + $0x2c] sm:$0xf]
        %v2546 = vld [vmem:[%s938 + $0x30] sm:$0xf]
        %v2547 = vld [vmem:[%s938 + $0x34] sm:$0xf]
        %v2548 = vld [vmem:[%s938 + $0x38] sm:$0xf]
        %v2549 = vld [vmem:[%s938 + $0x3c] sm:$0xf]
        %v2550 = vld [vmem:[%s938 + $0x40] sm:$0xf]
        %v2551 = vld [vmem:[%s938 + $0x44] sm:$0xf]
        %v2552 = vld [vmem:[%s938 + $0x48] sm:$0xf]
        %v2553 = vld [vmem:[%s938 + $0x4c] sm:$0xf]
        %v2554 = vld [vmem:[%s938 + $0x50] sm:$0xf]
        %v2555 = vld [vmem:[%s938 + $0x54] sm:$0xf]
        %v2556 = vld [vmem:[%s938 + $0x58] sm:$0xf]
        %v2557 = vld [vmem:[%s938 + $0x5c] sm:$0xf]
        %v2558 = vld [vmem:[%s938 + $0x60] sm:$0xf]
        %v2559 = vld [vmem:[%s938 + $0x64] sm:$0xf]
        %v2560 = vld [vmem:[%s938 + $0x68] sm:$0xf]
        %v2561 = vld [vmem:[%s938 + $0x6c] sm:$0xf]
        %v2562 = vld [vmem:[%s938 + $0x70] sm:$0xf]
        %v2563 = vld [vmem:[%s938 + $0x74] sm:$0xf]
        %v2564 = vld [vmem:[%s938 + $0x78] sm:$0xf]
        %v2565 = vld [vmem:[%s938 + $0x7c] sm:$0xf]
        %v2598 = vunpack.c.l.b16 %v2534
        %v2599 = vunpack.c.l.b16 %v2535
        %v2600 = vunpack.c.l.b16 %v2536
        %v2601 = vunpack.c.l.b16 %v2537
        %v2602 = vunpack.c.l.b16 %v2538
        %v2603 = vunpack.c.l.b16 %v2539
        %v2604 = vunpack.c.l.b16 %v2540
        %v2605 = vunpack.c.l.b16 %v2541
        %v2606 = vunpack.c.l.b16 %v2542
        %v2607 = vunpack.c.l.b16 %v2543
        %v2608 = vunpack.c.l.b16 %v2544
        %v2609 = vunpack.c.l.b16 %v2545
        %v2610 = vunpack.c.l.b16 %v2546
        %v2611 = vunpack.c.l.b16 %v2547
        %v2612 = vunpack.c.l.b16 %v2548
        %v2613 = vunpack.c.l.b16 %v2549
        %v2614 = vunpack.c.l.b16 %v2550
        %v2615 = vunpack.c.l.b16 %v2551
        %v2616 = vunpack.c.l.b16 %v2552
        %v2617 = vunpack.c.l.b16 %v2553
        %v2618 = vunpack.c.l.b16 %v2554
        %v2619 = vunpack.c.l.b16 %v2555
        %v2620 = vunpack.c.l.b16 %v2556
        %v2621 = vunpack.c.l.b16 %v2557
        %v2622 = vunpack.c.l.b16 %v2558
        %v2623 = vunpack.c.l.b16 %v2559
        %v2624 = vunpack.c.l.b16 %v2560
        %v2625 = vunpack.c.l.b16 %v2561
        %v2626 = vunpack.c.l.b16 %v2562
        %v2627 = vunpack.c.l.b16 %v2563
        %v2628 = vunpack.c.l.b16 %v2564
        %v2629 = vunpack.c.l.b16 %v2565
        %v2630 = vpack.c.b16 %v2599, %v2598
        %v2631 = vpack.c.b16 %v2601, %v2600
        %v2632 = vpack.c.b16 %v2603, %v2602
        %v2633 = vpack.c.b16 %v2605, %v2604
        %v2634 = vpack.c.b16 %v2607, %v2606
        %v2635 = vpack.c.b16 %v2609, %v2608
        %v2636 = vpack.c.b16 %v2611, %v2610
        %v2637 = vpack.c.b16 %v2613, %v2612
        %v2638 = vpack.c.b16 %v2615, %v2614
        %v2639 = vpack.c.b16 %v2617, %v2616
        %v2640 = vpack.c.b16 %v2619, %v2618
        %v2641 = vpack.c.b16 %v2621, %v2620
        %v2642 = vpack.c.b16 %v2623, %v2622
        %v2643 = vpack.c.b16 %v2625, %v2624
        %v2644 = vpack.c.b16 %v2627, %v2626
        %v2645 = vpack.c.b16 %v2629, %v2628
        %2662 = vmatprep.subr.bf16.mxu0 0
        %2663 = vmatpush1.bf16.msra.mxu0 %v2637
        %2664 = vmatprep.subr.bf16.mxu0 0
        %2665 = vmatpush1.bf16.msra.mxu0 %v2636
        %2666 = vmatprep.subr.bf16.mxu0 0
        %2667 = vmatpush1.bf16.msra.mxu0 %v2635
        %2668 = vmatprep.subr.bf16.mxu0 0
        %2669 = vmatpush1.bf16.msra.mxu0 %v2634
        %2670 = vmatprep.subr.bf16.mxu0 0
        %2671 = vmatpush1.bf16.msra.mxu0 %v2633
        %2672 = vmatprep.subr.bf16.mxu0 0
        %2673 = vmatpush1.bf16.msra.mxu0 %v2632
        %2674 = vmatprep.subr.bf16.mxu0 0
        %2675 = vmatpush1.bf16.msra.mxu0 %v2631
        %2676 = vmatprep.subr.bf16.mxu0 0
        %2677 = vmatpush1.bf16.msra.mxu0 %v2630
        %2678 = vmatprep.subr.bf16.mxu0 0
        %2679 = vmatpush2.bf16.msra.mxu0 %v2645
        %2680 = vmatprep.subr.bf16.mxu0 0
        %2681 = vmatpush2.bf16.msra.mxu0 %v2644
        %2682 = vmatprep.subr.bf16.mxu0 0
        %2683 = vmatpush2.bf16.msra.mxu0 %v2643
        %2684 = vmatprep.subr.bf16.mxu0 0
        %2685 = vmatpush2.bf16.msra.mxu0 %v2642
        %2686 = vmatprep.subr.bf16.mxu0 0
        %2687 = vmatpush2.bf16.msra.mxu0 %v2641
        %2688 = vmatprep.subr.bf16.mxu0 0
        %2689 = vmatpush2.bf16.msra.mxu0 %v2640
        %2690 = vmatprep.subr.bf16.mxu0 0
        %2691 = vmatpush2.bf16.msra.mxu0 %v2639
        %2692 = vmatprep.subr.bf16.mxu0 0
        %2693 = vmatpush2.bf16.msra.mxu0 %v2638
        %2694 = vmatprep.mubr.bf16.mxu0 %v2533
        %2695 = vmatmul.mubr.bf16.gmra.mxu0 %v2532
        %v2696 = vpop.f32.mrf.mxu0
        %v2697 = vadd.f32 0.0, %v2696
        %v2698 = vpop.f32.mrf.mxu0
        %v2699 = vpop.f32.mrf.mxu0
        %v2700 = vpop.f32.mrf.mxu0
        %2701 = vdwg.mxu0
        %v2702 = vadd.f32 %v2344, %v2697
        %v2703 = vld [vmem:[%s783] sm:$0x1]
        %v2705 = vlaneseq
        %v2706 = vshrl.u32 %v2705, 7
        %v2707 = vsub.s32 0, %v2706
        %v2708 = vrot.slane %v2703, %v2707
        %v2710 = vadd.f32 %v2702, %v2708
        %2711 = vst [vmem:[#allocation2] sm:$0xff] %v2710
        %p2712 = scmp.eq.s32.totalorder %s49, 1
        // Predicated region
        $region133: #{vit_forward.1} parent=95 // pred_check
          %p2713 = pneg %p2712
        $region134: #{vit_forward.1} parent=95 // pred_check_branch
          %2715 = sbr.rel (%p2713) target = $region136
        $region135: #{vit_forward.1} parent=95 // pred_region
          %v2716 = vld [vmem:[#allocation11] sm:$0x1]
          %v2717 = vld [vmem:[#allocation12] sm:$0x1]
          %vm2718 = vcmask 1040384
          %v2719 = vsel %vm2718, %v2710, 0.0
          %2720 = vadd.xlane.f32.xlu0 %v2719
          %v2721 = vpop.xlane.xlu0 %2720
          %v2722 = vmul.f32 %v2721, %v1483
          %v2723 = vsub.f32 %v2710, %v2722
          %v2724 = vmul.f32 %v2723, %v2723
          %v2725 = vsel %vm2718, %v2724, 0.0
          %2726 = vadd.xlane.f32.xlu0 %v2725
          %v2727 = vpop.xlane.xlu0 %2726
          %v2728 = vmul.f32 %v2727, %v1483
          %v2729 = vadd.f32 %v2728, 1e-06
          %v2730 = vrsqrt.pop %v2729
          %v2731 = vmul.f32 %v2723, %v2730
          %v2732 = vmul.f32 %v2731, %v2716
          %v2733 = vadd.f32 %v2732, %v2717
          %v2734 = vpack.c.bf16 %v2733, %v2733
          %v2735 = vld [vmem:[#allocation14] sm:$0xf]
          %v2736 = vld [vmem:[#allocation14 + $0x4] sm:$0xf]
          %v2737 = vld [vmem:[#allocation14 + $0x8] sm:$0xf]
          %v2738 = vld [vmem:[#allocation14 + $0xc] sm:$0xf]
          %v2739 = vld [vmem:[#allocation14 + $0x10] sm:$0xf]
          %v2740 = vld [vmem:[#allocation14 + $0x14] sm:$0xf]
          %v2741 = vld [vmem:[#allocation14 + $0x18] sm:$0xf]
          %v2742 = vld [vmem:[#allocation14 + $0x1c] sm:$0xf]
          %v2743 = vld [vmem:[#allocation14 + $0x20] sm:$0xf]
          %v2744 = vld [vmem:[#allocation14 + $0x24] sm:$0xf]
          %v2745 = vld [vmem:[#allocation14 + $0x28] sm:$0xf]
          %v2746 = vld [vmem:[#allocation14 + $0x2c] sm:$0xf]
          %v2747 = vld [vmem:[#allocation14 + $0x30] sm:$0xf]
          %v2748 = vld [vmem:[#allocation14 + $0x34] sm:$0xf]
          %v2749 = vld [vmem:[#allocation14 + $0x38] sm:$0xf]
          %v2750 = vld [vmem:[#allocation14 + $0x3c] sm:$0xf]
          %v2751 = vld [vmem:[#allocation15] sm:$0x1]
          %v2768 = vunpack.c.l.b16 %v2735
          %v2769 = vunpack.c.l.b16 %v2736
          %v2770 = vunpack.c.l.b16 %v2737
          %v2771 = vunpack.c.l.b16 %v2738
          %v2772 = vunpack.c.l.b16 %v2739
          %v2773 = vunpack.c.l.b16 %v2740
          %v2774 = vunpack.c.l.b16 %v2741
          %v2775 = vunpack.c.l.b16 %v2742
          %v2776 = vunpack.c.l.b16 %v2743
          %v2777 = vunpack.c.l.b16 %v2744
          %v2778 = vunpack.c.l.b16 %v2745
          %v2779 = vunpack.c.l.b16 %v2746
          %v2780 = vunpack.c.l.b16 %v2747
          %v2781 = vunpack.c.l.b16 %v2748
          %v2782 = vunpack.c.l.b16 %v2749
          %v2783 = vunpack.c.l.b16 %v2750
          %v2784 = vpack.c.b16 %v2769, %v2768
          %v2785 = vpack.c.b16 %v2771, %v2770
          %v2786 = vpack.c.b16 %v2773, %v2772
          %v2787 = vpack.c.b16 %v2775, %v2774
          %v2788 = vpack.c.b16 %v2777, %v2776
          %v2789 = vpack.c.b16 %v2779, %v2778
          %v2790 = vpack.c.b16 %v2781, %v2780
          %v2791 = vpack.c.b16 %v2783, %v2782
          %2800 = vmatprep.subr.bf16.mxu0 0
          %2801 = vmatpush1.bf16.msra.mxu0 %v2791
          %2802 = vmatprep.subr.bf16.mxu0 0
          %2803 = vmatpush1.bf16.msra.mxu0 %v2790
          %2804 = vmatprep.subr.bf16.mxu0 0
          %2805 = vmatpush1.bf16.msra.mxu0 %v2789
          %2806 = vmatprep.subr.bf16.mxu0 0
          %2807 = vmatpush1.bf16.msra.mxu0 %v2788
          %2808 = vmatprep.subr.bf16.mxu0 0
          %2809 = vmatpush1.bf16.msra.mxu0 %v2787
          %2810 = vmatprep.subr.bf16.mxu0 0
          %2811 = vmatpush1.bf16.msra.mxu0 %v2786
          %2812 = vmatprep.subr.bf16.mxu0 0
          %2813 = vmatpush1.bf16.msra.mxu0 %v2785
          %2814 = vmatprep.subr.bf16.mxu0 0
          %2815 = vmatpush1.bf16.msra.mxu0 %v2784
          %2816 = vmatprep.subr.bf16.mxu0 0
          %2817 = vmatpush2.bf16.msra.mxu0 0
          %2818 = vmatprep.subr.bf16.mxu0 0
          %2819 = vmatpush2.bf16.msra.mxu0 0
          %2820 = vmatprep.subr.bf16.mxu0 0
          %2821 = vmatpush2.bf16.msra.mxu0 0
          %2822 = vmatprep.subr.bf16.mxu0 0
          %2823 = vmatpush2.bf16.msra.mxu0 0
          %2824 = vmatprep.subr.bf16.mxu0 0
          %2825 = vmatpush2.bf16.msra.mxu0 0
          %2826 = vmatprep.subr.bf16.mxu0 0
          %2827 = vmatpush2.bf16.msra.mxu0 0
          %2828 = vmatprep.subr.bf16.mxu0 0
          %2829 = vmatpush2.bf16.msra.mxu0 0
          %2830 = vmatprep.subr.bf16.mxu0 0
          %2831 = vmatpush2.bf16.msra.mxu0 0
          %2832 = vmatprep.mubr.bf16.mxu0 0
          %2833 = vmatmul.mubr.bf16.gmra.mxu0 %v2734
          %v2834 = vpop.f32.mrf.mxu0
          %v2835 = vadd.f32 %v2751, %v2834
          %v2836 = vpop.f32.mrf.mxu0
          %v2837 = vpop.f32.mrf.mxu0
          %v2838 = vpop.f32.mrf.mxu0
          %2839 = vdwg.mxu0
          %2840 = vst [vmem:[%s901] sm:$0x1] %v2835
        $region136: #{vit_forward.1} parent=95 // pred_fallthru
          _
        %s2841 = sand.u32 %s528, 1
        %s2842 = scalar_lea.sflag [#allocation5], %s2841
        %s2843 = sand.u32 %s528, 1
        %s2844 = scalar_lea.vmem [#allocation17], %s2843
        // Predicated region
        $region137: #{vit_forward.1} parent=95 // pred_check
          %p2845 = pneg %p538
        $region138: #{vit_forward.1} parent=95 // pred_check_branch
          %2847 = sbr.rel (%p2845) target = $region140
        $region139: #{vit_forward.1} parent=95 // pred_region
          %s2849 = ssub.s32 16, 16
          %2850 = vsyncadd %s2842, %s2849
          %s2851 = smul.addr %s48, 16
          %s2852 = scalar_lea.hbm %s19, %s2851
          %s2854 = sshll.u32 %s2844, 4
          %s2855 = int_to_ptr.vmem [resolvable:$true] %s2854
          %2857 = dma.vmem_to_hbm [thread:$0]  %s2855, 16, %s2852, %s2842
        $region140: #{vit_forward.1} parent=95 // pred_fallthru
          _
      $region96: #{vit_forward.1} parent=5 // pred_fallthru
        _
      %p2858 = scmp.le.s32.totalorder 2, %s39
      // Predicated region
      $region141: #{vit_forward.1} parent=5 // pred_check
        %p2859 = pneg %p2858
      $region142: #{vit_forward.1} parent=5 // pred_check_branch
        %2861 = sbr.rel (%p2859) target = $region144
      $region143: #{vit_forward.1} parent=5 // pred_region
        %s2862 = ssub.s32 %s39, 2
        // Predicated region
        $region145: #{vit_forward.1} parent=143 // pred_check
          %p2863 = pneg %p544
        $region146: #{vit_forward.1} parent=143 // pred_check_branch
          %2865 = sbr.rel (%p2863) target = $region148
        $region147: #{vit_forward.1} parent=143 // pred_region
          %s2866 = sand.u32 %s529, 1
          %s2867 = scalar_lea.sflag [#allocation5], %s2866
          %s2868 = sand.u32 %s529, 1
          %s2869 = scalar_lea.vmem [#allocation17], %s2868
          %2870 = dma.done %s2867, 16
        $region148: #{vit_forward.1} parent=143 // pred_fallthru
          _
      $region144: #{vit_forward.1} parent=5 // pred_fallthru
        _
    $region6: #{vit_forward.1} parent=1 // loop_footer
      %s43 = sadd.s32 1, %s39
    $region7: #{vit_forward.1} parent=1 // loop_footer_branch
      %38 = sbr.rel target = $region3
    $region8: #{vit_forward.1} parent=1 // loop_exit
      _
    %2871 = vsyncpa [#allocation4], 1
    %s2872 = scalar_lea.sflag [#allocation4], 1
    %2873 = vsyncpa %s2872, 1
    %2874 = vsyncpa [#allocation7], 1
    %s2875 = scalar_lea.sflag [#allocation7], 1
    %2876 = vsyncpa %s2875, 1
    %2877 = vsyncpa [#allocation10], 1
    %s2878 = scalar_lea.sflag [#allocation10], 1
    %2879 = vsyncpa %s2878, 1
    %2880 = vsyncpa [#allocation13], 1
    %2881 = vsyncpa [#allocation16], 1
    %2882 = vsyncpa [#allocation5], 1
    %s2883 = scalar_lea.sflag [#allocation5], 1
    %2884 = vsyncpa %s2883, 1

</llo_original>
